<compile_context>
chip_gen: v6e
topology: v6e:2x2x1
jax: 0.10.0
libtpu: 0.0.40
codegen_flags: <defaults>
</compile_context>

<pallas_src>
import math
import functools

import jax
import jax.numpy as jnp
from jax import lax
from jax.experimental import pallas as pl
from jax.experimental.pallas import tpu as pltpu


def _round_up(x, m):
    return (x + m - 1) // m * m


_VMEM_LIMIT = 32 << 20


# ----------------------------------------------------------------------------
# Pallas kernels
# ----------------------------------------------------------------------------
def _matmul_bias_act_kernel(x_ref, w_ref, b_ref, o_ref, *, relu):
    # bf16 x bf16 -> f32 accumulate on the MXU; bias/ReLU epilogue in f32 (VPU).
    acc = jnp.dot(x_ref[...], w_ref[...], preferred_element_type=jnp.float32)
    acc = acc + b_ref[...]
    if relu:
        acc = jnp.maximum(acc, 0.0)
    o_ref[...] = acc.astype(o_ref.dtype)


def _head_kernel(x_ref, w1_ref, b1_ref, w2_ref, b2_ref, o_ref):
    # fc1 + ReLU + combined [q_out | val] in one kernel; the fc1 activation
    # never leaves VMEM/vregs.
    h = jnp.dot(x_ref[...], w1_ref[...], preferred_element_type=jnp.float32)
    h = jnp.maximum(h + b1_ref[...], 0.0)
    y = jnp.dot(h.astype(w2_ref.dtype), w2_ref[...],
                preferred_element_type=jnp.float32)
    o_ref[...] = (y + b2_ref[...]).astype(o_ref.dtype)


# ----------------------------------------------------------------------------
# Pallas wrappers
# ----------------------------------------------------------------------------
def pallas_matmul_bias_act(x, wp, bp, *, relu, n_out, out_dtype=jnp.float32,
                           tile_m=256):
    """act(x @ wp + bp)[:, :n_out].

    x  : (M, K)  any float dtype (cast to wp.dtype)
    wp : (Kp, Np) bf16, pre-padded at init (zero padding -> exact result)
    bp : (1, Np)  f32,  pre-padded at init
    """
    M, K = x.shape
    Kp, Np = wp.shape

    # Load-balanced row tiling: <= tile_m rows per block, 16-row aligned
    # (safe for bf16 sublane packing), minimal zero-row padding.
    Mp0 = _round_up(max(M, 16), 16)
    n_blk = -(-Mp0 // tile_m)                 # ceil
    tm = _round_up(-(-Mp0 // n_blk), 16)
    Mp = tm * n_blk

    xp = x.astype(wp.dtype)
    pad_m, pad_k = Mp - M, Kp - K
    if pad_m or pad_k:
        xp = jnp.pad(xp, ((0, pad_m), (0, pad_k)))

    out = pl.pallas_call(
        functools.partial(_matmul_bias_act_kernel, relu=relu),
        out_shape=jax.ShapeDtypeStruct((Mp, Np), out_dtype),
        grid=(n_blk,),
        in_specs=[
            pl.BlockSpec((tm, Kp), lambda i: (i, 0)),   # row tile of patches
            pl.BlockSpec((Kp, Np), lambda i: (0, 0)),   # weight stays resident
            pl.BlockSpec((1, Np), lambda i: (0, 0)),    # bias stays resident
        ],
        out_specs=pl.BlockSpec((tm, Np), lambda i: (i, 0)),
        compiler_params=pltpu.CompilerParams(
            dimension_semantics=("parallel",),
            vmem_limit_bytes=_VMEM_LIMIT),
    )(xp, wp, bp)
    return out[:M, :n_out]


def pallas_head(x, w1, b1, w2, b2, *, act_space):
    """val, q = split( relu(x @ w1 + b1) @ w2 + b2 ).  Single fused kernel."""
    M, K = x.shape
    Kp, N1 = w1.shape
    _, N2 = w2.shape
    Mp = _round_up(max(M, 8), 8)
    xp = jnp.pad(x.astype(w1.dtype), ((0, Mp - M), (0, Kp - K)))

    y = pl.pallas_call(
        _head_kernel,
        out_shape=jax.ShapeDtypeStruct((Mp, N2), jnp.float32),
        in_specs=[
            pl.BlockSpec((Mp, Kp), lambda: (0, 0)),
            pl.BlockSpec((Kp, N1), lambda: (0, 0)),
            pl.BlockSpec((1, N1), lambda: (0, 0)),
            pl.BlockSpec((N1, N2), lambda: (0, 0)),
            pl.BlockSpec((1, N2), lambda: (0, 0)),
        ],
        out_specs=pl.BlockSpec((Mp, N2), lambda: (0, 0)),
        compiler_params=pltpu.CompilerParams(vmem_limit_bytes=_VMEM_LIMIT),
    )(xp, w1, b1, w2, b2)

    q = y[:M, :act_space]
    val = y[:M, act_space:act_space + 1]
    return val, q


# ----------------------------------------------------------------------------
# Parameter construction (PyTorch-style uniform init); weights pre-reshaped,
# pre-padded and pre-cast to bf16 ONCE here.
# ----------------------------------------------------------------------------
def init_model(key, obs_space, act_space):
    c, hh, ww = obs_space[-3], obs_space[-2], obs_space[-1]
    h1 = math.ceil((hh - 9 + 1) / 3.0); w1 = math.ceil((ww - 9 + 1) / 3.0)
    h2 = math.ceil((h1 - 5 + 1) / 2.0); w2 = math.ceil((w1 - 5 + 1) / 2.0)
    h3 = math.ceil((h2 - 3 + 1) / 1.0); w3 = math.ceil((w2 - 3 + 1) / 1.0)
    flat_size = int(h3 * w3 * 64)

    keys = jax.random.split(key, 8)
    params = {}
    meta = {"flat_size": flat_size, "act_space": int(act_space)}

    def add_conv(name, k, oc, ic, kh, kw, stride, pad):
        wk, bk = jax.random.split(k)
        bound = 1.0 / math.sqrt(ic * kh * kw)
        w = jax.random.uniform(wk, (oc, ic, kh, kw), jnp.float32, -bound, bound)
        b = jax.random.uniform(bk, (oc,), jnp.float32, -bound, bound)
        K = ic * kh * kw
        Kp = _round_up(K, 128)
        Np = _round_up(oc, 128)
        # conv_general_dilated_patches columns are channel-major (c, kh, kw),
        # exactly PyTorch's weight.reshape(oc, c*kh*kw) flatten order.
        wp = jnp.pad(w.reshape(oc, K).T,
                     ((0, Kp - K), (0, Np - oc))).astype(jnp.bfloat16)
        bp = jnp.pad(b, (0, Np - oc)).reshape(1, Np)
        params[name] = {"w": wp, "b": bp}
        meta[name] = {"kh": kh, "kw": kw, "oc": oc, "stride": stride, "pad": pad}

    add_conv("conv1", keys[0], 24, c, 9, 9, 3, 0)
    add_conv("conv2", keys[1], 48, 24, 5, 5, 2, 0)
    add_conv("conv3", keys[2], 64, 48, 3, 3, 1, 0)
    add_conv("img_pred1", keys[3], 64, 64, 3, 3, 1, 1)
    add_conv("img_pred2", keys[4], 64, 64, 3, 3, 1, 1)

    # fc1: flat_size -> 200
    wk, bk = jax.random.split(keys[5])
    bound = 1.0 / math.sqrt(flat_size)
    w1_ = jax.random.uniform(wk, (flat_size, 200), jnp.float32, -bound, bound)
    b1_ = jax.random.uniform(bk, (200,), jnp.float32, -bound, bound)
    Kp1 = _round_up(flat_size, 128)
    N1 = _round_up(200, 128)  # 256
    params["fc1"] = {
        "w": jnp.pad(w1_, ((0, Kp1 - flat_size), (0, N1 - 200))).astype(jnp.bfloat16),
        "b": jnp.pad(b1_, (0, N1 - 200)).reshape(1, N1),
    }

    # Fused output head: [q_out | val] : 200 -> (act_space + 1)
    qwk, qbk = jax.random.split(keys[6])
    vwk, vbk = jax.random.split(keys[7])
    bound = 1.0 / math.sqrt(200)
    wq = jax.random.uniform(qwk, (200, act_space), jnp.float32, -bound, bound)
    bq = jax.random.uniform(qbk, (act_space,), jnp.float32, -bound, bound)
    wv = jax.random.uniform(vwk, (200, 1), jnp.float32, -bound, bound)
    bv = jax.random.uniform(vbk, (1,), jnp.float32, -bound, bound)
    n_head = act_space + 1
    N2 = _round_up(n_head, 128)  # 128
    w2_ = jnp.concatenate([wq, wv], axis=1)
    b2_ = jnp.concatenate([bq, bv])
    params["head"] = {
        "w": jnp.pad(w2_, ((0, N1 - 200), (0, N2 - n_head))).astype(jnp.bfloat16),
        "b": jnp.pad(b2_, (0, N2 - n_head)).reshape(1, N2),
    }
    return params, meta


# ----------------------------------------------------------------------------
# Forward pass (mirrors Model.forward with batch_norm=False), fully jitted.
# ----------------------------------------------------------------------------
def make_forward(meta):
    def conv_relu(x_nhwc, params, name, out_dtype):
        m = meta[name]
        pad = ((m["pad"], m["pad"]), (m["pad"], m["pad"]))
        # Single XLA op for patch extraction; patches materialize in bf16
        # (half the HBM bytes), columns channel-major -> match weight layout.
        patches = lax.conv_general_dilated_patches(
            x_nhwc.astype(jnp.bfloat16), (m["kh"], m["kw"]),
            (m["stride"], m["stride"]), pad,
            dimension_numbers=("NHWC", "HWIO", "NHWC"))
        n, oh, ow, kdim = patches.shape
        y = pallas_matmul_bias_act(
            patches.reshape(n * oh * ow, kdim),
            params[name]["w"], params[name]["b"],
            relu=True, n_out=m["oc"], out_dtype=out_dtype)
        return y.reshape(n, oh, ow, m["oc"])

    @jax.jit
    def forward(params, x_nchw):
        n = x_nchw.shape[0]
        fx = jnp.transpose(x_nchw, (0, 2, 3, 1))             # NHWC internally
        # Intermediate activations in bf16 (consumed as bf16 patches anyway);
        # conv3 / img_pred2 stay f32 because they are returned tensors.
        fx = conv_relu(fx, params, "conv1", jnp.bfloat16)
        fx = conv_relu(fx, params, "conv2", jnp.bfloat16)
        fx = conv_relu(fx, params, "conv3", jnp.float32)

        # torch's .view(-1, flat_size) flattens NCHW -> permute exactly once.
        concept = jnp.transpose(fx, (0, 3, 1, 2)).reshape(n, meta["flat_size"])

        cp = conv_relu(fx, params, "img_pred1", jnp.bfloat16)
        cp = conv_relu(cp, params, "img_pred2", jnp.float32)
        conc_pred = jnp.transpose(cp, (0, 3, 1, 2)).reshape(n, meta["flat_size"])

        val, q = pallas_head(
            conc_pred,
            params["fc1"]["w"], params["fc1"]["b"],
            params["head"]["w"], params["head"]["b"],
            act_space=meta["act_space"])
        return val, q, concept, conc_pred

    return forward


if __name__ == "__main__":
    obs_space = (3, 60, 60)   # (C, H, W): 60 -> 18 -> 7 -> 5, flat_size = 1600
    act_space = 4
    batch = 2

    key = jax.random.PRNGKey(0)
    k_params, k_x = jax.random.split(key)
    params, meta = init_model(k_params, obs_space, act_space)
    forward = make_forward(meta)

    x = jax.random.normal(k_x, (batch,) + obs_space, dtype=jnp.float32)

    val, q, concept, conc_pred = forward(params, x)
    jax.block_until_ready((val, q, concept, conc_pred))

    flat_size = meta["flat_size"]
    assert val.shape == (batch, 1)
    assert q.shape == (batch, act_space)
    assert concept.shape == (batch, flat_size)
    assert conc_pred.shape == (batch, flat_size)
    assert bool(jnp.all(jnp.isfinite(val))) and bool(jnp.all(jnp.isfinite(q)))
    assert bool(jnp.all(jnp.isfinite(concept)))
    assert bool(jnp.all(jnp.isfinite(conc_pred)))
    print("KERNEL_OK")
</pallas_src>

<mosaic_0001>
module attributes {stable_mosaic.version = 11 : i64} {
  func.func @_matmul_bias_act_kernel(%arg0: i32, %arg1: memref<224x256xbf16, #tpu.memory_space<vmem>>, %arg2: memref<256x128xbf16, #tpu.memory_space<vmem>>, %arg3: memref<1x128xf32, #tpu.memory_space<vmem>>, %arg4: memref<224x128xbf16, #tpu.memory_space<vmem>>) attributes {dimension_semantics = [#tpu.dimension_semantics<parallel>], iteration_bounds = array<i64: 3>, scalar_prefetch = 0 : i64, scratch_operands = 0 : i64, tpu.core_type = #tpu.core_type<tc>, window_params = [{transform_indices = @transform_0, window_bounds = array<i64: 224, 256>}, {pipeline_mode = #tpu.pipeline_mode<synchronous>, transform_indices = @transform_1, window_bounds = array<i64: 256, 128>}, {pipeline_mode = #tpu.pipeline_mode<synchronous>, transform_indices = @transform_2, window_bounds = array<i64: 1, 128>}, {transform_indices = @transform_3, window_bounds = array<i64: 224, 128>}]} {
    %c0 = arith.constant 0 : index
    %c0_0 = arith.constant 0 : index
    %0 = vector.load %arg1[%c0, %c0_0] : memref<224x256xbf16, #tpu.memory_space<vmem>>, vector<224x256xbf16>
    %c0_1 = arith.constant 0 : index
    %c0_2 = arith.constant 0 : index
    %1 = vector.load %arg2[%c0_1, %c0_2] : memref<256x128xbf16, #tpu.memory_space<vmem>>, vector<256x128xbf16>
    %cst = arith.constant dense<0.000000e+00> : vector<224x128xf32>
    %2 = tpu.matmul %0, %1, %cst {dimension_numbers = #tpu.dot_dimension_numbers<[1], [0], [0], [1], [0, 0, 1, 1], [], []>} : vector<224x256xbf16>, vector<256x128xbf16>, vector<224x128xf32> -> vector<224x128xf32>
    %c0_3 = arith.constant 0 : index
    %c0_4 = arith.constant 0 : index
    %3 = vector.load %arg3[%c0_3, %c0_4] : memref<1x128xf32, #tpu.memory_space<vmem>>, vector<1x128xf32>
    %4 = vector.broadcast %3 : vector<1x128xf32> to vector<224x128xf32>
    %5 = arith.addf %2, %4 : vector<224x128xf32>
    %cst_5 = arith.constant 0.000000e+00 : f32
    %6 = vector.broadcast %cst_5 : f32 to vector<224x128xf32>
    %7 = arith.maximumf %5, %6 : vector<224x128xf32>
    %8 = arith.truncf %7 : vector<224x128xf32> to vector<224x128xbf16>
    %c0_6 = arith.constant 0 : index
    %c0_7 = arith.constant 0 : index
    %9 = vector.load %arg4[%c0_6, %c0_7] : memref<224x128xbf16, #tpu.memory_space<vmem>>, vector<224x128xbf16>
    tpu.vector_store %arg4[%c0_6, %c0_7], %8 {strides = array<i32>} : memref<224x128xbf16, #tpu.memory_space<vmem>>, vector<224x128xbf16>,
    return
  }
  func.func @transform_0(%arg0: i32) -> (i32, i32) {
    %c0_i32 = arith.constant 0 : i32
    %c0_i32_0 = arith.constant 0 : i32
    return %arg0, %c0_i32 : i32, i32
  }
  func.func @transform_1(%arg0: i32) -> (i32, i32) {
    %c0_i32 = arith.constant 0 : i32
    %c0_i32_0 = arith.constant 0 : i32
    %c0_i32_1 = arith.constant 0 : i32
    return %c0_i32, %c0_i32_0 : i32, i32
  }
  func.func @transform_2(%arg0: i32) -> (i32, i32) {
    %c0_i32 = arith.constant 0 : i32
    %c0_i32_0 = arith.constant 0 : i32
    %c0_i32_1 = arith.constant 0 : i32
    return %c0_i32, %c0_i32_0 : i32, i32
  }
  func.func @transform_3(%arg0: i32) -> (i32, i32) {
    %c0_i32 = arith.constant 0 : i32
    %c0_i32_0 = arith.constant 0 : i32
    return %arg0, %c0_i32 : i32, i32
  }
}

module attributes {stable_mosaic.version = 11 : i64} {
  func.func @_matmul_bias_act_kernel(%arg0: i32, %arg1: memref<112x640xbf16, #tpu.memory_space<vmem>>, %arg2: memref<640x128xbf16, #tpu.memory_space<vmem>>, %arg3: memref<1x128xf32, #tpu.memory_space<vmem>>, %arg4: memref<112x128xbf16, #tpu.memory_space<vmem>>) attributes {dimension_semantics = [#tpu.dimension_semantics<parallel>], iteration_bounds = array<i64: 1>, scalar_prefetch = 0 : i64, scratch_operands = 0 : i64, tpu.core_type = #tpu.core_type<tc>, window_params = [{transform_indices = @transform_0, window_bounds = array<i64: 112, 640>}, {pipeline_mode = #tpu.pipeline_mode<synchronous>, transform_indices = @transform_1, window_bounds = array<i64: 640, 128>}, {pipeline_mode = #tpu.pipeline_mode<synchronous>, transform_indices = @transform_2, window_bounds = array<i64: 1, 128>}, {transform_indices = @transform_3, window_bounds = array<i64: 112, 128>}]} {
    %c0 = arith.constant 0 : index
    %c0_0 = arith.constant 0 : index
    %0 = vector.load %arg1[%c0, %c0_0] : memref<112x640xbf16, #tpu.memory_space<vmem>>, vector<112x640xbf16>
    %c0_1 = arith.constant 0 : index
    %c0_2 = arith.constant 0 : index
    %1 = vector.load %arg2[%c0_1, %c0_2] : memref<640x128xbf16, #tpu.memory_space<vmem>>, vector<640x128xbf16>
    %cst = arith.constant dense<0.000000e+00> : vector<112x128xf32>
    %2 = tpu.matmul %0, %1, %cst {dimension_numbers = #tpu.dot_dimension_numbers<[1], [0], [0], [1], [0, 0, 1, 1], [], []>} : vector<112x640xbf16>, vector<640x128xbf16>, vector<112x128xf32> -> vector<112x128xf32>
    %c0_3 = arith.constant 0 : index
    %c0_4 = arith.constant 0 : index
    %3 = vector.load %arg3[%c0_3, %c0_4] : memref<1x128xf32, #tpu.memory_space<vmem>>, vector<1x128xf32>
    %4 = vector.broadcast %3 : vector<1x128xf32> to vector<112x128xf32>
    %5 = arith.addf %2, %4 : vector<112x128xf32>
    %cst_5 = arith.constant 0.000000e+00 : f32
    %6 = vector.broadcast %cst_5 : f32 to vector<112x128xf32>
    %7 = arith.maximumf %5, %6 : vector<112x128xf32>
    %8 = arith.truncf %7 : vector<112x128xf32> to vector<112x128xbf16>
    %c0_6 = arith.constant 0 : index
    %c0_7 = arith.constant 0 : index
    %9 = vector.load %arg4[%c0_6, %c0_7] : memref<112x128xbf16, #tpu.memory_space<vmem>>, vector<112x128xbf16>
    tpu.vector_store %arg4[%c0_6, %c0_7], %8 {strides = array<i32>} : memref<112x128xbf16, #tpu.memory_space<vmem>>, vector<112x128xbf16>,
    return
  }
  func.func @transform_0(%arg0: i32) -> (i32, i32) {
    %c0_i32 = arith.constant 0 : i32
    %c0_i32_0 = arith.constant 0 : i32
    return %arg0, %c0_i32 : i32, i32
  }
  func.func @transform_1(%arg0: i32) -> (i32, i32) {
    %c0_i32 = arith.constant 0 : i32
    %c0_i32_0 = arith.constant 0 : i32
    %c0_i32_1 = arith.constant 0 : i32
    return %c0_i32, %c0_i32_0 : i32, i32
  }
  func.func @transform_2(%arg0: i32) -> (i32, i32) {
    %c0_i32 = arith.constant 0 : i32
    %c0_i32_0 = arith.constant 0 : i32
    %c0_i32_1 = arith.constant 0 : i32
    return %c0_i32, %c0_i32_0 : i32, i32
  }
  func.func @transform_3(%arg0: i32) -> (i32, i32) {
    %c0_i32 = arith.constant 0 : i32
    %c0_i32_0 = arith.constant 0 : i32
    return %arg0, %c0_i32 : i32, i32
  }
}

module attributes {stable_mosaic.version = 11 : i64} {
  func.func @_matmul_bias_act_kernel(%arg0: i32, %arg1: memref<64x512xbf16, #tpu.memory_space<vmem>>, %arg2: memref<512x128xbf16, #tpu.memory_space<vmem>>, %arg3: memref<1x128xf32, #tpu.memory_space<vmem>>, %arg4: memref<64x128xf32, #tpu.memory_space<vmem>>) attributes {dimension_semantics = [#tpu.dimension_semantics<parallel>], iteration_bounds = array<i64: 1>, scalar_prefetch = 0 : i64, scratch_operands = 0 : i64, tpu.core_type = #tpu.core_type<tc>, window_params = [{transform_indices = @transform_0, window_bounds = array<i64: 64, 512>}, {pipeline_mode = #tpu.pipeline_mode<synchronous>, transform_indices = @transform_1, window_bounds = array<i64: 512, 128>}, {pipeline_mode = #tpu.pipeline_mode<synchronous>, transform_indices = @transform_2, window_bounds = array<i64: 1, 128>}, {transform_indices = @transform_3, window_bounds = array<i64: 64, 128>}]} {
    %c0 = arith.constant 0 : index
    %c0_0 = arith.constant 0 : index
    %0 = vector.load %arg1[%c0, %c0_0] : memref<64x512xbf16, #tpu.memory_space<vmem>>, vector<64x512xbf16>
    %c0_1 = arith.constant 0 : index
    %c0_2 = arith.constant 0 : index
    %1 = vector.load %arg2[%c0_1, %c0_2] : memref<512x128xbf16, #tpu.memory_space<vmem>>, vector<512x128xbf16>
    %cst = arith.constant dense<0.000000e+00> : vector<64x128xf32>
    %2 = tpu.matmul %0, %1, %cst {dimension_numbers = #tpu.dot_dimension_numbers<[1], [0], [0], [1], [0, 0, 1, 1], [], []>} : vector<64x512xbf16>, vector<512x128xbf16>, vector<64x128xf32> -> vector<64x128xf32>
    %c0_3 = arith.constant 0 : index
    %c0_4 = arith.constant 0 : index
    %3 = vector.load %arg3[%c0_3, %c0_4] : memref<1x128xf32, #tpu.memory_space<vmem>>, vector<1x128xf32>
    %4 = vector.broadcast %3 : vector<1x128xf32> to vector<64x128xf32>
    %5 = arith.addf %2, %4 : vector<64x128xf32>
    %cst_5 = arith.constant 0.000000e+00 : f32
    %6 = vector.broadcast %cst_5 : f32 to vector<64x128xf32>
    %7 = arith.maximumf %5, %6 : vector<64x128xf32>
    %c0_6 = arith.constant 0 : index
    %c0_7 = arith.constant 0 : index
    %8 = vector.load %arg4[%c0_6, %c0_7] : memref<64x128xf32, #tpu.memory_space<vmem>>, vector<64x128xf32>
    tpu.vector_store %arg4[%c0_6, %c0_7], %7 {strides = array<i32>} : memref<64x128xf32, #tpu.memory_space<vmem>>, vector<64x128xf32>,
    return
  }
  func.func @transform_0(%arg0: i32) -> (i32, i32) {
    %c0_i32 = arith.constant 0 : i32
    %c0_i32_0 = arith.constant 0 : i32
    return %arg0, %c0_i32 : i32, i32
  }
  func.func @transform_1(%arg0: i32) -> (i32, i32) {
    %c0_i32 = arith.constant 0 : i32
    %c0_i32_0 = arith.constant 0 : i32
    %c0_i32_1 = arith.constant 0 : i32
    return %c0_i32, %c0_i32_0 : i32, i32
  }
  func.func @transform_2(%arg0: i32) -> (i32, i32) {
    %c0_i32 = arith.constant 0 : i32
    %c0_i32_0 = arith.constant 0 : i32
    %c0_i32_1 = arith.constant 0 : i32
    return %c0_i32, %c0_i32_0 : i32, i32
  }
  func.func @transform_3(%arg0: i32) -> (i32, i32) {
    %c0_i32 = arith.constant 0 : i32
    %c0_i32_0 = arith.constant 0 : i32
    return %arg0, %c0_i32 : i32, i32
  }
}

module attributes {stable_mosaic.version = 11 : i64} {
  func.func @_matmul_bias_act_kernel(%arg0: i32, %arg1: memref<64x640xbf16, #tpu.memory_space<vmem>>, %arg2: memref<640x128xbf16, #tpu.memory_space<vmem>>, %arg3: memref<1x128xf32, #tpu.memory_space<vmem>>, %arg4: memref<64x128xbf16, #tpu.memory_space<vmem>>) attributes {dimension_semantics = [#tpu.dimension_semantics<parallel>], iteration_bounds = array<i64: 1>, scalar_prefetch = 0 : i64, scratch_operands = 0 : i64, tpu.core_type = #tpu.core_type<tc>, window_params = [{transform_indices = @transform_0, window_bounds = array<i64: 64, 640>}, {pipeline_mode = #tpu.pipeline_mode<synchronous>, transform_indices = @transform_1, window_bounds = array<i64: 640, 128>}, {pipeline_mode = #tpu.pipeline_mode<synchronous>, transform_indices = @transform_2, window_bounds = array<i64: 1, 128>}, {transform_indices = @transform_3, window_bounds = array<i64: 64, 128>}]} {
    %c0 = arith.constant 0 : index
    %c0_0 = arith.constant 0 : index
    %0 = vector.load %arg1[%c0, %c0_0] : memref<64x640xbf16, #tpu.memory_space<vmem>>, vector<64x640xbf16>
    %c0_1 = arith.constant 0 : index
    %c0_2 = arith.constant 0 : index
    %1 = vector.load %arg2[%c0_1, %c0_2] : memref<640x128xbf16, #tpu.memory_space<vmem>>, vector<640x128xbf16>
    %cst = arith.constant dense<0.000000e+00> : vector<64x128xf32>
    %2 = tpu.matmul %0, %1, %cst {dimension_numbers = #tpu.dot_dimension_numbers<[1], [0], [0], [1], [0, 0, 1, 1], [], []>} : vector<64x640xbf16>, vector<640x128xbf16>, vector<64x128xf32> -> vector<64x128xf32>
    %c0_3 = arith.constant 0 : index
    %c0_4 = arith.constant 0 : index
    %3 = vector.load %arg3[%c0_3, %c0_4] : memref<1x128xf32, #tpu.memory_space<vmem>>, vector<1x128xf32>
    %4 = vector.broadcast %3 : vector<1x128xf32> to vector<64x128xf32>
    %5 = arith.addf %2, %4 : vector<64x128xf32>
    %cst_5 = arith.constant 0.000000e+00 : f32
    %6 = vector.broadcast %cst_5 : f32 to vector<64x128xf32>
    %7 = arith.maximumf %5, %6 : vector<64x128xf32>
    %8 = arith.truncf %7 : vector<64x128xf32> to vector<64x128xbf16>
    %c0_6 = arith.constant 0 : index
    %c0_7 = arith.constant 0 : index
    %9 = vector.load %arg4[%c0_6, %c0_7] : memref<64x128xbf16, #tpu.memory_space<vmem>>, vector<64x128xbf16>
    tpu.vector_store %arg4[%c0_6, %c0_7], %8 {strides = array<i32>} : memref<64x128xbf16, #tpu.memory_space<vmem>>, vector<64x128xbf16>,
    return
  }
  func.func @transform_0(%arg0: i32) -> (i32, i32) {
    %c0_i32 = arith.constant 0 : i32
    %c0_i32_0 = arith.constant 0 : i32
    return %arg0, %c0_i32 : i32, i32
  }
  func.func @transform_1(%arg0: i32) -> (i32, i32) {
    %c0_i32 = arith.constant 0 : i32
    %c0_i32_0 = arith.constant 0 : i32
    %c0_i32_1 = arith.constant 0 : i32
    return %c0_i32, %c0_i32_0 : i32, i32
  }
  func.func @transform_2(%arg0: i32) -> (i32, i32) {
    %c0_i32 = arith.constant 0 : i32
    %c0_i32_0 = arith.constant 0 : i32
    %c0_i32_1 = arith.constant 0 : i32
    return %c0_i32, %c0_i32_0 : i32, i32
  }
  func.func @transform_3(%arg0: i32) -> (i32, i32) {
    %c0_i32 = arith.constant 0 : i32
    %c0_i32_0 = arith.constant 0 : i32
    return %arg0, %c0_i32 : i32, i32
  }
}

module attributes {stable_mosaic.version = 11 : i64} {
  func.func @_matmul_bias_act_kernel(%arg0: i32, %arg1: memref<64x640xbf16, #tpu.memory_space<vmem>>, %arg2: memref<640x128xbf16, #tpu.memory_space<vmem>>, %arg3: memref<1x128xf32, #tpu.memory_space<vmem>>, %arg4: memref<64x128xf32, #tpu.memory_space<vmem>>) attributes {dimension_semantics = [#tpu.dimension_semantics<parallel>], iteration_bounds = array<i64: 1>, scalar_prefetch = 0 : i64, scratch_operands = 0 : i64, tpu.core_type = #tpu.core_type<tc>, window_params = [{transform_indices = @transform_0, window_bounds = array<i64: 64, 640>}, {pipeline_mode = #tpu.pipeline_mode<synchronous>, transform_indices = @transform_1, window_bounds = array<i64: 640, 128>}, {pipeline_mode = #tpu.pipeline_mode<synchronous>, transform_indices = @transform_2, window_bounds = array<i64: 1, 128>}, {transform_indices = @transform_3, window_bounds = array<i64: 64, 128>}]} {
    %c0 = arith.constant 0 : index
    %c0_0 = arith.constant 0 : index
    %0 = vector.load %arg1[%c0, %c0_0] : memref<64x640xbf16, #tpu.memory_space<vmem>>, vector<64x640xbf16>
    %c0_1 = arith.constant 0 : index
    %c0_2 = arith.constant 0 : index
    %1 = vector.load %arg2[%c0_1, %c0_2] : memref<640x128xbf16, #tpu.memory_space<vmem>>, vector<640x128xbf16>
    %cst = arith.constant dense<0.000000e+00> : vector<64x128xf32>
    %2 = tpu.matmul %0, %1, %cst {dimension_numbers = #tpu.dot_dimension_numbers<[1], [0], [0], [1], [0, 0, 1, 1], [], []>} : vector<64x640xbf16>, vector<640x128xbf16>, vector<64x128xf32> -> vector<64x128xf32>
    %c0_3 = arith.constant 0 : index
    %c0_4 = arith.constant 0 : index
    %3 = vector.load %arg3[%c0_3, %c0_4] : memref<1x128xf32, #tpu.memory_space<vmem>>, vector<1x128xf32>
    %4 = vector.broadcast %3 : vector<1x128xf32> to vector<64x128xf32>
    %5 = arith.addf %2, %4 : vector<64x128xf32>
    %cst_5 = arith.constant 0.000000e+00 : f32
    %6 = vector.broadcast %cst_5 : f32 to vector<64x128xf32>
    %7 = arith.maximumf %5, %6 : vector<64x128xf32>
    %c0_6 = arith.constant 0 : index
    %c0_7 = arith.constant 0 : index
    %8 = vector.load %arg4[%c0_6, %c0_7] : memref<64x128xf32, #tpu.memory_space<vmem>>, vector<64x128xf32>
    tpu.vector_store %arg4[%c0_6, %c0_7], %7 {strides = array<i32>} : memref<64x128xf32, #tpu.memory_space<vmem>>, vector<64x128xf32>,
    return
  }
  func.func @transform_0(%arg0: i32) -> (i32, i32) {
    %c0_i32 = arith.constant 0 : i32
    %c0_i32_0 = arith.constant 0 : i32
    return %arg0, %c0_i32 : i32, i32
  }
  func.func @transform_1(%arg0: i32) -> (i32, i32) {
    %c0_i32 = arith.constant 0 : i32
    %c0_i32_0 = arith.constant 0 : i32
    %c0_i32_1 = arith.constant 0 : i32
    return %c0_i32, %c0_i32_0 : i32, i32
  }
  func.func @transform_2(%arg0: i32) -> (i32, i32) {
    %c0_i32 = arith.constant 0 : i32
    %c0_i32_0 = arith.constant 0 : i32
    %c0_i32_1 = arith.constant 0 : i32
    return %c0_i32, %c0_i32_0 : i32, i32
  }
  func.func @transform_3(%arg0: i32) -> (i32, i32) {
    %c0_i32 = arith.constant 0 : i32
    %c0_i32_0 = arith.constant 0 : i32
    return %arg0, %c0_i32 : i32, i32
  }
}

module attributes {stable_mosaic.version = 11 : i64} {
  func.func @_head_kernel(%arg0: memref<8x1664xbf16, #tpu.memory_space<vmem>>, %arg1: memref<1664x256xbf16, #tpu.memory_space<vmem>>, %arg2: memref<1x256xf32, #tpu.memory_space<vmem>>, %arg3: memref<256x128xbf16, #tpu.memory_space<vmem>>, %arg4: memref<1x128xf32, #tpu.memory_space<vmem>>, %arg5: memref<8x128xf32, #tpu.memory_space<vmem>>) attributes {dimension_semantics = [], scalar_prefetch = 0 : i64, scratch_operands = 0 : i64, tpu.core_type = #tpu.core_type<tc>} {
    %c0 = arith.constant 0 : index
    %c0_0 = arith.constant 0 : index
    %0 = vector.load %arg0[%c0, %c0_0] : memref<8x1664xbf16, #tpu.memory_space<vmem>>, vector<8x1664xbf16>
    %c0_1 = arith.constant 0 : index
    %c0_2 = arith.constant 0 : index
    %1 = vector.load %arg1[%c0_1, %c0_2] : memref<1664x256xbf16, #tpu.memory_space<vmem>>, vector<1664x256xbf16>
    %cst = arith.constant dense<0.000000e+00> : vector<8x256xf32>
    %2 = tpu.matmul %0, %1, %cst {dimension_numbers = #tpu.dot_dimension_numbers<[1], [0], [0], [1], [0, 0, 1, 1], [], []>} : vector<8x1664xbf16>, vector<1664x256xbf16>, vector<8x256xf32> -> vector<8x256xf32>
    %c0_3 = arith.constant 0 : index
    %c0_4 = arith.constant 0 : index
    %3 = vector.load %arg2[%c0_3, %c0_4] : memref<1x256xf32, #tpu.memory_space<vmem>>, vector<1x256xf32>
    %4 = vector.broadcast %3 : vector<1x256xf32> to vector<8x256xf32>
    %5 = arith.addf %2, %4 : vector<8x256xf32>
    %cst_5 = arith.constant 0.000000e+00 : f32
    %6 = vector.broadcast %cst_5 : f32 to vector<8x256xf32>
    %7 = arith.maximumf %5, %6 : vector<8x256xf32>
    %8 = arith.truncf %7 : vector<8x256xf32> to vector<8x256xbf16>
    %c0_6 = arith.constant 0 : index
    %c0_7 = arith.constant 0 : index
    %9 = vector.load %arg3[%c0_6, %c0_7] : memref<256x128xbf16, #tpu.memory_space<vmem>>, vector<256x128xbf16>
    %cst_8 = arith.constant dense<0.000000e+00> : vector<8x128xf32>
    %10 = tpu.matmul %8, %9, %cst_8 {dimension_numbers = #tpu.dot_dimension_numbers<[1], [0], [0], [1], [0, 0, 1, 1], [], []>} : vector<8x256xbf16>, vector<256x128xbf16>, vector<8x128xf32> -> vector<8x128xf32>
    %c0_9 = arith.constant 0 : index
    %c0_10 = arith.constant 0 : index
    %11 = vector.load %arg4[%c0_9, %c0_10] : memref<1x128xf32, #tpu.memory_space<vmem>>, vector<1x128xf32>
    %12 = vector.broadcast %11 : vector<1x128xf32> to vector<8x128xf32>
    %13 = arith.addf %10, %12 : vector<8x128xf32>
    %c0_11 = arith.constant 0 : index
    %c0_12 = arith.constant 0 : index
    %14 = vector.load %arg5[%c0_11, %c0_12] : memref<8x128xf32, #tpu.memory_space<vmem>>, vector<8x128xf32>
    tpu.vector_store %arg5[%c0_11, %c0_12], %13 {strides = array<i32>} : memref<8x128xf32, #tpu.memory_space<vmem>>, vector<8x128xf32>,
    return
  }
}

</mosaic_0001>

<llo_original>
// kernel: forward.6
$region0: #{forward.6}
  #allocation0 [shape = 'u32[]', space=smem, size = 0x4, offset = 0x4, fixed_abs, tag = 'smem constant byte address 0x4 - core index']
  #allocation1 [shape = 'u32[144,128]{1,0:T(1,128)}', space=vmem, size = 0x12000, scoped, tag = 'internal scratch']
  %s0 = inlined_call_operand.vmem [shape: bf16[672,256], index: 0, kind: input, shape index: {}]
  %s1 = inlined_call_operand.vmem [shape: bf16[256,128], index: 1, kind: input, shape index: {}]
  %s2 = inlined_call_operand.vmem [shape: f32[1,128], index: 2, kind: input, shape index: {}]
  %s3 = inlined_call_operand.vmem [shape: bf16[672,128], index: 3, kind: output, shape index: {}]
  %s4 = sld [smem:[#allocation0]]
  $region45: #{forward.6} parent=0
    _
  %s6 = ssub.s32 1, %s4
  %s7 = scalar_select 0, %s6, %s4
  loop: start=0, step=1, limit=5
  $region2: #{forward.6} parent=0 // loop_pre_header
    _
  $region3: #{forward.6} parent=0 // loop_header
    %s9 = sphi 0, %s13
    %p10 = scmp.ge.s32.totalorder %s9, 5
    %s19 = sphi 0, %s21
    %s22 = sphi 0, %s19
    %s23 = sphi 0, %s22
    %s39 = sphi 0, %s23
    %s43 = sphi 0, %s43
    %s45 = sphi 0, %s43
    %s46 = sphi 0, %s45
    %s60 = sphi 0, %s46
    %s64 = sphi 0, %s64
    %s66 = sphi 0, %s64
    %s67 = sphi 0, %s66
    %s81 = sphi 0, %s67
    %s87 = sphi 0, %s89
    %s90 = sphi 0, %s87
    %s91 = sphi 0, %s90
    %s107 = sphi 0, %s91
  $region4: #{forward.6} parent=0 // loop_header_branch
    %12 = sbr.rel (%p10) target = $region8
  $region5: #{forward.6} parent=0 // loop_body
    %s14 = ssub.s32 %s9, 1
    %s15 = ssub.s32 %s9, 2
    %s16 = sadd.s32 %s9, 1
    %s17 = ssub.s32 %s9, %s16
    %p18 = scmp.eq.s32.totalorder %s17, 0
    %s20 = sadd.s32 %s19, 1
    %s21 = scalar_select %p18, %s19, %s20
    %p24 = pneg %p18
    %p25 = scmp.eq.s32.totalorder %s9, 2
    %p26 = por %p24, %p25
    %p27 = scmp.ne.s32.totalorder %s19, %s22
    %p28 = scmp.eq.s32.totalorder %s9, 0
    %p29 = por %p27, %p28
    %p30 = scmp.ne.s32.totalorder %s19, %s22
    %p31 = scmp.eq.s32.totalorder %s14, 2
    %p32 = por %p30, %p31
    %p33 = scmp.ne.s32.totalorder %s22, %s23
    %p34 = scmp.eq.s32.totalorder %s14, 0
    %p35 = por %p33, %p34
    %p36 = scmp.ne.s32.totalorder %s22, %s23
    %p37 = scmp.eq.s32.totalorder %s15, 2
    %p38 = por %p36, %p37
    %p40 = scmp.ne.s32.totalorder %s23, %s39
    %p41 = scmp.eq.s32.totalorder %s15, 0
    %p42 = por %p40, %p41
    %s44 = sadd.s32 %s43, 1
    %p47 = scmp.eq.s32.totalorder %s9, 2
    %p48 = scmp.ne.s32.totalorder %s43, %s45
    %p49 = scmp.eq.s32.totalorder %s9, 0
    %p50 = por %p48, %p49
    %p51 = scmp.ne.s32.totalorder %s43, %s45
    %p52 = scmp.eq.s32.totalorder %s14, 2
    %p53 = por %p51, %p52
    %p54 = scmp.ne.s32.totalorder %s45, %s46
    %p55 = scmp.eq.s32.totalorder %s14, 0
    %p56 = por %p54, %p55
    %p57 = scmp.ne.s32.totalorder %s45, %s46
    %p58 = scmp.eq.s32.totalorder %s15, 2
    %p59 = por %p57, %p58
    %p61 = scmp.ne.s32.totalorder %s46, %s60
    %p62 = scmp.eq.s32.totalorder %s15, 0
    %p63 = por %p61, %p62
    %s65 = sadd.s32 %s64, 1
    %p68 = scmp.eq.s32.totalorder %s9, 2
    %p69 = scmp.ne.s32.totalorder %s64, %s66
    %p70 = scmp.eq.s32.totalorder %s9, 0
    %p71 = por %p69, %p70
    %p72 = scmp.ne.s32.totalorder %s64, %s66
    %p73 = scmp.eq.s32.totalorder %s14, 2
    %p74 = por %p72, %p73
    %p75 = scmp.ne.s32.totalorder %s66, %s67
    %p76 = scmp.eq.s32.totalorder %s14, 0
    %p77 = por %p75, %p76
    %p78 = scmp.ne.s32.totalorder %s66, %s67
    %p79 = scmp.eq.s32.totalorder %s15, 2
    %p80 = por %p78, %p79
    %p82 = scmp.ne.s32.totalorder %s67, %s81
    %p83 = scmp.eq.s32.totalorder %s15, 0
    %p84 = por %p82, %p83
    %s85 = ssub.s32 %s9, %s16
    %p86 = scmp.eq.s32.totalorder %s85, 0
    %s88 = sadd.s32 %s87, 1
    %s89 = scalar_select %p86, %s87, %s88
    %p92 = pneg %p86
    %p93 = scmp.eq.s32.totalorder %s9, 2
    %p94 = por %p92, %p93
    %p95 = scmp.ne.s32.totalorder %s87, %s90
    %p96 = scmp.eq.s32.totalorder %s9, 0
    %p97 = por %p95, %p96
    %p98 = scmp.ne.s32.totalorder %s87, %s90
    %p99 = scmp.eq.s32.totalorder %s14, 2
    %p100 = por %p98, %p99
    %p101 = scmp.ne.s32.totalorder %s90, %s91
    %p102 = scmp.eq.s32.totalorder %s14, 0
    %p103 = por %p101, %p102
    %p104 = scmp.ne.s32.totalorder %s90, %s91
    %p105 = scmp.eq.s32.totalorder %s15, 2
    %p106 = por %p104, %p105
    %p108 = scmp.ne.s32.totalorder %s91, %s107
    %p109 = scmp.eq.s32.totalorder %s15, 0
    %p110 = por %p108, %p109
    %p111 = scmp.le.s32.totalorder 1, %s9
    %p112 = scmp.lt.s32.totalorder %s9, 4
    %p113 = pnand %p111, %p112
    %p114 = pneg %p113
    // Predicated region
    $region9: #{forward.6} parent=5 // pred_check
      _
    $region10: #{forward.6} parent=5 // pred_check_branch
      %116 = sbr.rel (%p113) target = $region12
    $region11: #{forward.6} parent=5 // pred_region
      %s117 = ssub.s32 %s9, 1
      // Predicated region
      $region13: #{forward.6} parent=11 // pred_check
        %p118 = pneg %p56
      $region14: #{forward.6} parent=11 // pred_check_branch
        %120 = sbr.rel (%p118) target = $region16
      $region15: #{forward.6} parent=11 // pred_region
        _
      $region16: #{forward.6} parent=11 // pred_fallthru
        _
      // Predicated region
      $region17: #{forward.6} parent=11 // pred_check
        %p121 = pneg %p77
      $region18: #{forward.6} parent=11 // pred_check_branch
        %123 = sbr.rel (%p121) target = $region20
      $region19: #{forward.6} parent=11 // pred_region
        _
      $region20: #{forward.6} parent=11 // pred_fallthru
        _
    $region12: #{forward.6} parent=5 // pred_fallthru
      _
    %p124 = scmp.lt.s32.totalorder %s9, 3
    // Predicated region
    $region21: #{forward.6} parent=5 // pred_check
      %p125 = pneg %p124
    $region22: #{forward.6} parent=5 // pred_check_branch
      %127 = sbr.rel (%p125) target = $region24
    $region23: #{forward.6} parent=5 // pred_region
      // Predicated region
      $region25: #{forward.6} parent=23 // pred_check
        %p128 = pneg %p29
      $region26: #{forward.6} parent=23 // pred_check_branch
        %130 = sbr.rel (%p128) target = $region28
      $region27: #{forward.6} parent=23 // pred_region
        %s131 = smul.u32 28, %s9
        %p132 = scmp.lt.s32.totalorder %s131, 83
        %s133 = scalar_select %p132, %s131, 83
        %s134 = smul.addr %s133, 2
        %s135 = smul.addr %s134, 4
        %s136 = scalar_lea.vmem %s0, %s135
        %s137 = smul.u32 28, %s9
      $region28: #{forward.6} parent=23 // pred_fallthru
        _
    $region24: #{forward.6} parent=5 // pred_fallthru
      _
    %p138 = scmp.le.s32.totalorder 1, %s9
    %p139 = scmp.lt.s32.totalorder %s9, 4
    %p140 = pnand %p138, %p139
    %p141 = pneg %p140
    // Predicated region
    $region29: #{forward.6} parent=5 // pred_check
      _
    $region30: #{forward.6} parent=5 // pred_check_branch
      %143 = sbr.rel (%p140) target = $region32
    $region31: #{forward.6} parent=5 // pred_region
      %s144 = ssub.s32 %s9, 1
      %s145 = smul.u32 28, %s14
      %p146 = scmp.lt.s32.totalorder %s145, 83
      %s147 = scalar_select %p146, %s145, 83
      %s148 = smul.addr %s147, 2
      %s149 = smul.addr %s148, 4
      %s150 = scalar_lea.vmem %s0, %s149
      %p151 = pneg %p35
      %p152 = pneg %p32
      %p153 = pneg %p56
      %p154 = pneg %p53
      %p155 = pneg %p77
      %p156 = pneg %p74
      %p157 = pneg %p103
      %p158 = pneg %p100
      %s159 = smul.u32 28, %s14
      %p160 = scmp.lt.s32.totalorder %s159, 83
      %s161 = scalar_select %p160, %s159, 83
      %s162 = smul.addr %s161, 4
      %s163 = scalar_lea.vmem %s3, %s162
      %s164 = smul.u32 28, %s14
      %p165 = scmp.lt.s32.totalorder %s164, 83
      %s166 = scalar_select %p165, %s164, 83
      %s167 = smul.addr %s166, 2
      %s168 = smul.addr %s167, 4
      %s169 = scalar_lea.vmem %s0, %s168
      %s170 = smul.u32 28, %s14
      %s171 = smul.u32 28, %s14
      %p172 = scmp.lt.s32.totalorder %s171, 83
      %s173 = scalar_select %p172, %s171, 83
      %s174 = smul.addr %s173, 4
      %s175 = scalar_lea.vmem %s3, %s174
      %s176 = smul.u32 28, %s14
      %v178 = vld [vmem:[%s169] sm:$0xff]
      %v179 = vld [vmem:[%s169 + $0x8] sm:$0xff]
      %v180 = vld [vmem:[%s169 + $0x10] sm:$0xff]
      %v181 = vld [vmem:[%s169 + $0x18] sm:$0xff]
      %v182 = vld [vmem:[%s169 + $0x20] sm:$0xff]
      %v183 = vld [vmem:[%s169 + $0x28] sm:$0xff]
      %v184 = vld [vmem:[%s169 + $0x30] sm:$0xff]
      %v185 = vld [vmem:[%s169 + $0x38] sm:$0xff]
      %v186 = vld [vmem:[%s169 + $0x40] sm:$0xff]
      %v187 = vld [vmem:[%s169 + $0x48] sm:$0xff]
      %v188 = vld [vmem:[%s169 + $0x50] sm:$0xff]
      %v189 = vld [vmem:[%s169 + $0x58] sm:$0xff]
      %v190 = vld [vmem:[%s169 + $0x60] sm:$0xff]
      %v191 = vld [vmem:[%s169 + $0x68] sm:$0xff]
      %v192 = vld [vmem:[%s169 + $0x70] sm:$0xff]
      %v193 = vld [vmem:[%s169 + $0x78] sm:$0xff]
      %v194 = vld [vmem:[%s169 + $0x80] sm:$0xff]
      %v195 = vld [vmem:[%s169 + $0x88] sm:$0xff]
      %v196 = vld [vmem:[%s169 + $0x90] sm:$0xff]
      %v197 = vld [vmem:[%s169 + $0x98] sm:$0xff]
      %v198 = vld [vmem:[%s169 + $0xa0] sm:$0xff]
      %v199 = vld [vmem:[%s169 + $0xa8] sm:$0xff]
      %v200 = vld [vmem:[%s169 + $0xb0] sm:$0xff]
      %v201 = vld [vmem:[%s169 + $0xb8] sm:$0xff]
      %v202 = vld [vmem:[%s169 + $0xc0] sm:$0xff]
      %v203 = vld [vmem:[%s169 + $0xc8] sm:$0xff]
      %v204 = vld [vmem:[%s169 + $0xd0] sm:$0xff]
      %v205 = vld [vmem:[%s169 + $0xd8] sm:$0xff]
      %v206 = vld [vmem:[%s1] sm:$0xf]
      %v207 = vld [vmem:[%s1 + $0x4] sm:$0xf]
      %v208 = vld [vmem:[%s1 + $0x8] sm:$0xf]
      %v209 = vld [vmem:[%s1 + $0xc] sm:$0xf]
      %v210 = vld [vmem:[%s1 + $0x10] sm:$0xf]
      %v211 = vld [vmem:[%s1 + $0x14] sm:$0xf]
      %v212 = vld [vmem:[%s1 + $0x18] sm:$0xf]
      %v213 = vld [vmem:[%s1 + $0x1c] sm:$0xf]
      %v214 = vld [vmem:[%s1 + $0x20] sm:$0xf]
      %v215 = vld [vmem:[%s1 + $0x24] sm:$0xf]
      %v216 = vld [vmem:[%s1 + $0x28] sm:$0xf]
      %v217 = vld [vmem:[%s1 + $0x2c] sm:$0xf]
      %v218 = vld [vmem:[%s1 + $0x30] sm:$0xf]
      %v219 = vld [vmem:[%s1 + $0x34] sm:$0xf]
      %v220 = vld [vmem:[%s1 + $0x38] sm:$0xf]
      %v221 = vld [vmem:[%s1 + $0x3c] sm:$0xf]
      %v222 = vld [vmem:[%s1 + $0x40] sm:$0xf]
      %v223 = vld [vmem:[%s1 + $0x44] sm:$0xf]
      %v224 = vld [vmem:[%s1 + $0x48] sm:$0xf]
      %v225 = vld [vmem:[%s1 + $0x4c] sm:$0xf]
      %v226 = vld [vmem:[%s1 + $0x50] sm:$0xf]
      %v227 = vld [vmem:[%s1 + $0x54] sm:$0xf]
      %v228 = vld [vmem:[%s1 + $0x58] sm:$0xf]
      %v229 = vld [vmem:[%s1 + $0x5c] sm:$0xf]
      %v230 = vld [vmem:[%s1 + $0x60] sm:$0xf]
      %v231 = vld [vmem:[%s1 + $0x64] sm:$0xf]
      %v232 = vld [vmem:[%s1 + $0x68] sm:$0xf]
      %v233 = vld [vmem:[%s1 + $0x6c] sm:$0xf]
      %v234 = vld [vmem:[%s1 + $0x70] sm:$0xf]
      %v235 = vld [vmem:[%s1 + $0x74] sm:$0xf]
      %v236 = vld [vmem:[%s1 + $0x78] sm:$0xf]
      %v237 = vld [vmem:[%s1 + $0x7c] sm:$0xf]
      %v238 = vld [vmem:[%s2] sm:$0x1]
      %v240 = vlaneseq
      %v241 = vshrl.u32 %v240, 7
      %v242 = vsub.s32 0, %v241
      %v243 = vrot.slane %v238, %v242
      %v273 = vunpack.c.l.b16 %v178
      %v274 = vunpack.c.h.b16 %v178
      %v275 = vunpack.c.l.b16 %v179
      %v276 = vunpack.c.h.b16 %v179
      %v277 = vunpack.c.l.b16 %v180
      %v278 = vunpack.c.h.b16 %v180
      %v279 = vunpack.c.l.b16 %v181
      %v280 = vunpack.c.h.b16 %v181
      %v281 = vunpack.c.l.b16 %v182
      %v282 = vunpack.c.h.b16 %v182
      %v283 = vunpack.c.l.b16 %v183
      %v284 = vunpack.c.h.b16 %v183
      %v285 = vunpack.c.l.b16 %v184
      %v286 = vunpack.c.h.b16 %v184
      %v287 = vunpack.c.l.b16 %v185
      %v288 = vunpack.c.h.b16 %v185
      %v289 = vunpack.c.l.b16 %v186
      %v290 = vunpack.c.h.b16 %v186
      %v291 = vunpack.c.l.b16 %v187
      %v292 = vunpack.c.h.b16 %v187
      %v293 = vunpack.c.l.b16 %v188
      %v294 = vunpack.c.h.b16 %v188
      %v295 = vunpack.c.l.b16 %v189
      %v296 = vunpack.c.h.b16 %v189
      %v297 = vunpack.c.l.b16 %v190
      %v298 = vunpack.c.h.b16 %v190
      %v299 = vunpack.c.l.b16 %v191
      %v300 = vunpack.c.h.b16 %v191
      %v301 = vunpack.c.l.b16 %v192
      %v302 = vunpack.c.h.b16 %v192
      %v303 = vunpack.c.l.b16 %v193
      %v304 = vunpack.c.h.b16 %v193
      %v305 = vunpack.c.l.b16 %v194
      %v306 = vunpack.c.h.b16 %v194
      %v307 = vunpack.c.l.b16 %v195
      %v308 = vunpack.c.h.b16 %v195
      %v309 = vunpack.c.l.b16 %v196
      %v310 = vunpack.c.h.b16 %v196
      %v311 = vunpack.c.l.b16 %v197
      %v312 = vunpack.c.h.b16 %v197
      %v313 = vunpack.c.l.b16 %v198
      %v314 = vunpack.c.h.b16 %v198
      %v315 = vunpack.c.l.b16 %v199
      %v316 = vunpack.c.h.b16 %v199
      %v317 = vunpack.c.l.b16 %v200
      %v318 = vunpack.c.h.b16 %v200
      %v319 = vunpack.c.l.b16 %v201
      %v320 = vunpack.c.h.b16 %v201
      %v321 = vunpack.c.l.b16 %v202
      %v322 = vunpack.c.h.b16 %v202
      %v323 = vunpack.c.l.b16 %v203
      %v324 = vunpack.c.h.b16 %v203
      %v325 = vunpack.c.l.b16 %v204
      %v326 = vunpack.c.h.b16 %v204
      %v327 = vunpack.c.l.b16 %v205
      %v328 = vunpack.c.h.b16 %v205
      %v329 = vpack.c.b16 %v275, %v273
      %v330 = vpack.c.b16 %v276, %v274
      %v331 = vpack.c.b16 %v279, %v277
      %v332 = vpack.c.b16 %v280, %v278
      %v333 = vpack.c.b16 %v283, %v281
      %v334 = vpack.c.b16 %v284, %v282
      %v335 = vpack.c.b16 %v287, %v285
      %v336 = vpack.c.b16 %v288, %v286
      %v337 = vpack.c.b16 %v291, %v289
      %v338 = vpack.c.b16 %v292, %v290
      %v339 = vpack.c.b16 %v295, %v293
      %v340 = vpack.c.b16 %v296, %v294
      %v341 = vpack.c.b16 %v299, %v297
      %v342 = vpack.c.b16 %v300, %v298
      %v343 = vpack.c.b16 %v303, %v301
      %v344 = vpack.c.b16 %v304, %v302
      %v345 = vpack.c.b16 %v307, %v305
      %v346 = vpack.c.b16 %v308, %v306
      %v347 = vpack.c.b16 %v311, %v309
      %v348 = vpack.c.b16 %v312, %v310
      %v349 = vpack.c.b16 %v315, %v313
      %v350 = vpack.c.b16 %v316, %v314
      %v351 = vpack.c.b16 %v319, %v317
      %v352 = vpack.c.b16 %v320, %v318
      %v353 = vpack.c.b16 %v323, %v321
      %v354 = vpack.c.b16 %v324, %v322
      %v355 = vpack.c.b16 %v327, %v325
      %v356 = vpack.c.b16 %v328, %v326
      %v417 = vunpack.c.l.b16 %v206
      %v418 = vunpack.c.l.b16 %v207
      %v419 = vunpack.c.l.b16 %v208
      %v420 = vunpack.c.l.b16 %v209
      %v421 = vunpack.c.l.b16 %v210
      %v422 = vunpack.c.l.b16 %v211
      %v423 = vunpack.c.l.b16 %v212
      %v424 = vunpack.c.l.b16 %v213
      %v425 = vunpack.c.l.b16 %v214
      %v426 = vunpack.c.l.b16 %v215
      %v427 = vunpack.c.l.b16 %v216
      %v428 = vunpack.c.l.b16 %v217
      %v429 = vunpack.c.l.b16 %v218
      %v430 = vunpack.c.l.b16 %v219
      %v431 = vunpack.c.l.b16 %v220
      %v432 = vunpack.c.l.b16 %v221
      %v433 = vunpack.c.l.b16 %v222
      %v434 = vunpack.c.l.b16 %v223
      %v435 = vunpack.c.l.b16 %v224
      %v436 = vunpack.c.l.b16 %v225
      %v437 = vunpack.c.l.b16 %v226
      %v438 = vunpack.c.l.b16 %v227
      %v439 = vunpack.c.l.b16 %v228
      %v440 = vunpack.c.l.b16 %v229
      %v441 = vunpack.c.l.b16 %v230
      %v442 = vunpack.c.l.b16 %v231
      %v443 = vunpack.c.l.b16 %v232
      %v444 = vunpack.c.l.b16 %v233
      %v445 = vunpack.c.l.b16 %v234
      %v446 = vunpack.c.l.b16 %v235
      %v447 = vunpack.c.l.b16 %v236
      %v448 = vunpack.c.l.b16 %v237
      %v449 = vpack.c.b16 %v418, %v417
      %v450 = vpack.c.b16 %v420, %v419
      %v451 = vpack.c.b16 %v422, %v421
      %v452 = vpack.c.b16 %v424, %v423
      %v453 = vpack.c.b16 %v426, %v425
      %v454 = vpack.c.b16 %v428, %v427
      %v455 = vpack.c.b16 %v430, %v429
      %v456 = vpack.c.b16 %v432, %v431
      %v457 = vpack.c.b16 %v434, %v433
      %v458 = vpack.c.b16 %v436, %v435
      %v459 = vpack.c.b16 %v438, %v437
      %v460 = vpack.c.b16 %v440, %v439
      %v461 = vpack.c.b16 %v442, %v441
      %v462 = vpack.c.b16 %v444, %v443
      %v463 = vpack.c.b16 %v446, %v445
      %v464 = vpack.c.b16 %v448, %v447
      %481 = vmatprep.subr.bf16.mxu0 0
      %482 = vmatpush1.bf16.msra.mxu0 %v456
      %483 = vmatprep.subr.bf16.mxu0 0
      %484 = vmatpush1.bf16.msra.mxu0 %v455
      %485 = vmatprep.subr.bf16.mxu0 0
      %486 = vmatpush1.bf16.msra.mxu0 %v454
      %487 = vmatprep.subr.bf16.mxu0 0
      %488 = vmatpush1.bf16.msra.mxu0 %v453
      %489 = vmatprep.subr.bf16.mxu0 0
      %490 = vmatpush1.bf16.msra.mxu0 %v452
      %491 = vmatprep.subr.bf16.mxu0 0
      %492 = vmatpush1.bf16.msra.mxu0 %v451
      %493 = vmatprep.subr.bf16.mxu0 0
      %494 = vmatpush1.bf16.msra.mxu0 %v450
      %495 = vmatprep.subr.bf16.mxu0 0
      %496 = vmatpush1.bf16.msra.mxu0 %v449
      %497 = vmatprep.subr.bf16.mxu0 0
      %498 = vmatpush2.bf16.msra.mxu0 %v464
      %499 = vmatprep.subr.bf16.mxu0 0
      %500 = vmatpush2.bf16.msra.mxu0 %v463
      %501 = vmatprep.subr.bf16.mxu0 0
      %502 = vmatpush2.bf16.msra.mxu0 %v462
      %503 = vmatprep.subr.bf16.mxu0 0
      %504 = vmatpush2.bf16.msra.mxu0 %v461
      %505 = vmatprep.subr.bf16.mxu0 0
      %506 = vmatpush2.bf16.msra.mxu0 %v460
      %507 = vmatprep.subr.bf16.mxu0 0
      %508 = vmatpush2.bf16.msra.mxu0 %v459
      %509 = vmatprep.subr.bf16.mxu0 0
      %510 = vmatpush2.bf16.msra.mxu0 %v458
      %511 = vmatprep.subr.bf16.mxu0 0
      %512 = vmatpush2.bf16.msra.mxu0 %v457
      %513 = vmatprep.mubr.bf16.mxu0 %v330
      %514 = vmatmul.mubr.bf16.gmra.mxu0 %v329
      %v515 = vpop.f32.mrf.mxu0
      %v516 = vadd.f32 %v243, %v515
      %v517 = vpop.f32.mrf.mxu0
      %v518 = vpop.f32.mrf.mxu0
      %v519 = vadd.f32 %v243, %v518
      %v520 = vpop.f32.mrf.mxu0
      %521 = vmatprep.mubr.bf16.mxu0 %v332
      %522 = vmatmul.mubr.bf16.gmra.mxu0 %v331
      %v523 = vpop.f32.mrf.mxu0
      %v524 = vadd.f32 %v243, %v523
      %v525 = vpop.f32.mrf.mxu0
      %v526 = vpop.f32.mrf.mxu0
      %v527 = vadd.f32 %v243, %v526
      %v528 = vpop.f32.mrf.mxu0
      %529 = vmatprep.mubr.bf16.mxu0 %v334
      %530 = vmatmul.mubr.bf16.gmra.mxu0 %v333
      %v531 = vpop.f32.mrf.mxu0
      %v532 = vadd.f32 %v243, %v531
      %v533 = vpop.f32.mrf.mxu0
      %v534 = vpop.f32.mrf.mxu0
      %v535 = vadd.f32 %v243, %v534
      %v536 = vpop.f32.mrf.mxu0
      %537 = vmatprep.mubr.bf16.mxu0 %v336
      %538 = vmatmul.mubr.bf16.gmra.mxu0 %v335
      %v539 = vpop.f32.mrf.mxu0
      %v540 = vadd.f32 %v243, %v539
      %v541 = vpop.f32.mrf.mxu0
      %v542 = vpop.f32.mrf.mxu0
      %v543 = vadd.f32 %v243, %v542
      %v544 = vpop.f32.mrf.mxu0
      %545 = vmatprep.mubr.bf16.mxu0 %v338
      %546 = vmatmul.mubr.bf16.gmra.mxu0 %v337
      %v547 = vpop.f32.mrf.mxu0
      %v548 = vadd.f32 %v243, %v547
      %v549 = vpop.f32.mrf.mxu0
      %v550 = vpop.f32.mrf.mxu0
      %v551 = vadd.f32 %v243, %v550
      %v552 = vpop.f32.mrf.mxu0
      %553 = vmatprep.mubr.bf16.mxu0 %v340
      %554 = vmatmul.mubr.bf16.gmra.mxu0 %v339
      %v555 = vpop.f32.mrf.mxu0
      %v556 = vadd.f32 %v243, %v555
      %v557 = vpop.f32.mrf.mxu0
      %v558 = vpop.f32.mrf.mxu0
      %v559 = vadd.f32 %v243, %v558
      %v560 = vpop.f32.mrf.mxu0
      %561 = vmatprep.mubr.bf16.mxu0 %v342
      %562 = vmatmul.mubr.bf16.gmra.mxu0 %v341
      %v563 = vpop.f32.mrf.mxu0
      %v564 = vadd.f32 %v243, %v563
      %v565 = vpop.f32.mrf.mxu0
      %v566 = vpop.f32.mrf.mxu0
      %v567 = vadd.f32 %v243, %v566
      %v568 = vpop.f32.mrf.mxu0
      %569 = vmatprep.mubr.bf16.mxu0 %v344
      %570 = vmatmul.mubr.bf16.gmra.mxu0 %v343
      %v571 = vpop.f32.mrf.mxu0
      %v572 = vadd.f32 %v243, %v571
      %v573 = vpop.f32.mrf.mxu0
      %v574 = vpop.f32.mrf.mxu0
      %v575 = vadd.f32 %v243, %v574
      %v576 = vpop.f32.mrf.mxu0
      %577 = vmatprep.mubr.bf16.mxu0 %v346
      %578 = vmatmul.mubr.bf16.gmra.mxu0 %v345
      %v579 = vpop.f32.mrf.mxu0
      %v580 = vadd.f32 %v243, %v579
      %v581 = vpop.f32.mrf.mxu0
      %v582 = vpop.f32.mrf.mxu0
      %v583 = vadd.f32 %v243, %v582
      %v584 = vpop.f32.mrf.mxu0
      %585 = vmatprep.mubr.bf16.mxu0 %v348
      %586 = vmatmul.mubr.bf16.gmra.mxu0 %v347
      %v587 = vpop.f32.mrf.mxu0
      %v588 = vadd.f32 %v243, %v587
      %v589 = vpop.f32.mrf.mxu0
      %v590 = vpop.f32.mrf.mxu0
      %v591 = vadd.f32 %v243, %v590
      %v592 = vpop.f32.mrf.mxu0
      %593 = vmatprep.mubr.bf16.mxu0 %v350
      %594 = vmatmul.mubr.bf16.gmra.mxu0 %v349
      %v595 = vpop.f32.mrf.mxu0
      %v596 = vadd.f32 %v243, %v595
      %v597 = vpop.f32.mrf.mxu0
      %v598 = vpop.f32.mrf.mxu0
      %v599 = vadd.f32 %v243, %v598
      %v600 = vpop.f32.mrf.mxu0
      %601 = vmatprep.mubr.bf16.mxu0 %v352
      %602 = vmatmul.mubr.bf16.gmra.mxu0 %v351
      %v603 = vpop.f32.mrf.mxu0
      %v604 = vadd.f32 %v243, %v603
      %v605 = vpop.f32.mrf.mxu0
      %v606 = vpop.f32.mrf.mxu0
      %v607 = vadd.f32 %v243, %v606
      %v608 = vpop.f32.mrf.mxu0
      %609 = vmatprep.mubr.bf16.mxu0 %v354
      %610 = vmatmul.mubr.bf16.gmra.mxu0 %v353
      %v611 = vpop.f32.mrf.mxu0
      %v612 = vadd.f32 %v243, %v611
      %v613 = vpop.f32.mrf.mxu0
      %v614 = vpop.f32.mrf.mxu0
      %v615 = vadd.f32 %v243, %v614
      %v616 = vpop.f32.mrf.mxu0
      %617 = vmatprep.mubr.bf16.mxu0 %v356
      %618 = vmatmul.mubr.bf16.gmra.mxu0 %v355
      %v619 = vpop.f32.mrf.mxu0
      %v620 = vadd.f32 %v243, %v619
      %v621 = vpop.f32.mrf.mxu0
      %v622 = vpop.f32.mrf.mxu0
      %v623 = vadd.f32 %v243, %v622
      %v624 = vpop.f32.mrf.mxu0
      %625 = vdwg.mxu0
      %v626 = vmax.f32 %v516, 0.0
      %v627 = vmax.f32 %v519, 0.0
      %v628 = vmax.f32 %v524, 0.0
      %v629 = vmax.f32 %v527, 0.0
      %v630 = vmax.f32 %v532, 0.0
      %v631 = vmax.f32 %v535, 0.0
      %v632 = vmax.f32 %v540, 0.0
      %v633 = vmax.f32 %v543, 0.0
      %v634 = vmax.f32 %v548, 0.0
      %v635 = vmax.f32 %v551, 0.0
      %v636 = vmax.f32 %v556, 0.0
      %v637 = vmax.f32 %v559, 0.0
      %v638 = vmax.f32 %v564, 0.0
      %v639 = vmax.f32 %v567, 0.0
      %v640 = vmax.f32 %v572, 0.0
      %v641 = vmax.f32 %v575, 0.0
      %v642 = vmax.f32 %v580, 0.0
      %v643 = vmax.f32 %v583, 0.0
      %v644 = vmax.f32 %v588, 0.0
      %v645 = vmax.f32 %v591, 0.0
      %v646 = vmax.f32 %v596, 0.0
      %v647 = vmax.f32 %v599, 0.0
      %v648 = vmax.f32 %v604, 0.0
      %v649 = vmax.f32 %v607, 0.0
      %v650 = vmax.f32 %v612, 0.0
      %v651 = vmax.f32 %v615, 0.0
      %v652 = vmax.f32 %v620, 0.0
      %v653 = vmax.f32 %v623, 0.0
      %v654 = vpack.c.bf16 %v627, %v626
      %v655 = vpack.c.bf16 %v629, %v628
      %v656 = vpack.c.bf16 %v631, %v630
      %v657 = vpack.c.bf16 %v633, %v632
      %v658 = vpack.c.bf16 %v635, %v634
      %v659 = vpack.c.bf16 %v637, %v636
      %v660 = vpack.c.bf16 %v639, %v638
      %v661 = vpack.c.bf16 %v641, %v640
      %v662 = vpack.c.bf16 %v643, %v642
      %v663 = vpack.c.bf16 %v645, %v644
      %v664 = vpack.c.bf16 %v647, %v646
      %v665 = vpack.c.bf16 %v649, %v648
      %v666 = vpack.c.bf16 %v651, %v650
      %v667 = vpack.c.bf16 %v653, %v652
      %v682 = vunpack.c.l.b16 %v654
      %v683 = vunpack.c.h.b16 %v654
      %v684 = vunpack.c.l.b16 %v655
      %v685 = vunpack.c.h.b16 %v655
      %v686 = vunpack.c.l.b16 %v656
      %v687 = vunpack.c.h.b16 %v656
      %v688 = vunpack.c.l.b16 %v657
      %v689 = vunpack.c.h.b16 %v657
      %v690 = vunpack.c.l.b16 %v658
      %v691 = vunpack.c.h.b16 %v658
      %v692 = vunpack.c.l.b16 %v659
      %v693 = vunpack.c.h.b16 %v659
      %v694 = vunpack.c.l.b16 %v660
      %v695 = vunpack.c.h.b16 %v660
      %v696 = vunpack.c.l.b16 %v661
      %v697 = vunpack.c.h.b16 %v661
      %v698 = vunpack.c.l.b16 %v662
      %v699 = vunpack.c.h.b16 %v662
      %v700 = vunpack.c.l.b16 %v663
      %v701 = vunpack.c.h.b16 %v663
      %v702 = vunpack.c.l.b16 %v664
      %v703 = vunpack.c.h.b16 %v664
      %v704 = vunpack.c.l.b16 %v665
      %v705 = vunpack.c.h.b16 %v665
      %v706 = vunpack.c.l.b16 %v666
      %v707 = vunpack.c.h.b16 %v666
      %v708 = vunpack.c.l.b16 %v667
      %v709 = vunpack.c.h.b16 %v667
      %v710 = vpack.c.b16 %v682, %v682
      %v711 = vpack.c.b16 %v683, %v683
      %v712 = vpack.c.b16 %v684, %v684
      %v713 = vpack.c.b16 %v685, %v685
      %v714 = vpack.c.b16 %v686, %v686
      %v715 = vpack.c.b16 %v687, %v687
      %v716 = vpack.c.b16 %v688, %v688
      %v717 = vpack.c.b16 %v689, %v689
      %v718 = vpack.c.b16 %v690, %v690
      %v719 = vpack.c.b16 %v691, %v691
      %v720 = vpack.c.b16 %v692, %v692
      %v721 = vpack.c.b16 %v693, %v693
      %v722 = vpack.c.b16 %v694, %v694
      %v723 = vpack.c.b16 %v695, %v695
      %v724 = vpack.c.b16 %v696, %v696
      %v725 = vpack.c.b16 %v697, %v697
      %v726 = vpack.c.b16 %v698, %v698
      %v727 = vpack.c.b16 %v699, %v699
      %v728 = vpack.c.b16 %v700, %v700
      %v729 = vpack.c.b16 %v701, %v701
      %v730 = vpack.c.b16 %v702, %v702
      %v731 = vpack.c.b16 %v703, %v703
      %v732 = vpack.c.b16 %v704, %v704
      %v733 = vpack.c.b16 %v705, %v705
      %v734 = vpack.c.b16 %v706, %v706
      %v735 = vpack.c.b16 %v707, %v707
      %v736 = vpack.c.b16 %v708, %v708
      %v737 = vpack.c.b16 %v709, %v709
      %766 = vst [vmem:[%s175] sm:$0xf] %v710
      %767 = vst [vmem:[%s175 + $0x4] sm:$0xf] %v711
      %768 = vst [vmem:[%s175 + $0x8] sm:$0xf] %v712
      %769 = vst [vmem:[%s175 + $0xc] sm:$0xf] %v713
      %770 = vst [vmem:[%s175 + $0x10] sm:$0xf] %v714
      %771 = vst [vmem:[%s175 + $0x14] sm:$0xf] %v715
      %772 = vst [vmem:[%s175 + $0x18] sm:$0xf] %v716
      %773 = vst [vmem:[%s175 + $0x1c] sm:$0xf] %v717
      %774 = vst [vmem:[%s175 + $0x20] sm:$0xf] %v718
      %775 = vst [vmem:[%s175 + $0x24] sm:$0xf] %v719
      %776 = vst [vmem:[%s175 + $0x28] sm:$0xf] %v720
      %777 = vst [vmem:[%s175 + $0x2c] sm:$0xf] %v721
      %778 = vst [vmem:[%s175 + $0x30] sm:$0xf] %v722
      %779 = vst [vmem:[%s175 + $0x34] sm:$0xf] %v723
      %780 = vst [vmem:[%s175 + $0x38] sm:$0xf] %v724
      %781 = vst [vmem:[%s175 + $0x3c] sm:$0xf] %v725
      %782 = vst [vmem:[%s175 + $0x40] sm:$0xf] %v726
      %783 = vst [vmem:[%s175 + $0x44] sm:$0xf] %v727
      %784 = vst [vmem:[%s175 + $0x48] sm:$0xf] %v728
      %785 = vst [vmem:[%s175 + $0x4c] sm:$0xf] %v729
      %786 = vst [vmem:[%s175 + $0x50] sm:$0xf] %v730
      %787 = vst [vmem:[%s175 + $0x54] sm:$0xf] %v731
      %788 = vst [vmem:[%s175 + $0x58] sm:$0xf] %v732
      %789 = vst [vmem:[%s175 + $0x5c] sm:$0xf] %v733
      %790 = vst [vmem:[%s175 + $0x60] sm:$0xf] %v734
      %791 = vst [vmem:[%s175 + $0x64] sm:$0xf] %v735
      %792 = vst [vmem:[%s175 + $0x68] sm:$0xf] %v736
      %793 = vst [vmem:[%s175 + $0x6c] sm:$0xf] %v737
      %s794 = smul.u32 28, %s14
      %p795 = scmp.lt.s32.totalorder %s794, 83
      %s796 = scalar_select %p795, %s794, 83
      %s797 = smul.addr %s796, 4
      %s798 = scalar_lea.vmem %s3, %s797
      // Predicated region
      $region33: #{forward.6} parent=31 // pred_check
        %p799 = pneg %p100
      $region34: #{forward.6} parent=31 // pred_check_branch
        %801 = sbr.rel (%p799) target = $region36
      $region35: #{forward.6} parent=31 // pred_region
        %s802 = smul.u32 28, %s14
      $region36: #{forward.6} parent=31 // pred_fallthru
        _
    $region32: #{forward.6} parent=5 // pred_fallthru
      _
    %p803 = scmp.le.s32.totalorder 2, %s9
    // Predicated region
    $region37: #{forward.6} parent=5 // pred_check
      %p804 = pneg %p803
    $region38: #{forward.6} parent=5 // pred_check_branch
      %806 = sbr.rel (%p804) target = $region40
    $region39: #{forward.6} parent=5 // pred_region
      %s807 = ssub.s32 %s9, 2
      // Predicated region
      $region41: #{forward.6} parent=39 // pred_check
        %p808 = pneg %p106
      $region42: #{forward.6} parent=39 // pred_check_branch
        %810 = sbr.rel (%p808) target = $region44
      $region43: #{forward.6} parent=39 // pred_region
        %s811 = smul.u32 28, %s15
        %p812 = scmp.lt.s32.totalorder %s811, 83
        %s813 = scalar_select %p812, %s811, 83
        %s814 = smul.addr %s813, 4
        %s815 = scalar_lea.vmem %s3, %s814
      $region44: #{forward.6} parent=39 // pred_fallthru
        _
    $region40: #{forward.6} parent=5 // pred_fallthru
      _
  $region6: #{forward.6} parent=0 // loop_footer
    %s13 = sadd.s32 1, %s9
  $region7: #{forward.6} parent=0 // loop_footer_branch
    %8 = sbr.rel target = $region3
  $region8: #{forward.6} parent=0 // loop_exit
    _

// kernel: forward.7
$region0: #{forward.7}
  #allocation0 [shape = 'u32[]', space=smem, size = 0x4, offset = 0x4, fixed_abs, tag = 'smem constant byte address 0x4 - core index']
  #allocation1 [shape = 'u32[144,128]{1,0:T(1,128)}', space=vmem, size = 0x12000, scoped, tag = 'internal scratch']
  %s0 = inlined_call_operand.vmem [shape: bf16[112,640], index: 0, kind: input, shape index: {}]
  %s1 = inlined_call_operand.vmem [shape: bf16[640,128], index: 1, kind: input, shape index: {}]
  %s2 = inlined_call_operand.vmem [shape: f32[1,128], index: 2, kind: input, shape index: {}]
  %s3 = inlined_call_operand.vmem [shape: bf16[112,128], index: 3, kind: output, shape index: {}]
  %s4 = sld [smem:[#allocation0]]
  $region22: #{forward.7} parent=0
    _
  %s6 = ssub.s32 1, %s4
  %s7 = scalar_select 0, %s6, %s4
  // Predicated region
  $region2: #{forward.7} parent=0 // pred_check
    _
  $region3: #{forward.7} parent=0 // pred_check_branch
    %9 = sbr.rel (0) target = $region5
  $region4: #{forward.7} parent=0 // pred_region
    _
  $region5: #{forward.7} parent=0 // pred_fallthru
    _
  // Predicated region
  $region6: #{forward.7} parent=0 // pred_check
    _
  $region7: #{forward.7} parent=0 // pred_check_branch
    %11 = sbr.rel (0) target = $region9
  $region8: #{forward.7} parent=0 // pred_region
    _
  $region9: #{forward.7} parent=0 // pred_fallthru
    _
  // Predicated region
  $region10: #{forward.7} parent=0 // pred_check
    _
  $region11: #{forward.7} parent=0 // pred_check_branch
    %13 = sbr.rel (0) target = $region13
  $region12: #{forward.7} parent=0 // pred_region
    _
  $region13: #{forward.7} parent=0 // pred_fallthru
    _
  %v15 = vld [vmem:[%s0] sm:$0xff]
  %v16 = vld [vmem:[%s0 + $0x8] sm:$0xff]
  %v17 = vld [vmem:[%s0 + $0x10] sm:$0xf]
  %v18 = vld [vmem:[%s0 + $0x14] sm:$0xff]
  %v19 = vld [vmem:[%s0 + $0x1c] sm:$0xff]
  %v20 = vld [vmem:[%s0 + $0x24] sm:$0xf]
  %v21 = vld [vmem:[%s0 + $0x28] sm:$0xff]
  %v22 = vld [vmem:[%s0 + $0x30] sm:$0xff]
  %v23 = vld [vmem:[%s0 + $0x38] sm:$0xf]
  %v24 = vld [vmem:[%s0 + $0x3c] sm:$0xff]
  %v25 = vld [vmem:[%s0 + $0x44] sm:$0xff]
  %v26 = vld [vmem:[%s0 + $0x4c] sm:$0xf]
  %v27 = vld [vmem:[%s0 + $0x50] sm:$0xff]
  %v28 = vld [vmem:[%s0 + $0x58] sm:$0xff]
  %v29 = vld [vmem:[%s0 + $0x60] sm:$0xf]
  %v30 = vld [vmem:[%s0 + $0x64] sm:$0xff]
  %v31 = vld [vmem:[%s0 + $0x6c] sm:$0xff]
  %v32 = vld [vmem:[%s0 + $0x74] sm:$0xf]
  %v33 = vld [vmem:[%s0 + $0x78] sm:$0xff]
  %v34 = vld [vmem:[%s0 + $0x80] sm:$0xff]
  %v35 = vld [vmem:[%s0 + $0x88] sm:$0xf]
  %v36 = vld [vmem:[%s0 + $0x8c] sm:$0xff]
  %v37 = vld [vmem:[%s0 + $0x94] sm:$0xff]
  %v38 = vld [vmem:[%s0 + $0x9c] sm:$0xf]
  %v39 = vld [vmem:[%s0 + $0xa0] sm:$0xff]
  %v40 = vld [vmem:[%s0 + $0xa8] sm:$0xff]
  %v41 = vld [vmem:[%s0 + $0xb0] sm:$0xf]
  %v42 = vld [vmem:[%s0 + $0xb4] sm:$0xff]
  %v43 = vld [vmem:[%s0 + $0xbc] sm:$0xff]
  %v44 = vld [vmem:[%s0 + $0xc4] sm:$0xf]
  %v45 = vld [vmem:[%s0 + $0xc8] sm:$0xff]
  %v46 = vld [vmem:[%s0 + $0xd0] sm:$0xff]
  %v47 = vld [vmem:[%s0 + $0xd8] sm:$0xf]
  %v48 = vld [vmem:[%s0 + $0xdc] sm:$0xff]
  %v49 = vld [vmem:[%s0 + $0xe4] sm:$0xff]
  %v50 = vld [vmem:[%s0 + $0xec] sm:$0xf]
  %v51 = vld [vmem:[%s0 + $0xf0] sm:$0xff]
  %v52 = vld [vmem:[%s0 + $0xf8] sm:$0xff]
  %v53 = vld [vmem:[%s0 + $0x100] sm:$0xf]
  %v54 = vld [vmem:[%s0 + $0x104] sm:$0xff]
  %v55 = vld [vmem:[%s0 + $0x10c] sm:$0xff]
  %v56 = vld [vmem:[%s0 + $0x114] sm:$0xf]
  %v57 = vld [vmem:[%s1] sm:$0xf]
  %v58 = vld [vmem:[%s1 + $0x4] sm:$0xf]
  %v59 = vld [vmem:[%s1 + $0x8] sm:$0xf]
  %v60 = vld [vmem:[%s1 + $0xc] sm:$0xf]
  %v61 = vld [vmem:[%s1 + $0x10] sm:$0xf]
  %v62 = vld [vmem:[%s1 + $0x14] sm:$0xf]
  %v63 = vld [vmem:[%s1 + $0x18] sm:$0xf]
  %v64 = vld [vmem:[%s1 + $0x1c] sm:$0xf]
  %v65 = vld [vmem:[%s1 + $0x20] sm:$0xf]
  %v66 = vld [vmem:[%s1 + $0x24] sm:$0xf]
  %v67 = vld [vmem:[%s1 + $0x28] sm:$0xf]
  %v68 = vld [vmem:[%s1 + $0x2c] sm:$0xf]
  %v69 = vld [vmem:[%s1 + $0x30] sm:$0xf]
  %v70 = vld [vmem:[%s1 + $0x34] sm:$0xf]
  %v71 = vld [vmem:[%s1 + $0x38] sm:$0xf]
  %v72 = vld [vmem:[%s1 + $0x3c] sm:$0xf]
  %v73 = vld [vmem:[%s1 + $0x40] sm:$0xf]
  %v74 = vld [vmem:[%s1 + $0x44] sm:$0xf]
  %v75 = vld [vmem:[%s1 + $0x48] sm:$0xf]
  %v76 = vld [vmem:[%s1 + $0x4c] sm:$0xf]
  %v77 = vld [vmem:[%s1 + $0x50] sm:$0xf]
  %v78 = vld [vmem:[%s1 + $0x54] sm:$0xf]
  %v79 = vld [vmem:[%s1 + $0x58] sm:$0xf]
  %v80 = vld [vmem:[%s1 + $0x5c] sm:$0xf]
  %v81 = vld [vmem:[%s1 + $0x60] sm:$0xf]
  %v82 = vld [vmem:[%s1 + $0x64] sm:$0xf]
  %v83 = vld [vmem:[%s1 + $0x68] sm:$0xf]
  %v84 = vld [vmem:[%s1 + $0x6c] sm:$0xf]
  %v85 = vld [vmem:[%s1 + $0x70] sm:$0xf]
  %v86 = vld [vmem:[%s1 + $0x74] sm:$0xf]
  %v87 = vld [vmem:[%s1 + $0x78] sm:$0xf]
  %v88 = vld [vmem:[%s1 + $0x7c] sm:$0xf]
  %v89 = vld [vmem:[%s1 + $0x80] sm:$0xf]
  %v90 = vld [vmem:[%s1 + $0x84] sm:$0xf]
  %v91 = vld [vmem:[%s1 + $0x88] sm:$0xf]
  %v92 = vld [vmem:[%s1 + $0x8c] sm:$0xf]
  %v93 = vld [vmem:[%s1 + $0x90] sm:$0xf]
  %v94 = vld [vmem:[%s1 + $0x94] sm:$0xf]
  %v95 = vld [vmem:[%s1 + $0x98] sm:$0xf]
  %v96 = vld [vmem:[%s1 + $0x9c] sm:$0xf]
  %v97 = vld [vmem:[%s1 + $0xa0] sm:$0xf]
  %v98 = vld [vmem:[%s1 + $0xa4] sm:$0xf]
  %v99 = vld [vmem:[%s1 + $0xa8] sm:$0xf]
  %v100 = vld [vmem:[%s1 + $0xac] sm:$0xf]
  %v101 = vld [vmem:[%s1 + $0xb0] sm:$0xf]
  %v102 = vld [vmem:[%s1 + $0xb4] sm:$0xf]
  %v103 = vld [vmem:[%s1 + $0xb8] sm:$0xf]
  %v104 = vld [vmem:[%s1 + $0xbc] sm:$0xf]
  %v105 = vld [vmem:[%s1 + $0xc0] sm:$0xf]
  %v106 = vld [vmem:[%s1 + $0xc4] sm:$0xf]
  %v107 = vld [vmem:[%s1 + $0xc8] sm:$0xf]
  %v108 = vld [vmem:[%s1 + $0xcc] sm:$0xf]
  %v109 = vld [vmem:[%s1 + $0xd0] sm:$0xf]
  %v110 = vld [vmem:[%s1 + $0xd4] sm:$0xf]
  %v111 = vld [vmem:[%s1 + $0xd8] sm:$0xf]
  %v112 = vld [vmem:[%s1 + $0xdc] sm:$0xf]
  %v113 = vld [vmem:[%s1 + $0xe0] sm:$0xf]
  %v114 = vld [vmem:[%s1 + $0xe4] sm:$0xf]
  %v115 = vld [vmem:[%s1 + $0xe8] sm:$0xf]
  %v116 = vld [vmem:[%s1 + $0xec] sm:$0xf]
  %v117 = vld [vmem:[%s1 + $0xf0] sm:$0xf]
  %v118 = vld [vmem:[%s1 + $0xf4] sm:$0xf]
  %v119 = vld [vmem:[%s1 + $0xf8] sm:$0xf]
  %v120 = vld [vmem:[%s1 + $0xfc] sm:$0xf]
  %v121 = vld [vmem:[%s1 + $0x100] sm:$0xf]
  %v122 = vld [vmem:[%s1 + $0x104] sm:$0xf]
  %v123 = vld [vmem:[%s1 + $0x108] sm:$0xf]
  %v124 = vld [vmem:[%s1 + $0x10c] sm:$0xf]
  %v125 = vld [vmem:[%s1 + $0x110] sm:$0xf]
  %v126 = vld [vmem:[%s1 + $0x114] sm:$0xf]
  %v127 = vld [vmem:[%s1 + $0x118] sm:$0xf]
  %v128 = vld [vmem:[%s1 + $0x11c] sm:$0xf]
  %v129 = vld [vmem:[%s1 + $0x120] sm:$0xf]
  %v130 = vld [vmem:[%s1 + $0x124] sm:$0xf]
  %v131 = vld [vmem:[%s1 + $0x128] sm:$0xf]
  %v132 = vld [vmem:[%s1 + $0x12c] sm:$0xf]
  %v133 = vld [vmem:[%s1 + $0x130] sm:$0xf]
  %v134 = vld [vmem:[%s1 + $0x134] sm:$0xf]
  %v135 = vld [vmem:[%s1 + $0x138] sm:$0xf]
  %v136 = vld [vmem:[%s1 + $0x13c] sm:$0xf]
  %v137 = vld [vmem:[%s2] sm:$0x1]
  %v139 = vlaneseq
  %v140 = vshrl.u32 %v139, 7
  %v141 = vsub.s32 0, %v140
  %v142 = vrot.slane %v137, %v141
  %v186 = vunpack.c.l.b16 %v15
  %v187 = vunpack.c.h.b16 %v15
  %v188 = vunpack.c.l.b16 %v16
  %v189 = vunpack.c.h.b16 %v16
  %v190 = vunpack.c.l.b16 %v17
  %v191 = vunpack.c.l.b16 %v18
  %v192 = vunpack.c.h.b16 %v18
  %v193 = vunpack.c.l.b16 %v19
  %v194 = vunpack.c.h.b16 %v19
  %v195 = vunpack.c.l.b16 %v20
  %v196 = vunpack.c.l.b16 %v21
  %v197 = vunpack.c.h.b16 %v21
  %v198 = vunpack.c.l.b16 %v22
  %v199 = vunpack.c.h.b16 %v22
  %v200 = vunpack.c.l.b16 %v23
  %v201 = vunpack.c.l.b16 %v24
  %v202 = vunpack.c.h.b16 %v24
  %v203 = vunpack.c.l.b16 %v25
  %v204 = vunpack.c.h.b16 %v25
  %v205 = vunpack.c.l.b16 %v26
  %v206 = vunpack.c.l.b16 %v27
  %v207 = vunpack.c.h.b16 %v27
  %v208 = vunpack.c.l.b16 %v28
  %v209 = vunpack.c.h.b16 %v28
  %v210 = vunpack.c.l.b16 %v29
  %v211 = vunpack.c.l.b16 %v30
  %v212 = vunpack.c.h.b16 %v30
  %v213 = vunpack.c.l.b16 %v31
  %v214 = vunpack.c.h.b16 %v31
  %v215 = vunpack.c.l.b16 %v32
  %v216 = vunpack.c.l.b16 %v33
  %v217 = vunpack.c.h.b16 %v33
  %v218 = vunpack.c.l.b16 %v34
  %v219 = vunpack.c.h.b16 %v34
  %v220 = vunpack.c.l.b16 %v35
  %v221 = vunpack.c.l.b16 %v36
  %v222 = vunpack.c.h.b16 %v36
  %v223 = vunpack.c.l.b16 %v37
  %v224 = vunpack.c.h.b16 %v37
  %v225 = vunpack.c.l.b16 %v38
  %v226 = vunpack.c.l.b16 %v39
  %v227 = vunpack.c.h.b16 %v39
  %v228 = vunpack.c.l.b16 %v40
  %v229 = vunpack.c.h.b16 %v40
  %v230 = vunpack.c.l.b16 %v41
  %v231 = vunpack.c.l.b16 %v42
  %v232 = vunpack.c.h.b16 %v42
  %v233 = vunpack.c.l.b16 %v43
  %v234 = vunpack.c.h.b16 %v43
  %v235 = vunpack.c.l.b16 %v44
  %v236 = vunpack.c.l.b16 %v45
  %v237 = vunpack.c.h.b16 %v45
  %v238 = vunpack.c.l.b16 %v46
  %v239 = vunpack.c.h.b16 %v46
  %v240 = vunpack.c.l.b16 %v47
  %v241 = vunpack.c.l.b16 %v48
  %v242 = vunpack.c.h.b16 %v48
  %v243 = vunpack.c.l.b16 %v49
  %v244 = vunpack.c.h.b16 %v49
  %v245 = vunpack.c.l.b16 %v50
  %v246 = vunpack.c.l.b16 %v51
  %v247 = vunpack.c.h.b16 %v51
  %v248 = vunpack.c.l.b16 %v52
  %v249 = vunpack.c.h.b16 %v52
  %v250 = vunpack.c.l.b16 %v53
  %v251 = vunpack.c.l.b16 %v54
  %v252 = vunpack.c.h.b16 %v54
  %v253 = vunpack.c.l.b16 %v55
  %v254 = vunpack.c.h.b16 %v55
  %v255 = vunpack.c.l.b16 %v56
  %v256 = vpack.c.b16 %v191, %v186
  %v257 = vpack.c.b16 %v192, %v187
  %v258 = vpack.c.b16 %v193, %v188
  %v259 = vpack.c.b16 %v194, %v189
  %v260 = vpack.c.b16 %v195, %v190
  %v261 = vpack.c.b16 %v201, %v196
  %v262 = vpack.c.b16 %v202, %v197
  %v263 = vpack.c.b16 %v203, %v198
  %v264 = vpack.c.b16 %v204, %v199
  %v265 = vpack.c.b16 %v205, %v200
  %v266 = vpack.c.b16 %v211, %v206
  %v267 = vpack.c.b16 %v212, %v207
  %v268 = vpack.c.b16 %v213, %v208
  %v269 = vpack.c.b16 %v214, %v209
  %v270 = vpack.c.b16 %v215, %v210
  %v271 = vpack.c.b16 %v221, %v216
  %v272 = vpack.c.b16 %v222, %v217
  %v273 = vpack.c.b16 %v223, %v218
  %v274 = vpack.c.b16 %v224, %v219
  %v275 = vpack.c.b16 %v225, %v220
  %v276 = vpack.c.b16 %v231, %v226
  %v277 = vpack.c.b16 %v232, %v227
  %v278 = vpack.c.b16 %v233, %v228
  %v279 = vpack.c.b16 %v234, %v229
  %v280 = vpack.c.b16 %v235, %v230
  %v281 = vpack.c.b16 %v241, %v236
  %v282 = vpack.c.b16 %v242, %v237
  %v283 = vpack.c.b16 %v243, %v238
  %v284 = vpack.c.b16 %v244, %v239
  %v285 = vpack.c.b16 %v245, %v240
  %v286 = vpack.c.b16 %v251, %v246
  %v287 = vpack.c.b16 %v252, %v247
  %v288 = vpack.c.b16 %v253, %v248
  %v289 = vpack.c.b16 %v254, %v249
  %v290 = vpack.c.b16 %v255, %v250
  %v406 = vunpack.c.l.b16 %v57
  %v407 = vunpack.c.l.b16 %v58
  %v408 = vunpack.c.l.b16 %v59
  %v409 = vunpack.c.l.b16 %v60
  %v410 = vunpack.c.l.b16 %v61
  %v411 = vunpack.c.l.b16 %v62
  %v412 = vunpack.c.l.b16 %v63
  %v413 = vunpack.c.l.b16 %v64
  %v414 = vunpack.c.l.b16 %v65
  %v415 = vunpack.c.l.b16 %v66
  %v416 = vunpack.c.l.b16 %v67
  %v417 = vunpack.c.l.b16 %v68
  %v418 = vunpack.c.l.b16 %v69
  %v419 = vunpack.c.l.b16 %v70
  %v420 = vunpack.c.l.b16 %v71
  %v421 = vunpack.c.l.b16 %v72
  %v422 = vunpack.c.l.b16 %v73
  %v423 = vunpack.c.l.b16 %v74
  %v424 = vunpack.c.l.b16 %v75
  %v425 = vunpack.c.l.b16 %v76
  %v426 = vunpack.c.l.b16 %v77
  %v427 = vunpack.c.l.b16 %v78
  %v428 = vunpack.c.l.b16 %v79
  %v429 = vunpack.c.l.b16 %v80
  %v430 = vunpack.c.l.b16 %v81
  %v431 = vunpack.c.l.b16 %v82
  %v432 = vunpack.c.l.b16 %v83
  %v433 = vunpack.c.l.b16 %v84
  %v434 = vunpack.c.l.b16 %v85
  %v435 = vunpack.c.l.b16 %v86
  %v436 = vunpack.c.l.b16 %v87
  %v437 = vunpack.c.l.b16 %v88
  %v438 = vunpack.c.l.b16 %v89
  %v439 = vunpack.c.l.b16 %v90
  %v440 = vunpack.c.l.b16 %v91
  %v441 = vunpack.c.l.b16 %v92
  %v442 = vunpack.c.l.b16 %v93
  %v443 = vunpack.c.l.b16 %v94
  %v444 = vunpack.c.l.b16 %v95
  %v445 = vunpack.c.l.b16 %v96
  %v446 = vunpack.c.l.b16 %v97
  %v447 = vunpack.c.l.b16 %v98
  %v448 = vunpack.c.l.b16 %v99
  %v449 = vunpack.c.l.b16 %v100
  %v450 = vunpack.c.l.b16 %v101
  %v451 = vunpack.c.l.b16 %v102
  %v452 = vunpack.c.l.b16 %v103
  %v453 = vunpack.c.l.b16 %v104
  %v454 = vunpack.c.l.b16 %v105
  %v455 = vunpack.c.l.b16 %v106
  %v456 = vunpack.c.l.b16 %v107
  %v457 = vunpack.c.l.b16 %v108
  %v458 = vunpack.c.l.b16 %v109
  %v459 = vunpack.c.l.b16 %v110
  %v460 = vunpack.c.l.b16 %v111
  %v461 = vunpack.c.l.b16 %v112
  %v462 = vunpack.c.l.b16 %v113
  %v463 = vunpack.c.l.b16 %v114
  %v464 = vunpack.c.l.b16 %v115
  %v465 = vunpack.c.l.b16 %v116
  %v466 = vunpack.c.l.b16 %v117
  %v467 = vunpack.c.l.b16 %v118
  %v468 = vunpack.c.l.b16 %v119
  %v469 = vunpack.c.l.b16 %v120
  %v470 = vunpack.c.l.b16 %v121
  %v471 = vunpack.c.l.b16 %v122
  %v472 = vunpack.c.l.b16 %v123
  %v473 = vunpack.c.l.b16 %v124
  %v474 = vunpack.c.l.b16 %v125
  %v475 = vunpack.c.l.b16 %v126
  %v476 = vunpack.c.l.b16 %v127
  %v477 = vunpack.c.l.b16 %v128
  %v478 = vunpack.c.l.b16 %v129
  %v479 = vunpack.c.l.b16 %v130
  %v480 = vunpack.c.l.b16 %v131
  %v481 = vunpack.c.l.b16 %v132
  %v482 = vunpack.c.l.b16 %v133
  %v483 = vunpack.c.l.b16 %v134
  %v484 = vunpack.c.l.b16 %v135
  %v485 = vunpack.c.l.b16 %v136
  %v486 = vpack.c.b16 %v407, %v406
  %v487 = vpack.c.b16 %v409, %v408
  %v488 = vpack.c.b16 %v411, %v410
  %v489 = vpack.c.b16 %v413, %v412
  %v490 = vpack.c.b16 %v415, %v414
  %v491 = vpack.c.b16 %v417, %v416
  %v492 = vpack.c.b16 %v419, %v418
  %v493 = vpack.c.b16 %v421, %v420
  %v494 = vpack.c.b16 %v423, %v422
  %v495 = vpack.c.b16 %v425, %v424
  %v496 = vpack.c.b16 %v427, %v426
  %v497 = vpack.c.b16 %v429, %v428
  %v498 = vpack.c.b16 %v431, %v430
  %v499 = vpack.c.b16 %v433, %v432
  %v500 = vpack.c.b16 %v435, %v434
  %v501 = vpack.c.b16 %v437, %v436
  %v502 = vpack.c.b16 %v439, %v438
  %v503 = vpack.c.b16 %v441, %v440
  %v504 = vpack.c.b16 %v443, %v442
  %v505 = vpack.c.b16 %v445, %v444
  %v506 = vpack.c.b16 %v447, %v446
  %v507 = vpack.c.b16 %v449, %v448
  %v508 = vpack.c.b16 %v451, %v450
  %v509 = vpack.c.b16 %v453, %v452
  %v510 = vpack.c.b16 %v455, %v454
  %v511 = vpack.c.b16 %v457, %v456
  %v512 = vpack.c.b16 %v459, %v458
  %v513 = vpack.c.b16 %v461, %v460
  %v514 = vpack.c.b16 %v463, %v462
  %v515 = vpack.c.b16 %v465, %v464
  %v516 = vpack.c.b16 %v467, %v466
  %v517 = vpack.c.b16 %v469, %v468
  %v518 = vpack.c.b16 %v471, %v470
  %v519 = vpack.c.b16 %v473, %v472
  %v520 = vpack.c.b16 %v475, %v474
  %v521 = vpack.c.b16 %v477, %v476
  %v522 = vpack.c.b16 %v479, %v478
  %v523 = vpack.c.b16 %v481, %v480
  %v524 = vpack.c.b16 %v483, %v482
  %v525 = vpack.c.b16 %v485, %v484
  %566 = vmatprep.subr.bf16.mxu0 0
  %567 = vmatpush1.bf16.msra.mxu0 %v493
  %568 = vmatprep.subr.bf16.mxu0 0
  %569 = vmatpush1.bf16.msra.mxu0 %v492
  %570 = vmatprep.subr.bf16.mxu0 0
  %571 = vmatpush1.bf16.msra.mxu0 %v491
  %572 = vmatprep.subr.bf16.mxu0 0
  %573 = vmatpush1.bf16.msra.mxu0 %v490
  %574 = vmatprep.subr.bf16.mxu0 0
  %575 = vmatpush1.bf16.msra.mxu0 %v489
  %576 = vmatprep.subr.bf16.mxu0 0
  %577 = vmatpush1.bf16.msra.mxu0 %v488
  %578 = vmatprep.subr.bf16.mxu0 0
  %579 = vmatpush1.bf16.msra.mxu0 %v487
  %580 = vmatprep.subr.bf16.mxu0 0
  %581 = vmatpush1.bf16.msra.mxu0 %v486
  %582 = vmatprep.subr.bf16.mxu0 0
  %583 = vmatpush2.bf16.msra.mxu0 %v501
  %584 = vmatprep.subr.bf16.mxu0 0
  %585 = vmatpush2.bf16.msra.mxu0 %v500
  %586 = vmatprep.subr.bf16.mxu0 0
  %587 = vmatpush2.bf16.msra.mxu0 %v499
  %588 = vmatprep.subr.bf16.mxu0 0
  %589 = vmatpush2.bf16.msra.mxu0 %v498
  %590 = vmatprep.subr.bf16.mxu0 0
  %591 = vmatpush2.bf16.msra.mxu0 %v497
  %592 = vmatprep.subr.bf16.mxu0 0
  %593 = vmatpush2.bf16.msra.mxu0 %v496
  %594 = vmatprep.subr.bf16.mxu0 0
  %595 = vmatpush2.bf16.msra.mxu0 %v495
  %596 = vmatprep.subr.bf16.mxu0 0
  %597 = vmatpush2.bf16.msra.mxu0 %v494
  %598 = vmatprep.mubr.bf16.mxu0 %v257
  %599 = vmatmul.mubr.bf16.gmra.mxu0 %v256
  %v600 = vpop.f32.mrf.mxu0
  %v601 = vadd.f32 %v142, %v600
  %v602 = vpop.f32.mrf.mxu0
  %v603 = vpop.f32.mrf.mxu0
  %v604 = vadd.f32 %v142, %v603
  %v605 = vpop.f32.mrf.mxu0
  %606 = vmatprep.mubr.bf16.mxu0 %v262
  %607 = vmatmul.mubr.bf16.gmra.mxu0 %v261
  %v608 = vpop.f32.mrf.mxu0
  %v609 = vadd.f32 %v142, %v608
  %v610 = vpop.f32.mrf.mxu0
  %v611 = vpop.f32.mrf.mxu0
  %v612 = vadd.f32 %v142, %v611
  %v613 = vpop.f32.mrf.mxu0
  %614 = vmatprep.mubr.bf16.mxu0 %v267
  %615 = vmatmul.mubr.bf16.gmra.mxu0 %v266
  %v616 = vpop.f32.mrf.mxu0
  %v617 = vadd.f32 %v142, %v616
  %v618 = vpop.f32.mrf.mxu0
  %v619 = vpop.f32.mrf.mxu0
  %v620 = vadd.f32 %v142, %v619
  %v621 = vpop.f32.mrf.mxu0
  %622 = vmatprep.mubr.bf16.mxu0 %v272
  %623 = vmatmul.mubr.bf16.gmra.mxu0 %v271
  %v624 = vpop.f32.mrf.mxu0
  %v625 = vadd.f32 %v142, %v624
  %v626 = vpop.f32.mrf.mxu0
  %v627 = vpop.f32.mrf.mxu0
  %v628 = vadd.f32 %v142, %v627
  %v629 = vpop.f32.mrf.mxu0
  %630 = vmatprep.mubr.bf16.mxu0 %v277
  %631 = vmatmul.mubr.bf16.gmra.mxu0 %v276
  %v632 = vpop.f32.mrf.mxu0
  %v633 = vadd.f32 %v142, %v632
  %v634 = vpop.f32.mrf.mxu0
  %v635 = vpop.f32.mrf.mxu0
  %v636 = vadd.f32 %v142, %v635
  %v637 = vpop.f32.mrf.mxu0
  %638 = vmatprep.mubr.bf16.mxu0 %v282
  %639 = vmatmul.mubr.bf16.gmra.mxu0 %v281
  %v640 = vpop.f32.mrf.mxu0
  %v641 = vadd.f32 %v142, %v640
  %v642 = vpop.f32.mrf.mxu0
  %v643 = vpop.f32.mrf.mxu0
  %v644 = vadd.f32 %v142, %v643
  %v645 = vpop.f32.mrf.mxu0
  %646 = vmatprep.mubr.bf16.mxu0 %v287
  %647 = vmatmul.mubr.bf16.gmra.mxu0 %v286
  %v648 = vpop.f32.mrf.mxu0
  %v649 = vadd.f32 %v142, %v648
  %v650 = vpop.f32.mrf.mxu0
  %v651 = vpop.f32.mrf.mxu0
  %v652 = vadd.f32 %v142, %v651
  %v653 = vpop.f32.mrf.mxu0
  %654 = vdwg.mxu0
  %655 = vmatprep.subr.bf16.mxu0 0
  %656 = vmatpush1.bf16.msra.mxu0 %v509
  %657 = vmatprep.subr.bf16.mxu0 0
  %658 = vmatpush1.bf16.msra.mxu0 %v508
  %659 = vmatprep.subr.bf16.mxu0 0
  %660 = vmatpush1.bf16.msra.mxu0 %v507
  %661 = vmatprep.subr.bf16.mxu0 0
  %662 = vmatpush1.bf16.msra.mxu0 %v506
  %663 = vmatprep.subr.bf16.mxu0 0
  %664 = vmatpush1.bf16.msra.mxu0 %v505
  %665 = vmatprep.subr.bf16.mxu0 0
  %666 = vmatpush1.bf16.msra.mxu0 %v504
  %667 = vmatprep.subr.bf16.mxu0 0
  %668 = vmatpush1.bf16.msra.mxu0 %v503
  %669 = vmatprep.subr.bf16.mxu0 0
  %670 = vmatpush1.bf16.msra.mxu0 %v502
  %671 = vmatprep.subr.bf16.mxu0 0
  %672 = vmatpush2.bf16.msra.mxu0 %v517
  %673 = vmatprep.subr.bf16.mxu0 0
  %674 = vmatpush2.bf16.msra.mxu0 %v516
  %675 = vmatprep.subr.bf16.mxu0 0
  %676 = vmatpush2.bf16.msra.mxu0 %v515
  %677 = vmatprep.subr.bf16.mxu0 0
  %678 = vmatpush2.bf16.msra.mxu0 %v514
  %679 = vmatprep.subr.bf16.mxu0 0
  %680 = vmatpush2.bf16.msra.mxu0 %v513
  %681 = vmatprep.subr.bf16.mxu0 0
  %682 = vmatpush2.bf16.msra.mxu0 %v512
  %683 = vmatprep.subr.bf16.mxu0 0
  %684 = vmatpush2.bf16.msra.mxu0 %v511
  %685 = vmatprep.subr.bf16.mxu0 0
  %686 = vmatpush2.bf16.msra.mxu0 %v510
  %687 = vmatprep.mubr.bf16.mxu0 %v259
  %688 = vmatmul.mubr.bf16.gmra.mxu0 %v258
  %v689 = vpop.f32.mrf.mxu0
  %v690 = vadd.f32 %v601, %v689
  %v691 = vpop.f32.mrf.mxu0
  %v692 = vpop.f32.mrf.mxu0
  %v693 = vadd.f32 %v604, %v692
  %v694 = vpop.f32.mrf.mxu0
  %695 = vmatprep.mubr.bf16.mxu0 %v264
  %696 = vmatmul.mubr.bf16.gmra.mxu0 %v263
  %v697 = vpop.f32.mrf.mxu0
  %v698 = vadd.f32 %v609, %v697
  %v699 = vpop.f32.mrf.mxu0
  %v700 = vpop.f32.mrf.mxu0
  %v701 = vadd.f32 %v612, %v700
  %v702 = vpop.f32.mrf.mxu0
  %703 = vmatprep.mubr.bf16.mxu0 %v269
  %704 = vmatmul.mubr.bf16.gmra.mxu0 %v268
  %v705 = vpop.f32.mrf.mxu0
  %v706 = vadd.f32 %v617, %v705
  %v707 = vpop.f32.mrf.mxu0
  %v708 = vpop.f32.mrf.mxu0
  %v709 = vadd.f32 %v620, %v708
  %v710 = vpop.f32.mrf.mxu0
  %711 = vmatprep.mubr.bf16.mxu0 %v274
  %712 = vmatmul.mubr.bf16.gmra.mxu0 %v273
  %v713 = vpop.f32.mrf.mxu0
  %v714 = vadd.f32 %v625, %v713
  %v715 = vpop.f32.mrf.mxu0
  %v716 = vpop.f32.mrf.mxu0
  %v717 = vadd.f32 %v628, %v716
  %v718 = vpop.f32.mrf.mxu0
  %719 = vmatprep.mubr.bf16.mxu0 %v279
  %720 = vmatmul.mubr.bf16.gmra.mxu0 %v278
  %v721 = vpop.f32.mrf.mxu0
  %v722 = vadd.f32 %v633, %v721
  %v723 = vpop.f32.mrf.mxu0
  %v724 = vpop.f32.mrf.mxu0
  %v725 = vadd.f32 %v636, %v724
  %v726 = vpop.f32.mrf.mxu0
  %727 = vmatprep.mubr.bf16.mxu0 %v284
  %728 = vmatmul.mubr.bf16.gmra.mxu0 %v283
  %v729 = vpop.f32.mrf.mxu0
  %v730 = vadd.f32 %v641, %v729
  %v731 = vpop.f32.mrf.mxu0
  %v732 = vpop.f32.mrf.mxu0
  %v733 = vadd.f32 %v644, %v732
  %v734 = vpop.f32.mrf.mxu0
  %735 = vmatprep.mubr.bf16.mxu0 %v289
  %736 = vmatmul.mubr.bf16.gmra.mxu0 %v288
  %v737 = vpop.f32.mrf.mxu0
  %v738 = vadd.f32 %v649, %v737
  %v739 = vpop.f32.mrf.mxu0
  %v740 = vpop.f32.mrf.mxu0
  %v741 = vadd.f32 %v652, %v740
  %v742 = vpop.f32.mrf.mxu0
  %743 = vdwg.mxu0
  %744 = vmatprep.subr.bf16.mxu0 0
  %745 = vmatpush1.bf16.msra.mxu0 %v525
  %746 = vmatprep.subr.bf16.mxu0 0
  %747 = vmatpush1.bf16.msra.mxu0 %v524
  %748 = vmatprep.subr.bf16.mxu0 0
  %749 = vmatpush1.bf16.msra.mxu0 %v523
  %750 = vmatprep.subr.bf16.mxu0 0
  %751 = vmatpush1.bf16.msra.mxu0 %v522
  %752 = vmatprep.subr.bf16.mxu0 0
  %753 = vmatpush1.bf16.msra.mxu0 %v521
  %754 = vmatprep.subr.bf16.mxu0 0
  %755 = vmatpush1.bf16.msra.mxu0 %v520
  %756 = vmatprep.subr.bf16.mxu0 0
  %757 = vmatpush1.bf16.msra.mxu0 %v519
  %758 = vmatprep.subr.bf16.mxu0 0
  %759 = vmatpush1.bf16.msra.mxu0 %v518
  %760 = vmatprep.subr.bf16.mxu0 0
  %761 = vmatpush2.bf16.msra.mxu0 0
  %762 = vmatprep.subr.bf16.mxu0 0
  %763 = vmatpush2.bf16.msra.mxu0 0
  %764 = vmatprep.subr.bf16.mxu0 0
  %765 = vmatpush2.bf16.msra.mxu0 0
  %766 = vmatprep.subr.bf16.mxu0 0
  %767 = vmatpush2.bf16.msra.mxu0 0
  %768 = vmatprep.subr.bf16.mxu0 0
  %769 = vmatpush2.bf16.msra.mxu0 0
  %770 = vmatprep.subr.bf16.mxu0 0
  %771 = vmatpush2.bf16.msra.mxu0 0
  %772 = vmatprep.subr.bf16.mxu0 0
  %773 = vmatpush2.bf16.msra.mxu0 0
  %774 = vmatprep.subr.bf16.mxu0 0
  %775 = vmatpush2.bf16.msra.mxu0 0
  %776 = vmatprep.mubr.bf16.mxu0 0
  %777 = vmatmul.mubr.bf16.gmra.mxu0 %v260
  %v778 = vpop.f32.mrf.mxu0
  %v779 = vadd.f32 %v690, %v778
  %v780 = vpop.f32.mrf.mxu0
  %v781 = vpop.f32.mrf.mxu0
  %v782 = vadd.f32 %v693, %v781
  %v783 = vpop.f32.mrf.mxu0
  %784 = vmatprep.mubr.bf16.mxu0 0
  %785 = vmatmul.mubr.bf16.gmra.mxu0 %v265
  %v786 = vpop.f32.mrf.mxu0
  %v787 = vadd.f32 %v698, %v786
  %v788 = vpop.f32.mrf.mxu0
  %v789 = vpop.f32.mrf.mxu0
  %v790 = vadd.f32 %v701, %v789
  %v791 = vpop.f32.mrf.mxu0
  %792 = vmatprep.mubr.bf16.mxu0 0
  %793 = vmatmul.mubr.bf16.gmra.mxu0 %v270
  %v794 = vpop.f32.mrf.mxu0
  %v795 = vadd.f32 %v706, %v794
  %v796 = vpop.f32.mrf.mxu0
  %v797 = vpop.f32.mrf.mxu0
  %v798 = vadd.f32 %v709, %v797
  %v799 = vpop.f32.mrf.mxu0
  %800 = vmatprep.mubr.bf16.mxu0 0
  %801 = vmatmul.mubr.bf16.gmra.mxu0 %v275
  %v802 = vpop.f32.mrf.mxu0
  %v803 = vadd.f32 %v714, %v802
  %v804 = vpop.f32.mrf.mxu0
  %v805 = vpop.f32.mrf.mxu0
  %v806 = vadd.f32 %v717, %v805
  %v807 = vpop.f32.mrf.mxu0
  %808 = vmatprep.mubr.bf16.mxu0 0
  %809 = vmatmul.mubr.bf16.gmra.mxu0 %v280
  %v810 = vpop.f32.mrf.mxu0
  %v811 = vadd.f32 %v722, %v810
  %v812 = vpop.f32.mrf.mxu0
  %v813 = vpop.f32.mrf.mxu0
  %v814 = vadd.f32 %v725, %v813
  %v815 = vpop.f32.mrf.mxu0
  %816 = vmatprep.mubr.bf16.mxu0 0
  %817 = vmatmul.mubr.bf16.gmra.mxu0 %v285
  %v818 = vpop.f32.mrf.mxu0
  %v819 = vadd.f32 %v730, %v818
  %v820 = vpop.f32.mrf.mxu0
  %v821 = vpop.f32.mrf.mxu0
  %v822 = vadd.f32 %v733, %v821
  %v823 = vpop.f32.mrf.mxu0
  %824 = vmatprep.mubr.bf16.mxu0 0
  %825 = vmatmul.mubr.bf16.gmra.mxu0 %v290
  %v826 = vpop.f32.mrf.mxu0
  %v827 = vadd.f32 %v738, %v826
  %v828 = vpop.f32.mrf.mxu0
  %v829 = vpop.f32.mrf.mxu0
  %v830 = vadd.f32 %v741, %v829
  %v831 = vpop.f32.mrf.mxu0
  %832 = vdwg.mxu0
  %v833 = vmax.f32 %v779, 0.0
  %v834 = vmax.f32 %v782, 0.0
  %v835 = vmax.f32 %v787, 0.0
  %v836 = vmax.f32 %v790, 0.0
  %v837 = vmax.f32 %v795, 0.0
  %v838 = vmax.f32 %v798, 0.0
  %v839 = vmax.f32 %v803, 0.0
  %v840 = vmax.f32 %v806, 0.0
  %v841 = vmax.f32 %v811, 0.0
  %v842 = vmax.f32 %v814, 0.0
  %v843 = vmax.f32 %v819, 0.0
  %v844 = vmax.f32 %v822, 0.0
  %v845 = vmax.f32 %v827, 0.0
  %v846 = vmax.f32 %v830, 0.0
  %v847 = vpack.c.bf16 %v834, %v833
  %v848 = vpack.c.bf16 %v836, %v835
  %v849 = vpack.c.bf16 %v838, %v837
  %v850 = vpack.c.bf16 %v840, %v839
  %v851 = vpack.c.bf16 %v842, %v841
  %v852 = vpack.c.bf16 %v844, %v843
  %v853 = vpack.c.bf16 %v846, %v845
  %v861 = vunpack.c.l.b16 %v847
  %v862 = vunpack.c.h.b16 %v847
  %v863 = vunpack.c.l.b16 %v848
  %v864 = vunpack.c.h.b16 %v848
  %v865 = vunpack.c.l.b16 %v849
  %v866 = vunpack.c.h.b16 %v849
  %v867 = vunpack.c.l.b16 %v850
  %v868 = vunpack.c.h.b16 %v850
  %v869 = vunpack.c.l.b16 %v851
  %v870 = vunpack.c.h.b16 %v851
  %v871 = vunpack.c.l.b16 %v852
  %v872 = vunpack.c.h.b16 %v852
  %v873 = vunpack.c.l.b16 %v853
  %v874 = vunpack.c.h.b16 %v853
  %v875 = vpack.c.b16 %v861, %v861
  %v876 = vpack.c.b16 %v862, %v862
  %v877 = vpack.c.b16 %v863, %v863
  %v878 = vpack.c.b16 %v864, %v864
  %v879 = vpack.c.b16 %v865, %v865
  %v880 = vpack.c.b16 %v866, %v866
  %v881 = vpack.c.b16 %v867, %v867
  %v882 = vpack.c.b16 %v868, %v868
  %v883 = vpack.c.b16 %v869, %v869
  %v884 = vpack.c.b16 %v870, %v870
  %v885 = vpack.c.b16 %v871, %v871
  %v886 = vpack.c.b16 %v872, %v872
  %v887 = vpack.c.b16 %v873, %v873
  %v888 = vpack.c.b16 %v874, %v874
  %903 = vst [vmem:[%s3] sm:$0xf] %v875
  %904 = vst [vmem:[%s3 + $0x4] sm:$0xf] %v876
  %905 = vst [vmem:[%s3 + $0x8] sm:$0xf] %v877
  %906 = vst [vmem:[%s3 + $0xc] sm:$0xf] %v878
  %907 = vst [vmem:[%s3 + $0x10] sm:$0xf] %v879
  %908 = vst [vmem:[%s3 + $0x14] sm:$0xf] %v880
  %909 = vst [vmem:[%s3 + $0x18] sm:$0xf] %v881
  %910 = vst [vmem:[%s3 + $0x1c] sm:$0xf] %v882
  %911 = vst [vmem:[%s3 + $0x20] sm:$0xf] %v883
  %912 = vst [vmem:[%s3 + $0x24] sm:$0xf] %v884
  %913 = vst [vmem:[%s3 + $0x28] sm:$0xf] %v885
  %914 = vst [vmem:[%s3 + $0x2c] sm:$0xf] %v886
  %915 = vst [vmem:[%s3 + $0x30] sm:$0xf] %v887
  %916 = vst [vmem:[%s3 + $0x34] sm:$0xf] %v888
  // Predicated region
  $region14: #{forward.7} parent=0 // pred_check
    _
  $region15: #{forward.7} parent=0 // pred_check_branch
    %918 = sbr.rel (0) target = $region17
  $region16: #{forward.7} parent=0 // pred_region
    _
  $region17: #{forward.7} parent=0 // pred_fallthru
    _
  // Predicated region
  $region18: #{forward.7} parent=0 // pred_check
    _
  $region19: #{forward.7} parent=0 // pred_check_branch
    %920 = sbr.rel (0) target = $region21
  $region20: #{forward.7} parent=0 // pred_region
    _
  $region21: #{forward.7} parent=0 // pred_fallthru
    _

// kernel: forward.8
$region0: #{forward.8}
  #allocation0 [shape = 'u32[]', space=smem, size = 0x4, offset = 0x4, fixed_abs, tag = 'smem constant byte address 0x4 - core index']
  #allocation1 [shape = 'u32[144,128]{1,0:T(1,128)}', space=vmem, size = 0x12000, scoped, tag = 'internal scratch']
  %s0 = inlined_call_operand.vmem [shape: bf16[64,512], index: 0, kind: input, shape index: {}]
  %s1 = inlined_call_operand.vmem [shape: bf16[512,128], index: 1, kind: input, shape index: {}]
  %s2 = inlined_call_operand.vmem [shape: f32[1,128], index: 2, kind: input, shape index: {}]
  %s3 = inlined_call_operand.vmem [shape: f32[64,128], index: 3, kind: output, shape index: {}]
  %s4 = sld [smem:[#allocation0]]
  $region22: #{forward.8} parent=0
    _
  %s6 = ssub.s32 1, %s4
  %s7 = scalar_select 0, %s6, %s4
  // Predicated region
  $region2: #{forward.8} parent=0 // pred_check
    _
  $region3: #{forward.8} parent=0 // pred_check_branch
    %9 = sbr.rel (0) target = $region5
  $region4: #{forward.8} parent=0 // pred_region
    _
  $region5: #{forward.8} parent=0 // pred_fallthru
    _
  // Predicated region
  $region6: #{forward.8} parent=0 // pred_check
    _
  $region7: #{forward.8} parent=0 // pred_check_branch
    %11 = sbr.rel (0) target = $region9
  $region8: #{forward.8} parent=0 // pred_region
    _
  $region9: #{forward.8} parent=0 // pred_fallthru
    _
  // Predicated region
  $region10: #{forward.8} parent=0 // pred_check
    _
  $region11: #{forward.8} parent=0 // pred_check_branch
    %13 = sbr.rel (0) target = $region13
  $region12: #{forward.8} parent=0 // pred_region
    _
  $region13: #{forward.8} parent=0 // pred_fallthru
    _
  %v15 = vld [vmem:[%s0] sm:$0xff]
  %v16 = vld [vmem:[%s0 + $0x8] sm:$0xff]
  %v17 = vld [vmem:[%s0 + $0x10] sm:$0xff]
  %v18 = vld [vmem:[%s0 + $0x18] sm:$0xff]
  %v19 = vld [vmem:[%s0 + $0x20] sm:$0xff]
  %v20 = vld [vmem:[%s0 + $0x28] sm:$0xff]
  %v21 = vld [vmem:[%s0 + $0x30] sm:$0xff]
  %v22 = vld [vmem:[%s0 + $0x38] sm:$0xff]
  %v23 = vld [vmem:[%s0 + $0x40] sm:$0xff]
  %v24 = vld [vmem:[%s0 + $0x48] sm:$0xff]
  %v25 = vld [vmem:[%s0 + $0x50] sm:$0xff]
  %v26 = vld [vmem:[%s0 + $0x58] sm:$0xff]
  %v27 = vld [vmem:[%s0 + $0x60] sm:$0xff]
  %v28 = vld [vmem:[%s0 + $0x68] sm:$0xff]
  %v29 = vld [vmem:[%s0 + $0x70] sm:$0xff]
  %v30 = vld [vmem:[%s0 + $0x78] sm:$0xff]
  %v31 = vld [vmem:[%s1] sm:$0xf]
  %v32 = vld [vmem:[%s1 + $0x4] sm:$0xf]
  %v33 = vld [vmem:[%s1 + $0x8] sm:$0xf]
  %v34 = vld [vmem:[%s1 + $0xc] sm:$0xf]
  %v35 = vld [vmem:[%s1 + $0x10] sm:$0xf]
  %v36 = vld [vmem:[%s1 + $0x14] sm:$0xf]
  %v37 = vld [vmem:[%s1 + $0x18] sm:$0xf]
  %v38 = vld [vmem:[%s1 + $0x1c] sm:$0xf]
  %v39 = vld [vmem:[%s1 + $0x20] sm:$0xf]
  %v40 = vld [vmem:[%s1 + $0x24] sm:$0xf]
  %v41 = vld [vmem:[%s1 + $0x28] sm:$0xf]
  %v42 = vld [vmem:[%s1 + $0x2c] sm:$0xf]
  %v43 = vld [vmem:[%s1 + $0x30] sm:$0xf]
  %v44 = vld [vmem:[%s1 + $0x34] sm:$0xf]
  %v45 = vld [vmem:[%s1 + $0x38] sm:$0xf]
  %v46 = vld [vmem:[%s1 + $0x3c] sm:$0xf]
  %v47 = vld [vmem:[%s1 + $0x40] sm:$0xf]
  %v48 = vld [vmem:[%s1 + $0x44] sm:$0xf]
  %v49 = vld [vmem:[%s1 + $0x48] sm:$0xf]
  %v50 = vld [vmem:[%s1 + $0x4c] sm:$0xf]
  %v51 = vld [vmem:[%s1 + $0x50] sm:$0xf]
  %v52 = vld [vmem:[%s1 + $0x54] sm:$0xf]
  %v53 = vld [vmem:[%s1 + $0x58] sm:$0xf]
  %v54 = vld [vmem:[%s1 + $0x5c] sm:$0xf]
  %v55 = vld [vmem:[%s1 + $0x60] sm:$0xf]
  %v56 = vld [vmem:[%s1 + $0x64] sm:$0xf]
  %v57 = vld [vmem:[%s1 + $0x68] sm:$0xf]
  %v58 = vld [vmem:[%s1 + $0x6c] sm:$0xf]
  %v59 = vld [vmem:[%s1 + $0x70] sm:$0xf]
  %v60 = vld [vmem:[%s1 + $0x74] sm:$0xf]
  %v61 = vld [vmem:[%s1 + $0x78] sm:$0xf]
  %v62 = vld [vmem:[%s1 + $0x7c] sm:$0xf]
  %v63 = vld [vmem:[%s1 + $0x80] sm:$0xf]
  %v64 = vld [vmem:[%s1 + $0x84] sm:$0xf]
  %v65 = vld [vmem:[%s1 + $0x88] sm:$0xf]
  %v66 = vld [vmem:[%s1 + $0x8c] sm:$0xf]
  %v67 = vld [vmem:[%s1 + $0x90] sm:$0xf]
  %v68 = vld [vmem:[%s1 + $0x94] sm:$0xf]
  %v69 = vld [vmem:[%s1 + $0x98] sm:$0xf]
  %v70 = vld [vmem:[%s1 + $0x9c] sm:$0xf]
  %v71 = vld [vmem:[%s1 + $0xa0] sm:$0xf]
  %v72 = vld [vmem:[%s1 + $0xa4] sm:$0xf]
  %v73 = vld [vmem:[%s1 + $0xa8] sm:$0xf]
  %v74 = vld [vmem:[%s1 + $0xac] sm:$0xf]
  %v75 = vld [vmem:[%s1 + $0xb0] sm:$0xf]
  %v76 = vld [vmem:[%s1 + $0xb4] sm:$0xf]
  %v77 = vld [vmem:[%s1 + $0xb8] sm:$0xf]
  %v78 = vld [vmem:[%s1 + $0xbc] sm:$0xf]
  %v79 = vld [vmem:[%s1 + $0xc0] sm:$0xf]
  %v80 = vld [vmem:[%s1 + $0xc4] sm:$0xf]
  %v81 = vld [vmem:[%s1 + $0xc8] sm:$0xf]
  %v82 = vld [vmem:[%s1 + $0xcc] sm:$0xf]
  %v83 = vld [vmem:[%s1 + $0xd0] sm:$0xf]
  %v84 = vld [vmem:[%s1 + $0xd4] sm:$0xf]
  %v85 = vld [vmem:[%s1 + $0xd8] sm:$0xf]
  %v86 = vld [vmem:[%s1 + $0xdc] sm:$0xf]
  %v87 = vld [vmem:[%s1 + $0xe0] sm:$0xf]
  %v88 = vld [vmem:[%s1 + $0xe4] sm:$0xf]
  %v89 = vld [vmem:[%s1 + $0xe8] sm:$0xf]
  %v90 = vld [vmem:[%s1 + $0xec] sm:$0xf]
  %v91 = vld [vmem:[%s1 + $0xf0] sm:$0xf]
  %v92 = vld [vmem:[%s1 + $0xf4] sm:$0xf]
  %v93 = vld [vmem:[%s1 + $0xf8] sm:$0xf]
  %v94 = vld [vmem:[%s1 + $0xfc] sm:$0xf]
  %v95 = vld [vmem:[%s2] sm:$0x1]
  %v97 = vlaneseq
  %v98 = vshrl.u32 %v97, 7
  %v99 = vsub.s32 0, %v98
  %v100 = vrot.slane %v95, %v99
  %v118 = vunpack.c.l.b16 %v15
  %v119 = vunpack.c.h.b16 %v15
  %v120 = vunpack.c.l.b16 %v16
  %v121 = vunpack.c.h.b16 %v16
  %v122 = vunpack.c.l.b16 %v17
  %v123 = vunpack.c.h.b16 %v17
  %v124 = vunpack.c.l.b16 %v18
  %v125 = vunpack.c.h.b16 %v18
  %v126 = vunpack.c.l.b16 %v19
  %v127 = vunpack.c.h.b16 %v19
  %v128 = vunpack.c.l.b16 %v20
  %v129 = vunpack.c.h.b16 %v20
  %v130 = vunpack.c.l.b16 %v21
  %v131 = vunpack.c.h.b16 %v21
  %v132 = vunpack.c.l.b16 %v22
  %v133 = vunpack.c.h.b16 %v22
  %v134 = vunpack.c.l.b16 %v23
  %v135 = vunpack.c.h.b16 %v23
  %v136 = vunpack.c.l.b16 %v24
  %v137 = vunpack.c.h.b16 %v24
  %v138 = vunpack.c.l.b16 %v25
  %v139 = vunpack.c.h.b16 %v25
  %v140 = vunpack.c.l.b16 %v26
  %v141 = vunpack.c.h.b16 %v26
  %v142 = vunpack.c.l.b16 %v27
  %v143 = vunpack.c.h.b16 %v27
  %v144 = vunpack.c.l.b16 %v28
  %v145 = vunpack.c.h.b16 %v28
  %v146 = vunpack.c.l.b16 %v29
  %v147 = vunpack.c.h.b16 %v29
  %v148 = vunpack.c.l.b16 %v30
  %v149 = vunpack.c.h.b16 %v30
  %v150 = vpack.c.b16 %v122, %v118
  %v151 = vpack.c.b16 %v123, %v119
  %v152 = vpack.c.b16 %v124, %v120
  %v153 = vpack.c.b16 %v125, %v121
  %v154 = vpack.c.b16 %v130, %v126
  %v155 = vpack.c.b16 %v131, %v127
  %v156 = vpack.c.b16 %v132, %v128
  %v157 = vpack.c.b16 %v133, %v129
  %v158 = vpack.c.b16 %v138, %v134
  %v159 = vpack.c.b16 %v139, %v135
  %v160 = vpack.c.b16 %v140, %v136
  %v161 = vpack.c.b16 %v141, %v137
  %v162 = vpack.c.b16 %v146, %v142
  %v163 = vpack.c.b16 %v147, %v143
  %v164 = vpack.c.b16 %v148, %v144
  %v165 = vpack.c.b16 %v149, %v145
  %v246 = vunpack.c.l.b16 %v31
  %v247 = vunpack.c.l.b16 %v32
  %v248 = vunpack.c.l.b16 %v33
  %v249 = vunpack.c.l.b16 %v34
  %v250 = vunpack.c.l.b16 %v35
  %v251 = vunpack.c.l.b16 %v36
  %v252 = vunpack.c.l.b16 %v37
  %v253 = vunpack.c.l.b16 %v38
  %v254 = vunpack.c.l.b16 %v39
  %v255 = vunpack.c.l.b16 %v40
  %v256 = vunpack.c.l.b16 %v41
  %v257 = vunpack.c.l.b16 %v42
  %v258 = vunpack.c.l.b16 %v43
  %v259 = vunpack.c.l.b16 %v44
  %v260 = vunpack.c.l.b16 %v45
  %v261 = vunpack.c.l.b16 %v46
  %v262 = vunpack.c.l.b16 %v47
  %v263 = vunpack.c.l.b16 %v48
  %v264 = vunpack.c.l.b16 %v49
  %v265 = vunpack.c.l.b16 %v50
  %v266 = vunpack.c.l.b16 %v51
  %v267 = vunpack.c.l.b16 %v52
  %v268 = vunpack.c.l.b16 %v53
  %v269 = vunpack.c.l.b16 %v54
  %v270 = vunpack.c.l.b16 %v55
  %v271 = vunpack.c.l.b16 %v56
  %v272 = vunpack.c.l.b16 %v57
  %v273 = vunpack.c.l.b16 %v58
  %v274 = vunpack.c.l.b16 %v59
  %v275 = vunpack.c.l.b16 %v60
  %v276 = vunpack.c.l.b16 %v61
  %v277 = vunpack.c.l.b16 %v62
  %v278 = vunpack.c.l.b16 %v63
  %v279 = vunpack.c.l.b16 %v64
  %v280 = vunpack.c.l.b16 %v65
  %v281 = vunpack.c.l.b16 %v66
  %v282 = vunpack.c.l.b16 %v67
  %v283 = vunpack.c.l.b16 %v68
  %v284 = vunpack.c.l.b16 %v69
  %v285 = vunpack.c.l.b16 %v70
  %v286 = vunpack.c.l.b16 %v71
  %v287 = vunpack.c.l.b16 %v72
  %v288 = vunpack.c.l.b16 %v73
  %v289 = vunpack.c.l.b16 %v74
  %v290 = vunpack.c.l.b16 %v75
  %v291 = vunpack.c.l.b16 %v76
  %v292 = vunpack.c.l.b16 %v77
  %v293 = vunpack.c.l.b16 %v78
  %v294 = vunpack.c.l.b16 %v79
  %v295 = vunpack.c.l.b16 %v80
  %v296 = vunpack.c.l.b16 %v81
  %v297 = vunpack.c.l.b16 %v82
  %v298 = vunpack.c.l.b16 %v83
  %v299 = vunpack.c.l.b16 %v84
  %v300 = vunpack.c.l.b16 %v85
  %v301 = vunpack.c.l.b16 %v86
  %v302 = vunpack.c.l.b16 %v87
  %v303 = vunpack.c.l.b16 %v88
  %v304 = vunpack.c.l.b16 %v89
  %v305 = vunpack.c.l.b16 %v90
  %v306 = vunpack.c.l.b16 %v91
  %v307 = vunpack.c.l.b16 %v92
  %v308 = vunpack.c.l.b16 %v93
  %v309 = vunpack.c.l.b16 %v94
  %v310 = vpack.c.b16 %v247, %v246
  %v311 = vpack.c.b16 %v249, %v248
  %v312 = vpack.c.b16 %v251, %v250
  %v313 = vpack.c.b16 %v253, %v252
  %v314 = vpack.c.b16 %v255, %v254
  %v315 = vpack.c.b16 %v257, %v256
  %v316 = vpack.c.b16 %v259, %v258
  %v317 = vpack.c.b16 %v261, %v260
  %v318 = vpack.c.b16 %v263, %v262
  %v319 = vpack.c.b16 %v265, %v264
  %v320 = vpack.c.b16 %v267, %v266
  %v321 = vpack.c.b16 %v269, %v268
  %v322 = vpack.c.b16 %v271, %v270
  %v323 = vpack.c.b16 %v273, %v272
  %v324 = vpack.c.b16 %v275, %v274
  %v325 = vpack.c.b16 %v277, %v276
  %v326 = vpack.c.b16 %v279, %v278
  %v327 = vpack.c.b16 %v281, %v280
  %v328 = vpack.c.b16 %v283, %v282
  %v329 = vpack.c.b16 %v285, %v284
  %v330 = vpack.c.b16 %v287, %v286
  %v331 = vpack.c.b16 %v289, %v288
  %v332 = vpack.c.b16 %v291, %v290
  %v333 = vpack.c.b16 %v293, %v292
  %v334 = vpack.c.b16 %v295, %v294
  %v335 = vpack.c.b16 %v297, %v296
  %v336 = vpack.c.b16 %v299, %v298
  %v337 = vpack.c.b16 %v301, %v300
  %v338 = vpack.c.b16 %v303, %v302
  %v339 = vpack.c.b16 %v305, %v304
  %v340 = vpack.c.b16 %v307, %v306
  %v341 = vpack.c.b16 %v309, %v308
  %374 = vmatprep.subr.bf16.mxu0 0
  %375 = vmatpush1.bf16.msra.mxu0 %v317
  %376 = vmatprep.subr.bf16.mxu0 0
  %377 = vmatpush1.bf16.msra.mxu0 %v316
  %378 = vmatprep.subr.bf16.mxu0 0
  %379 = vmatpush1.bf16.msra.mxu0 %v315
  %380 = vmatprep.subr.bf16.mxu0 0
  %381 = vmatpush1.bf16.msra.mxu0 %v314
  %382 = vmatprep.subr.bf16.mxu0 0
  %383 = vmatpush1.bf16.msra.mxu0 %v313
  %384 = vmatprep.subr.bf16.mxu0 0
  %385 = vmatpush1.bf16.msra.mxu0 %v312
  %386 = vmatprep.subr.bf16.mxu0 0
  %387 = vmatpush1.bf16.msra.mxu0 %v311
  %388 = vmatprep.subr.bf16.mxu0 0
  %389 = vmatpush1.bf16.msra.mxu0 %v310
  %390 = vmatprep.subr.bf16.mxu0 0
  %391 = vmatpush2.bf16.msra.mxu0 %v325
  %392 = vmatprep.subr.bf16.mxu0 0
  %393 = vmatpush2.bf16.msra.mxu0 %v324
  %394 = vmatprep.subr.bf16.mxu0 0
  %395 = vmatpush2.bf16.msra.mxu0 %v323
  %396 = vmatprep.subr.bf16.mxu0 0
  %397 = vmatpush2.bf16.msra.mxu0 %v322
  %398 = vmatprep.subr.bf16.mxu0 0
  %399 = vmatpush2.bf16.msra.mxu0 %v321
  %400 = vmatprep.subr.bf16.mxu0 0
  %401 = vmatpush2.bf16.msra.mxu0 %v320
  %402 = vmatprep.subr.bf16.mxu0 0
  %403 = vmatpush2.bf16.msra.mxu0 %v319
  %404 = vmatprep.subr.bf16.mxu0 0
  %405 = vmatpush2.bf16.msra.mxu0 %v318
  %406 = vmatprep.mubr.bf16.mxu0 %v151
  %407 = vmatmul.mubr.bf16.gmra.mxu0 %v150
  %v408 = vpop.f32.mrf.mxu0
  %v409 = vadd.f32 %v100, %v408
  %v410 = vpop.f32.mrf.mxu0
  %v411 = vpop.f32.mrf.mxu0
  %v412 = vadd.f32 %v100, %v411
  %v413 = vpop.f32.mrf.mxu0
  %414 = vmatprep.mubr.bf16.mxu0 %v155
  %415 = vmatmul.mubr.bf16.gmra.mxu0 %v154
  %v416 = vpop.f32.mrf.mxu0
  %v417 = vadd.f32 %v100, %v416
  %v418 = vpop.f32.mrf.mxu0
  %v419 = vpop.f32.mrf.mxu0
  %v420 = vadd.f32 %v100, %v419
  %v421 = vpop.f32.mrf.mxu0
  %422 = vmatprep.mubr.bf16.mxu0 %v159
  %423 = vmatmul.mubr.bf16.gmra.mxu0 %v158
  %v424 = vpop.f32.mrf.mxu0
  %v425 = vadd.f32 %v100, %v424
  %v426 = vpop.f32.mrf.mxu0
  %v427 = vpop.f32.mrf.mxu0
  %v428 = vadd.f32 %v100, %v427
  %v429 = vpop.f32.mrf.mxu0
  %430 = vmatprep.mubr.bf16.mxu0 %v163
  %431 = vmatmul.mubr.bf16.gmra.mxu0 %v162
  %v432 = vpop.f32.mrf.mxu0
  %v433 = vadd.f32 %v100, %v432
  %v434 = vpop.f32.mrf.mxu0
  %v435 = vpop.f32.mrf.mxu0
  %v436 = vadd.f32 %v100, %v435
  %v437 = vpop.f32.mrf.mxu0
  %438 = vdwg.mxu0
  %439 = vmatprep.subr.bf16.mxu0 0
  %440 = vmatpush1.bf16.msra.mxu0 %v333
  %441 = vmatprep.subr.bf16.mxu0 0
  %442 = vmatpush1.bf16.msra.mxu0 %v332
  %443 = vmatprep.subr.bf16.mxu0 0
  %444 = vmatpush1.bf16.msra.mxu0 %v331
  %445 = vmatprep.subr.bf16.mxu0 0
  %446 = vmatpush1.bf16.msra.mxu0 %v330
  %447 = vmatprep.subr.bf16.mxu0 0
  %448 = vmatpush1.bf16.msra.mxu0 %v329
  %449 = vmatprep.subr.bf16.mxu0 0
  %450 = vmatpush1.bf16.msra.mxu0 %v328
  %451 = vmatprep.subr.bf16.mxu0 0
  %452 = vmatpush1.bf16.msra.mxu0 %v327
  %453 = vmatprep.subr.bf16.mxu0 0
  %454 = vmatpush1.bf16.msra.mxu0 %v326
  %455 = vmatprep.subr.bf16.mxu0 0
  %456 = vmatpush2.bf16.msra.mxu0 %v341
  %457 = vmatprep.subr.bf16.mxu0 0
  %458 = vmatpush2.bf16.msra.mxu0 %v340
  %459 = vmatprep.subr.bf16.mxu0 0
  %460 = vmatpush2.bf16.msra.mxu0 %v339
  %461 = vmatprep.subr.bf16.mxu0 0
  %462 = vmatpush2.bf16.msra.mxu0 %v338
  %463 = vmatprep.subr.bf16.mxu0 0
  %464 = vmatpush2.bf16.msra.mxu0 %v337
  %465 = vmatprep.subr.bf16.mxu0 0
  %466 = vmatpush2.bf16.msra.mxu0 %v336
  %467 = vmatprep.subr.bf16.mxu0 0
  %468 = vmatpush2.bf16.msra.mxu0 %v335
  %469 = vmatprep.subr.bf16.mxu0 0
  %470 = vmatpush2.bf16.msra.mxu0 %v334
  %471 = vmatprep.mubr.bf16.mxu0 %v153
  %472 = vmatmul.mubr.bf16.gmra.mxu0 %v152
  %v473 = vpop.f32.mrf.mxu0
  %v474 = vadd.f32 %v409, %v473
  %v475 = vpop.f32.mrf.mxu0
  %v476 = vpop.f32.mrf.mxu0
  %v477 = vadd.f32 %v412, %v476
  %v478 = vpop.f32.mrf.mxu0
  %479 = vmatprep.mubr.bf16.mxu0 %v157
  %480 = vmatmul.mubr.bf16.gmra.mxu0 %v156
  %v481 = vpop.f32.mrf.mxu0
  %v482 = vadd.f32 %v417, %v481
  %v483 = vpop.f32.mrf.mxu0
  %v484 = vpop.f32.mrf.mxu0
  %v485 = vadd.f32 %v420, %v484
  %v486 = vpop.f32.mrf.mxu0
  %487 = vmatprep.mubr.bf16.mxu0 %v161
  %488 = vmatmul.mubr.bf16.gmra.mxu0 %v160
  %v489 = vpop.f32.mrf.mxu0
  %v490 = vadd.f32 %v425, %v489
  %v491 = vpop.f32.mrf.mxu0
  %v492 = vpop.f32.mrf.mxu0
  %v493 = vadd.f32 %v428, %v492
  %v494 = vpop.f32.mrf.mxu0
  %495 = vmatprep.mubr.bf16.mxu0 %v165
  %496 = vmatmul.mubr.bf16.gmra.mxu0 %v164
  %v497 = vpop.f32.mrf.mxu0
  %v498 = vadd.f32 %v433, %v497
  %v499 = vpop.f32.mrf.mxu0
  %v500 = vpop.f32.mrf.mxu0
  %v501 = vadd.f32 %v436, %v500
  %v502 = vpop.f32.mrf.mxu0
  %503 = vdwg.mxu0
  %v504 = vmax.f32 %v474, 0.0
  %v505 = vmax.f32 %v477, 0.0
  %v506 = vmax.f32 %v482, 0.0
  %v507 = vmax.f32 %v485, 0.0
  %v508 = vmax.f32 %v490, 0.0
  %v509 = vmax.f32 %v493, 0.0
  %v510 = vmax.f32 %v498, 0.0
  %v511 = vmax.f32 %v501, 0.0
  %512 = vst [vmem:[%s3] sm:$0xff] %v504
  %513 = vst [vmem:[%s3 + $0x8] sm:$0xff] %v505
  %514 = vst [vmem:[%s3 + $0x10] sm:$0xff] %v506
  %515 = vst [vmem:[%s3 + $0x18] sm:$0xff] %v507
  %516 = vst [vmem:[%s3 + $0x20] sm:$0xff] %v508
  %517 = vst [vmem:[%s3 + $0x28] sm:$0xff] %v509
  %518 = vst [vmem:[%s3 + $0x30] sm:$0xff] %v510
  %519 = vst [vmem:[%s3 + $0x38] sm:$0xff] %v511
  // Predicated region
  $region14: #{forward.8} parent=0 // pred_check
    _
  $region15: #{forward.8} parent=0 // pred_check_branch
    %521 = sbr.rel (0) target = $region17
  $region16: #{forward.8} parent=0 // pred_region
    _
  $region17: #{forward.8} parent=0 // pred_fallthru
    _
  // Predicated region
  $region18: #{forward.8} parent=0 // pred_check
    _
  $region19: #{forward.8} parent=0 // pred_check_branch
    %523 = sbr.rel (0) target = $region21
  $region20: #{forward.8} parent=0 // pred_region
    _
  $region21: #{forward.8} parent=0 // pred_fallthru
    _

// kernel: forward.9
$region0: #{forward.9}
  #allocation0 [shape = 'u32[]', space=smem, size = 0x4, offset = 0x4, fixed_abs, tag = 'smem constant byte address 0x4 - core index']
  #allocation1 [shape = 'u32[144,128]{1,0:T(1,128)}', space=vmem, size = 0x12000, scoped, tag = 'internal scratch']
  %s0 = inlined_call_operand.vmem [shape: bf16[64,640], index: 0, kind: input, shape index: {}]
  %s1 = inlined_call_operand.vmem [shape: bf16[640,128], index: 1, kind: input, shape index: {}]
  %s2 = inlined_call_operand.vmem [shape: f32[1,128], index: 2, kind: input, shape index: {}]
  %s3 = inlined_call_operand.vmem [shape: bf16[64,128], index: 3, kind: output, shape index: {}]
  %s4 = sld [smem:[#allocation0]]
  $region22: #{forward.9} parent=0
    _
  %s6 = ssub.s32 1, %s4
  %s7 = scalar_select 0, %s6, %s4
  // Predicated region
  $region2: #{forward.9} parent=0 // pred_check
    _
  $region3: #{forward.9} parent=0 // pred_check_branch
    %9 = sbr.rel (0) target = $region5
  $region4: #{forward.9} parent=0 // pred_region
    _
  $region5: #{forward.9} parent=0 // pred_fallthru
    _
  // Predicated region
  $region6: #{forward.9} parent=0 // pred_check
    _
  $region7: #{forward.9} parent=0 // pred_check_branch
    %11 = sbr.rel (0) target = $region9
  $region8: #{forward.9} parent=0 // pred_region
    _
  $region9: #{forward.9} parent=0 // pred_fallthru
    _
  // Predicated region
  $region10: #{forward.9} parent=0 // pred_check
    _
  $region11: #{forward.9} parent=0 // pred_check_branch
    %13 = sbr.rel (0) target = $region13
  $region12: #{forward.9} parent=0 // pred_region
    _
  $region13: #{forward.9} parent=0 // pred_fallthru
    _
  %v15 = vld [vmem:[%s0] sm:$0xff]
  %v16 = vld [vmem:[%s0 + $0x8] sm:$0xff]
  %v17 = vld [vmem:[%s0 + $0x10] sm:$0xf]
  %v18 = vld [vmem:[%s0 + $0x14] sm:$0xff]
  %v19 = vld [vmem:[%s0 + $0x1c] sm:$0xff]
  %v20 = vld [vmem:[%s0 + $0x24] sm:$0xf]
  %v21 = vld [vmem:[%s0 + $0x28] sm:$0xff]
  %v22 = vld [vmem:[%s0 + $0x30] sm:$0xff]
  %v23 = vld [vmem:[%s0 + $0x38] sm:$0xf]
  %v24 = vld [vmem:[%s0 + $0x3c] sm:$0xff]
  %v25 = vld [vmem:[%s0 + $0x44] sm:$0xff]
  %v26 = vld [vmem:[%s0 + $0x4c] sm:$0xf]
  %v27 = vld [vmem:[%s0 + $0x50] sm:$0xff]
  %v28 = vld [vmem:[%s0 + $0x58] sm:$0xff]
  %v29 = vld [vmem:[%s0 + $0x60] sm:$0xf]
  %v30 = vld [vmem:[%s0 + $0x64] sm:$0xff]
  %v31 = vld [vmem:[%s0 + $0x6c] sm:$0xff]
  %v32 = vld [vmem:[%s0 + $0x74] sm:$0xf]
  %v33 = vld [vmem:[%s0 + $0x78] sm:$0xff]
  %v34 = vld [vmem:[%s0 + $0x80] sm:$0xff]
  %v35 = vld [vmem:[%s0 + $0x88] sm:$0xf]
  %v36 = vld [vmem:[%s0 + $0x8c] sm:$0xff]
  %v37 = vld [vmem:[%s0 + $0x94] sm:$0xff]
  %v38 = vld [vmem:[%s0 + $0x9c] sm:$0xf]
  %v39 = vld [vmem:[%s1] sm:$0xf]
  %v40 = vld [vmem:[%s1 + $0x4] sm:$0xf]
  %v41 = vld [vmem:[%s1 + $0x8] sm:$0xf]
  %v42 = vld [vmem:[%s1 + $0xc] sm:$0xf]
  %v43 = vld [vmem:[%s1 + $0x10] sm:$0xf]
  %v44 = vld [vmem:[%s1 + $0x14] sm:$0xf]
  %v45 = vld [vmem:[%s1 + $0x18] sm:$0xf]
  %v46 = vld [vmem:[%s1 + $0x1c] sm:$0xf]
  %v47 = vld [vmem:[%s1 + $0x20] sm:$0xf]
  %v48 = vld [vmem:[%s1 + $0x24] sm:$0xf]
  %v49 = vld [vmem:[%s1 + $0x28] sm:$0xf]
  %v50 = vld [vmem:[%s1 + $0x2c] sm:$0xf]
  %v51 = vld [vmem:[%s1 + $0x30] sm:$0xf]
  %v52 = vld [vmem:[%s1 + $0x34] sm:$0xf]
  %v53 = vld [vmem:[%s1 + $0x38] sm:$0xf]
  %v54 = vld [vmem:[%s1 + $0x3c] sm:$0xf]
  %v55 = vld [vmem:[%s1 + $0x40] sm:$0xf]
  %v56 = vld [vmem:[%s1 + $0x44] sm:$0xf]
  %v57 = vld [vmem:[%s1 + $0x48] sm:$0xf]
  %v58 = vld [vmem:[%s1 + $0x4c] sm:$0xf]
  %v59 = vld [vmem:[%s1 + $0x50] sm:$0xf]
  %v60 = vld [vmem:[%s1 + $0x54] sm:$0xf]
  %v61 = vld [vmem:[%s1 + $0x58] sm:$0xf]
  %v62 = vld [vmem:[%s1 + $0x5c] sm:$0xf]
  %v63 = vld [vmem:[%s1 + $0x60] sm:$0xf]
  %v64 = vld [vmem:[%s1 + $0x64] sm:$0xf]
  %v65 = vld [vmem:[%s1 + $0x68] sm:$0xf]
  %v66 = vld [vmem:[%s1 + $0x6c] sm:$0xf]
  %v67 = vld [vmem:[%s1 + $0x70] sm:$0xf]
  %v68 = vld [vmem:[%s1 + $0x74] sm:$0xf]
  %v69 = vld [vmem:[%s1 + $0x78] sm:$0xf]
  %v70 = vld [vmem:[%s1 + $0x7c] sm:$0xf]
  %v71 = vld [vmem:[%s1 + $0x80] sm:$0xf]
  %v72 = vld [vmem:[%s1 + $0x84] sm:$0xf]
  %v73 = vld [vmem:[%s1 + $0x88] sm:$0xf]
  %v74 = vld [vmem:[%s1 + $0x8c] sm:$0xf]
  %v75 = vld [vmem:[%s1 + $0x90] sm:$0xf]
  %v76 = vld [vmem:[%s1 + $0x94] sm:$0xf]
  %v77 = vld [vmem:[%s1 + $0x98] sm:$0xf]
  %v78 = vld [vmem:[%s1 + $0x9c] sm:$0xf]
  %v79 = vld [vmem:[%s1 + $0xa0] sm:$0xf]
  %v80 = vld [vmem:[%s1 + $0xa4] sm:$0xf]
  %v81 = vld [vmem:[%s1 + $0xa8] sm:$0xf]
  %v82 = vld [vmem:[%s1 + $0xac] sm:$0xf]
  %v83 = vld [vmem:[%s1 + $0xb0] sm:$0xf]
  %v84 = vld [vmem:[%s1 + $0xb4] sm:$0xf]
  %v85 = vld [vmem:[%s1 + $0xb8] sm:$0xf]
  %v86 = vld [vmem:[%s1 + $0xbc] sm:$0xf]
  %v87 = vld [vmem:[%s1 + $0xc0] sm:$0xf]
  %v88 = vld [vmem:[%s1 + $0xc4] sm:$0xf]
  %v89 = vld [vmem:[%s1 + $0xc8] sm:$0xf]
  %v90 = vld [vmem:[%s1 + $0xcc] sm:$0xf]
  %v91 = vld [vmem:[%s1 + $0xd0] sm:$0xf]
  %v92 = vld [vmem:[%s1 + $0xd4] sm:$0xf]
  %v93 = vld [vmem:[%s1 + $0xd8] sm:$0xf]
  %v94 = vld [vmem:[%s1 + $0xdc] sm:$0xf]
  %v95 = vld [vmem:[%s1 + $0xe0] sm:$0xf]
  %v96 = vld [vmem:[%s1 + $0xe4] sm:$0xf]
  %v97 = vld [vmem:[%s1 + $0xe8] sm:$0xf]
  %v98 = vld [vmem:[%s1 + $0xec] sm:$0xf]
  %v99 = vld [vmem:[%s1 + $0xf0] sm:$0xf]
  %v100 = vld [vmem:[%s1 + $0xf4] sm:$0xf]
  %v101 = vld [vmem:[%s1 + $0xf8] sm:$0xf]
  %v102 = vld [vmem:[%s1 + $0xfc] sm:$0xf]
  %v103 = vld [vmem:[%s1 + $0x100] sm:$0xf]
  %v104 = vld [vmem:[%s1 + $0x104] sm:$0xf]
  %v105 = vld [vmem:[%s1 + $0x108] sm:$0xf]
  %v106 = vld [vmem:[%s1 + $0x10c] sm:$0xf]
  %v107 = vld [vmem:[%s1 + $0x110] sm:$0xf]
  %v108 = vld [vmem:[%s1 + $0x114] sm:$0xf]
  %v109 = vld [vmem:[%s1 + $0x118] sm:$0xf]
  %v110 = vld [vmem:[%s1 + $0x11c] sm:$0xf]
  %v111 = vld [vmem:[%s1 + $0x120] sm:$0xf]
  %v112 = vld [vmem:[%s1 + $0x124] sm:$0xf]
  %v113 = vld [vmem:[%s1 + $0x128] sm:$0xf]
  %v114 = vld [vmem:[%s1 + $0x12c] sm:$0xf]
  %v115 = vld [vmem:[%s1 + $0x130] sm:$0xf]
  %v116 = vld [vmem:[%s1 + $0x134] sm:$0xf]
  %v117 = vld [vmem:[%s1 + $0x138] sm:$0xf]
  %v118 = vld [vmem:[%s1 + $0x13c] sm:$0xf]
  %v119 = vld [vmem:[%s2] sm:$0x1]
  %v121 = vlaneseq
  %v122 = vshrl.u32 %v121, 7
  %v123 = vsub.s32 0, %v122
  %v124 = vrot.slane %v119, %v123
  %v150 = vunpack.c.l.b16 %v15
  %v151 = vunpack.c.h.b16 %v15
  %v152 = vunpack.c.l.b16 %v16
  %v153 = vunpack.c.h.b16 %v16
  %v154 = vunpack.c.l.b16 %v17
  %v155 = vunpack.c.l.b16 %v18
  %v156 = vunpack.c.h.b16 %v18
  %v157 = vunpack.c.l.b16 %v19
  %v158 = vunpack.c.h.b16 %v19
  %v159 = vunpack.c.l.b16 %v20
  %v160 = vunpack.c.l.b16 %v21
  %v161 = vunpack.c.h.b16 %v21
  %v162 = vunpack.c.l.b16 %v22
  %v163 = vunpack.c.h.b16 %v22
  %v164 = vunpack.c.l.b16 %v23
  %v165 = vunpack.c.l.b16 %v24
  %v166 = vunpack.c.h.b16 %v24
  %v167 = vunpack.c.l.b16 %v25
  %v168 = vunpack.c.h.b16 %v25
  %v169 = vunpack.c.l.b16 %v26
  %v170 = vunpack.c.l.b16 %v27
  %v171 = vunpack.c.h.b16 %v27
  %v172 = vunpack.c.l.b16 %v28
  %v173 = vunpack.c.h.b16 %v28
  %v174 = vunpack.c.l.b16 %v29
  %v175 = vunpack.c.l.b16 %v30
  %v176 = vunpack.c.h.b16 %v30
  %v177 = vunpack.c.l.b16 %v31
  %v178 = vunpack.c.h.b16 %v31
  %v179 = vunpack.c.l.b16 %v32
  %v180 = vunpack.c.l.b16 %v33
  %v181 = vunpack.c.h.b16 %v33
  %v182 = vunpack.c.l.b16 %v34
  %v183 = vunpack.c.h.b16 %v34
  %v184 = vunpack.c.l.b16 %v35
  %v185 = vunpack.c.l.b16 %v36
  %v186 = vunpack.c.h.b16 %v36
  %v187 = vunpack.c.l.b16 %v37
  %v188 = vunpack.c.h.b16 %v37
  %v189 = vunpack.c.l.b16 %v38
  %v190 = vpack.c.b16 %v155, %v150
  %v191 = vpack.c.b16 %v156, %v151
  %v192 = vpack.c.b16 %v157, %v152
  %v193 = vpack.c.b16 %v158, %v153
  %v194 = vpack.c.b16 %v159, %v154
  %v195 = vpack.c.b16 %v165, %v160
  %v196 = vpack.c.b16 %v166, %v161
  %v197 = vpack.c.b16 %v167, %v162
  %v198 = vpack.c.b16 %v168, %v163
  %v199 = vpack.c.b16 %v169, %v164
  %v200 = vpack.c.b16 %v175, %v170
  %v201 = vpack.c.b16 %v176, %v171
  %v202 = vpack.c.b16 %v177, %v172
  %v203 = vpack.c.b16 %v178, %v173
  %v204 = vpack.c.b16 %v179, %v174
  %v205 = vpack.c.b16 %v185, %v180
  %v206 = vpack.c.b16 %v186, %v181
  %v207 = vpack.c.b16 %v187, %v182
  %v208 = vpack.c.b16 %v188, %v183
  %v209 = vpack.c.b16 %v189, %v184
  %v310 = vunpack.c.l.b16 %v39
  %v311 = vunpack.c.l.b16 %v40
  %v312 = vunpack.c.l.b16 %v41
  %v313 = vunpack.c.l.b16 %v42
  %v314 = vunpack.c.l.b16 %v43
  %v315 = vunpack.c.l.b16 %v44
  %v316 = vunpack.c.l.b16 %v45
  %v317 = vunpack.c.l.b16 %v46
  %v318 = vunpack.c.l.b16 %v47
  %v319 = vunpack.c.l.b16 %v48
  %v320 = vunpack.c.l.b16 %v49
  %v321 = vunpack.c.l.b16 %v50
  %v322 = vunpack.c.l.b16 %v51
  %v323 = vunpack.c.l.b16 %v52
  %v324 = vunpack.c.l.b16 %v53
  %v325 = vunpack.c.l.b16 %v54
  %v326 = vunpack.c.l.b16 %v55
  %v327 = vunpack.c.l.b16 %v56
  %v328 = vunpack.c.l.b16 %v57
  %v329 = vunpack.c.l.b16 %v58
  %v330 = vunpack.c.l.b16 %v59
  %v331 = vunpack.c.l.b16 %v60
  %v332 = vunpack.c.l.b16 %v61
  %v333 = vunpack.c.l.b16 %v62
  %v334 = vunpack.c.l.b16 %v63
  %v335 = vunpack.c.l.b16 %v64
  %v336 = vunpack.c.l.b16 %v65
  %v337 = vunpack.c.l.b16 %v66
  %v338 = vunpack.c.l.b16 %v67
  %v339 = vunpack.c.l.b16 %v68
  %v340 = vunpack.c.l.b16 %v69
  %v341 = vunpack.c.l.b16 %v70
  %v342 = vunpack.c.l.b16 %v71
  %v343 = vunpack.c.l.b16 %v72
  %v344 = vunpack.c.l.b16 %v73
  %v345 = vunpack.c.l.b16 %v74
  %v346 = vunpack.c.l.b16 %v75
  %v347 = vunpack.c.l.b16 %v76
  %v348 = vunpack.c.l.b16 %v77
  %v349 = vunpack.c.l.b16 %v78
  %v350 = vunpack.c.l.b16 %v79
  %v351 = vunpack.c.l.b16 %v80
  %v352 = vunpack.c.l.b16 %v81
  %v353 = vunpack.c.l.b16 %v82
  %v354 = vunpack.c.l.b16 %v83
  %v355 = vunpack.c.l.b16 %v84
  %v356 = vunpack.c.l.b16 %v85
  %v357 = vunpack.c.l.b16 %v86
  %v358 = vunpack.c.l.b16 %v87
  %v359 = vunpack.c.l.b16 %v88
  %v360 = vunpack.c.l.b16 %v89
  %v361 = vunpack.c.l.b16 %v90
  %v362 = vunpack.c.l.b16 %v91
  %v363 = vunpack.c.l.b16 %v92
  %v364 = vunpack.c.l.b16 %v93
  %v365 = vunpack.c.l.b16 %v94
  %v366 = vunpack.c.l.b16 %v95
  %v367 = vunpack.c.l.b16 %v96
  %v368 = vunpack.c.l.b16 %v97
  %v369 = vunpack.c.l.b16 %v98
  %v370 = vunpack.c.l.b16 %v99
  %v371 = vunpack.c.l.b16 %v100
  %v372 = vunpack.c.l.b16 %v101
  %v373 = vunpack.c.l.b16 %v102
  %v374 = vunpack.c.l.b16 %v103
  %v375 = vunpack.c.l.b16 %v104
  %v376 = vunpack.c.l.b16 %v105
  %v377 = vunpack.c.l.b16 %v106
  %v378 = vunpack.c.l.b16 %v107
  %v379 = vunpack.c.l.b16 %v108
  %v380 = vunpack.c.l.b16 %v109
  %v381 = vunpack.c.l.b16 %v110
  %v382 = vunpack.c.l.b16 %v111
  %v383 = vunpack.c.l.b16 %v112
  %v384 = vunpack.c.l.b16 %v113
  %v385 = vunpack.c.l.b16 %v114
  %v386 = vunpack.c.l.b16 %v115
  %v387 = vunpack.c.l.b16 %v116
  %v388 = vunpack.c.l.b16 %v117
  %v389 = vunpack.c.l.b16 %v118
  %v390 = vpack.c.b16 %v311, %v310
  %v391 = vpack.c.b16 %v313, %v312
  %v392 = vpack.c.b16 %v315, %v314
  %v393 = vpack.c.b16 %v317, %v316
  %v394 = vpack.c.b16 %v319, %v318
  %v395 = vpack.c.b16 %v321, %v320
  %v396 = vpack.c.b16 %v323, %v322
  %v397 = vpack.c.b16 %v325, %v324
  %v398 = vpack.c.b16 %v327, %v326
  %v399 = vpack.c.b16 %v329, %v328
  %v400 = vpack.c.b16 %v331, %v330
  %v401 = vpack.c.b16 %v333, %v332
  %v402 = vpack.c.b16 %v335, %v334
  %v403 = vpack.c.b16 %v337, %v336
  %v404 = vpack.c.b16 %v339, %v338
  %v405 = vpack.c.b16 %v341, %v340
  %v406 = vpack.c.b16 %v343, %v342
  %v407 = vpack.c.b16 %v345, %v344
  %v408 = vpack.c.b16 %v347, %v346
  %v409 = vpack.c.b16 %v349, %v348
  %v410 = vpack.c.b16 %v351, %v350
  %v411 = vpack.c.b16 %v353, %v352
  %v412 = vpack.c.b16 %v355, %v354
  %v413 = vpack.c.b16 %v357, %v356
  %v414 = vpack.c.b16 %v359, %v358
  %v415 = vpack.c.b16 %v361, %v360
  %v416 = vpack.c.b16 %v363, %v362
  %v417 = vpack.c.b16 %v365, %v364
  %v418 = vpack.c.b16 %v367, %v366
  %v419 = vpack.c.b16 %v369, %v368
  %v420 = vpack.c.b16 %v371, %v370
  %v421 = vpack.c.b16 %v373, %v372
  %v422 = vpack.c.b16 %v375, %v374
  %v423 = vpack.c.b16 %v377, %v376
  %v424 = vpack.c.b16 %v379, %v378
  %v425 = vpack.c.b16 %v381, %v380
  %v426 = vpack.c.b16 %v383, %v382
  %v427 = vpack.c.b16 %v385, %v384
  %v428 = vpack.c.b16 %v387, %v386
  %v429 = vpack.c.b16 %v389, %v388
  %470 = vmatprep.subr.bf16.mxu0 0
  %471 = vmatpush1.bf16.msra.mxu0 %v397
  %472 = vmatprep.subr.bf16.mxu0 0
  %473 = vmatpush1.bf16.msra.mxu0 %v396
  %474 = vmatprep.subr.bf16.mxu0 0
  %475 = vmatpush1.bf16.msra.mxu0 %v395
  %476 = vmatprep.subr.bf16.mxu0 0
  %477 = vmatpush1.bf16.msra.mxu0 %v394
  %478 = vmatprep.subr.bf16.mxu0 0
  %479 = vmatpush1.bf16.msra.mxu0 %v393
  %480 = vmatprep.subr.bf16.mxu0 0
  %481 = vmatpush1.bf16.msra.mxu0 %v392
  %482 = vmatprep.subr.bf16.mxu0 0
  %483 = vmatpush1.bf16.msra.mxu0 %v391
  %484 = vmatprep.subr.bf16.mxu0 0
  %485 = vmatpush1.bf16.msra.mxu0 %v390
  %486 = vmatprep.subr.bf16.mxu0 0
  %487 = vmatpush2.bf16.msra.mxu0 %v405
  %488 = vmatprep.subr.bf16.mxu0 0
  %489 = vmatpush2.bf16.msra.mxu0 %v404
  %490 = vmatprep.subr.bf16.mxu0 0
  %491 = vmatpush2.bf16.msra.mxu0 %v403
  %492 = vmatprep.subr.bf16.mxu0 0
  %493 = vmatpush2.bf16.msra.mxu0 %v402
  %494 = vmatprep.subr.bf16.mxu0 0
  %495 = vmatpush2.bf16.msra.mxu0 %v401
  %496 = vmatprep.subr.bf16.mxu0 0
  %497 = vmatpush2.bf16.msra.mxu0 %v400
  %498 = vmatprep.subr.bf16.mxu0 0
  %499 = vmatpush2.bf16.msra.mxu0 %v399
  %500 = vmatprep.subr.bf16.mxu0 0
  %501 = vmatpush2.bf16.msra.mxu0 %v398
  %502 = vmatprep.mubr.bf16.mxu0 %v191
  %503 = vmatmul.mubr.bf16.gmra.mxu0 %v190
  %v504 = vpop.f32.mrf.mxu0
  %v505 = vadd.f32 %v124, %v504
  %v506 = vpop.f32.mrf.mxu0
  %v507 = vpop.f32.mrf.mxu0
  %v508 = vadd.f32 %v124, %v507
  %v509 = vpop.f32.mrf.mxu0
  %510 = vmatprep.mubr.bf16.mxu0 %v196
  %511 = vmatmul.mubr.bf16.gmra.mxu0 %v195
  %v512 = vpop.f32.mrf.mxu0
  %v513 = vadd.f32 %v124, %v512
  %v514 = vpop.f32.mrf.mxu0
  %v515 = vpop.f32.mrf.mxu0
  %v516 = vadd.f32 %v124, %v515
  %v517 = vpop.f32.mrf.mxu0
  %518 = vmatprep.mubr.bf16.mxu0 %v201
  %519 = vmatmul.mubr.bf16.gmra.mxu0 %v200
  %v520 = vpop.f32.mrf.mxu0
  %v521 = vadd.f32 %v124, %v520
  %v522 = vpop.f32.mrf.mxu0
  %v523 = vpop.f32.mrf.mxu0
  %v524 = vadd.f32 %v124, %v523
  %v525 = vpop.f32.mrf.mxu0
  %526 = vmatprep.mubr.bf16.mxu0 %v206
  %527 = vmatmul.mubr.bf16.gmra.mxu0 %v205
  %v528 = vpop.f32.mrf.mxu0
  %v529 = vadd.f32 %v124, %v528
  %v530 = vpop.f32.mrf.mxu0
  %v531 = vpop.f32.mrf.mxu0
  %v532 = vadd.f32 %v124, %v531
  %v533 = vpop.f32.mrf.mxu0
  %534 = vdwg.mxu0
  %535 = vmatprep.subr.bf16.mxu0 0
  %536 = vmatpush1.bf16.msra.mxu0 %v413
  %537 = vmatprep.subr.bf16.mxu0 0
  %538 = vmatpush1.bf16.msra.mxu0 %v412
  %539 = vmatprep.subr.bf16.mxu0 0
  %540 = vmatpush1.bf16.msra.mxu0 %v411
  %541 = vmatprep.subr.bf16.mxu0 0
  %542 = vmatpush1.bf16.msra.mxu0 %v410
  %543 = vmatprep.subr.bf16.mxu0 0
  %544 = vmatpush1.bf16.msra.mxu0 %v409
  %545 = vmatprep.subr.bf16.mxu0 0
  %546 = vmatpush1.bf16.msra.mxu0 %v408
  %547 = vmatprep.subr.bf16.mxu0 0
  %548 = vmatpush1.bf16.msra.mxu0 %v407
  %549 = vmatprep.subr.bf16.mxu0 0
  %550 = vmatpush1.bf16.msra.mxu0 %v406
  %551 = vmatprep.subr.bf16.mxu0 0
  %552 = vmatpush2.bf16.msra.mxu0 %v421
  %553 = vmatprep.subr.bf16.mxu0 0
  %554 = vmatpush2.bf16.msra.mxu0 %v420
  %555 = vmatprep.subr.bf16.mxu0 0
  %556 = vmatpush2.bf16.msra.mxu0 %v419
  %557 = vmatprep.subr.bf16.mxu0 0
  %558 = vmatpush2.bf16.msra.mxu0 %v418
  %559 = vmatprep.subr.bf16.mxu0 0
  %560 = vmatpush2.bf16.msra.mxu0 %v417
  %561 = vmatprep.subr.bf16.mxu0 0
  %562 = vmatpush2.bf16.msra.mxu0 %v416
  %563 = vmatprep.subr.bf16.mxu0 0
  %564 = vmatpush2.bf16.msra.mxu0 %v415
  %565 = vmatprep.subr.bf16.mxu0 0
  %566 = vmatpush2.bf16.msra.mxu0 %v414
  %567 = vmatprep.mubr.bf16.mxu0 %v193
  %568 = vmatmul.mubr.bf16.gmra.mxu0 %v192
  %v569 = vpop.f32.mrf.mxu0
  %v570 = vadd.f32 %v505, %v569
  %v571 = vpop.f32.mrf.mxu0
  %v572 = vpop.f32.mrf.mxu0
  %v573 = vadd.f32 %v508, %v572
  %v574 = vpop.f32.mrf.mxu0
  %575 = vmatprep.mubr.bf16.mxu0 %v198
  %576 = vmatmul.mubr.bf16.gmra.mxu0 %v197
  %v577 = vpop.f32.mrf.mxu0
  %v578 = vadd.f32 %v513, %v577
  %v579 = vpop.f32.mrf.mxu0
  %v580 = vpop.f32.mrf.mxu0
  %v581 = vadd.f32 %v516, %v580
  %v582 = vpop.f32.mrf.mxu0
  %583 = vmatprep.mubr.bf16.mxu0 %v203
  %584 = vmatmul.mubr.bf16.gmra.mxu0 %v202
  %v585 = vpop.f32.mrf.mxu0
  %v586 = vadd.f32 %v521, %v585
  %v587 = vpop.f32.mrf.mxu0
  %v588 = vpop.f32.mrf.mxu0
  %v589 = vadd.f32 %v524, %v588
  %v590 = vpop.f32.mrf.mxu0
  %591 = vmatprep.mubr.bf16.mxu0 %v208
  %592 = vmatmul.mubr.bf16.gmra.mxu0 %v207
  %v593 = vpop.f32.mrf.mxu0
  %v594 = vadd.f32 %v529, %v593
  %v595 = vpop.f32.mrf.mxu0
  %v596 = vpop.f32.mrf.mxu0
  %v597 = vadd.f32 %v532, %v596
  %v598 = vpop.f32.mrf.mxu0
  %599 = vdwg.mxu0
  %600 = vmatprep.subr.bf16.mxu0 0
  %601 = vmatpush1.bf16.msra.mxu0 %v429
  %602 = vmatprep.subr.bf16.mxu0 0
  %603 = vmatpush1.bf16.msra.mxu0 %v428
  %604 = vmatprep.subr.bf16.mxu0 0
  %605 = vmatpush1.bf16.msra.mxu0 %v427
  %606 = vmatprep.subr.bf16.mxu0 0
  %607 = vmatpush1.bf16.msra.mxu0 %v426
  %608 = vmatprep.subr.bf16.mxu0 0
  %609 = vmatpush1.bf16.msra.mxu0 %v425
  %610 = vmatprep.subr.bf16.mxu0 0
  %611 = vmatpush1.bf16.msra.mxu0 %v424
  %612 = vmatprep.subr.bf16.mxu0 0
  %613 = vmatpush1.bf16.msra.mxu0 %v423
  %614 = vmatprep.subr.bf16.mxu0 0
  %615 = vmatpush1.bf16.msra.mxu0 %v422
  %616 = vmatprep.subr.bf16.mxu0 0
  %617 = vmatpush2.bf16.msra.mxu0 0
  %618 = vmatprep.subr.bf16.mxu0 0
  %619 = vmatpush2.bf16.msra.mxu0 0
  %620 = vmatprep.subr.bf16.mxu0 0
  %621 = vmatpush2.bf16.msra.mxu0 0
  %622 = vmatprep.subr.bf16.mxu0 0
  %623 = vmatpush2.bf16.msra.mxu0 0
  %624 = vmatprep.subr.bf16.mxu0 0
  %625 = vmatpush2.bf16.msra.mxu0 0
  %626 = vmatprep.subr.bf16.mxu0 0
  %627 = vmatpush2.bf16.msra.mxu0 0
  %628 = vmatprep.subr.bf16.mxu0 0
  %629 = vmatpush2.bf16.msra.mxu0 0
  %630 = vmatprep.subr.bf16.mxu0 0
  %631 = vmatpush2.bf16.msra.mxu0 0
  %632 = vmatprep.mubr.bf16.mxu0 0
  %633 = vmatmul.mubr.bf16.gmra.mxu0 %v194
  %v634 = vpop.f32.mrf.mxu0
  %v635 = vadd.f32 %v570, %v634
  %v636 = vpop.f32.mrf.mxu0
  %v637 = vpop.f32.mrf.mxu0
  %v638 = vadd.f32 %v573, %v637
  %v639 = vpop.f32.mrf.mxu0
  %640 = vmatprep.mubr.bf16.mxu0 0
  %641 = vmatmul.mubr.bf16.gmra.mxu0 %v199
  %v642 = vpop.f32.mrf.mxu0
  %v643 = vadd.f32 %v578, %v642
  %v644 = vpop.f32.mrf.mxu0
  %v645 = vpop.f32.mrf.mxu0
  %v646 = vadd.f32 %v581, %v645
  %v647 = vpop.f32.mrf.mxu0
  %648 = vmatprep.mubr.bf16.mxu0 0
  %649 = vmatmul.mubr.bf16.gmra.mxu0 %v204
  %v650 = vpop.f32.mrf.mxu0
  %v651 = vadd.f32 %v586, %v650
  %v652 = vpop.f32.mrf.mxu0
  %v653 = vpop.f32.mrf.mxu0
  %v654 = vadd.f32 %v589, %v653
  %v655 = vpop.f32.mrf.mxu0
  %656 = vmatprep.mubr.bf16.mxu0 0
  %657 = vmatmul.mubr.bf16.gmra.mxu0 %v209
  %v658 = vpop.f32.mrf.mxu0
  %v659 = vadd.f32 %v594, %v658
  %v660 = vpop.f32.mrf.mxu0
  %v661 = vpop.f32.mrf.mxu0
  %v662 = vadd.f32 %v597, %v661
  %v663 = vpop.f32.mrf.mxu0
  %664 = vdwg.mxu0
  %v665 = vmax.f32 %v635, 0.0
  %v666 = vmax.f32 %v638, 0.0
  %v667 = vmax.f32 %v643, 0.0
  %v668 = vmax.f32 %v646, 0.0
  %v669 = vmax.f32 %v651, 0.0
  %v670 = vmax.f32 %v654, 0.0
  %v671 = vmax.f32 %v659, 0.0
  %v672 = vmax.f32 %v662, 0.0
  %v673 = vpack.c.bf16 %v666, %v665
  %v674 = vpack.c.bf16 %v668, %v667
  %v675 = vpack.c.bf16 %v670, %v669
  %v676 = vpack.c.bf16 %v672, %v671
  %v681 = vunpack.c.l.b16 %v673
  %v682 = vunpack.c.h.b16 %v673
  %v683 = vunpack.c.l.b16 %v674
  %v684 = vunpack.c.h.b16 %v674
  %v685 = vunpack.c.l.b16 %v675
  %v686 = vunpack.c.h.b16 %v675
  %v687 = vunpack.c.l.b16 %v676
  %v688 = vunpack.c.h.b16 %v676
  %v689 = vpack.c.b16 %v681, %v681
  %v690 = vpack.c.b16 %v682, %v682
  %v691 = vpack.c.b16 %v683, %v683
  %v692 = vpack.c.b16 %v684, %v684
  %v693 = vpack.c.b16 %v685, %v685
  %v694 = vpack.c.b16 %v686, %v686
  %v695 = vpack.c.b16 %v687, %v687
  %v696 = vpack.c.b16 %v688, %v688
  %705 = vst [vmem:[%s3] sm:$0xf] %v689
  %706 = vst [vmem:[%s3 + $0x4] sm:$0xf] %v690
  %707 = vst [vmem:[%s3 + $0x8] sm:$0xf] %v691
  %708 = vst [vmem:[%s3 + $0xc] sm:$0xf] %v692
  %709 = vst [vmem:[%s3 + $0x10] sm:$0xf] %v693
  %710 = vst [vmem:[%s3 + $0x14] sm:$0xf] %v694
  %711 = vst [vmem:[%s3 + $0x18] sm:$0xf] %v695
  %712 = vst [vmem:[%s3 + $0x1c] sm:$0xf] %v696
  // Predicated region
  $region14: #{forward.9} parent=0 // pred_check
    _
  $region15: #{forward.9} parent=0 // pred_check_branch
    %714 = sbr.rel (0) target = $region17
  $region16: #{forward.9} parent=0 // pred_region
    _
  $region17: #{forward.9} parent=0 // pred_fallthru
    _
  // Predicated region
  $region18: #{forward.9} parent=0 // pred_check
    _
  $region19: #{forward.9} parent=0 // pred_check_branch
    %716 = sbr.rel (0) target = $region21
  $region20: #{forward.9} parent=0 // pred_region
    _
  $region21: #{forward.9} parent=0 // pred_fallthru
    _

// kernel: forward.10
$region0: #{forward.10}
  #allocation0 [shape = 'u32[]', space=smem, size = 0x4, offset = 0x4, fixed_abs, tag = 'smem constant byte address 0x4 - core index']
  #allocation1 [shape = 'u32[144,128]{1,0:T(1,128)}', space=vmem, size = 0x12000, scoped, tag = 'internal scratch']
  %s0 = inlined_call_operand.vmem [shape: bf16[64,640], index: 0, kind: input, shape index: {}]
  %s1 = inlined_call_operand.vmem [shape: bf16[640,128], index: 1, kind: input, shape index: {}]
  %s2 = inlined_call_operand.vmem [shape: f32[1,128], index: 2, kind: input, shape index: {}]
  %s3 = inlined_call_operand.vmem [shape: f32[64,128], index: 3, kind: output, shape index: {}]
  %s4 = sld [smem:[#allocation0]]
  $region22: #{forward.10} parent=0
    _
  %s6 = ssub.s32 1, %s4
  %s7 = scalar_select 0, %s6, %s4
  // Predicated region
  $region2: #{forward.10} parent=0 // pred_check
    _
  $region3: #{forward.10} parent=0 // pred_check_branch
    %9 = sbr.rel (0) target = $region5
  $region4: #{forward.10} parent=0 // pred_region
    _
  $region5: #{forward.10} parent=0 // pred_fallthru
    _
  // Predicated region
  $region6: #{forward.10} parent=0 // pred_check
    _
  $region7: #{forward.10} parent=0 // pred_check_branch
    %11 = sbr.rel (0) target = $region9
  $region8: #{forward.10} parent=0 // pred_region
    _
  $region9: #{forward.10} parent=0 // pred_fallthru
    _
  // Predicated region
  $region10: #{forward.10} parent=0 // pred_check
    _
  $region11: #{forward.10} parent=0 // pred_check_branch
    %13 = sbr.rel (0) target = $region13
  $region12: #{forward.10} parent=0 // pred_region
    _
  $region13: #{forward.10} parent=0 // pred_fallthru
    _
  %v15 = vld [vmem:[%s0] sm:$0xff]
  %v16 = vld [vmem:[%s0 + $0x8] sm:$0xff]
  %v17 = vld [vmem:[%s0 + $0x10] sm:$0xf]
  %v18 = vld [vmem:[%s0 + $0x14] sm:$0xff]
  %v19 = vld [vmem:[%s0 + $0x1c] sm:$0xff]
  %v20 = vld [vmem:[%s0 + $0x24] sm:$0xf]
  %v21 = vld [vmem:[%s0 + $0x28] sm:$0xff]
  %v22 = vld [vmem:[%s0 + $0x30] sm:$0xff]
  %v23 = vld [vmem:[%s0 + $0x38] sm:$0xf]
  %v24 = vld [vmem:[%s0 + $0x3c] sm:$0xff]
  %v25 = vld [vmem:[%s0 + $0x44] sm:$0xff]
  %v26 = vld [vmem:[%s0 + $0x4c] sm:$0xf]
  %v27 = vld [vmem:[%s0 + $0x50] sm:$0xff]
  %v28 = vld [vmem:[%s0 + $0x58] sm:$0xff]
  %v29 = vld [vmem:[%s0 + $0x60] sm:$0xf]
  %v30 = vld [vmem:[%s0 + $0x64] sm:$0xff]
  %v31 = vld [vmem:[%s0 + $0x6c] sm:$0xff]
  %v32 = vld [vmem:[%s0 + $0x74] sm:$0xf]
  %v33 = vld [vmem:[%s0 + $0x78] sm:$0xff]
  %v34 = vld [vmem:[%s0 + $0x80] sm:$0xff]
  %v35 = vld [vmem:[%s0 + $0x88] sm:$0xf]
  %v36 = vld [vmem:[%s0 + $0x8c] sm:$0xff]
  %v37 = vld [vmem:[%s0 + $0x94] sm:$0xff]
  %v38 = vld [vmem:[%s0 + $0x9c] sm:$0xf]
  %v39 = vld [vmem:[%s1] sm:$0xf]
  %v40 = vld [vmem:[%s1 + $0x4] sm:$0xf]
  %v41 = vld [vmem:[%s1 + $0x8] sm:$0xf]
  %v42 = vld [vmem:[%s1 + $0xc] sm:$0xf]
  %v43 = vld [vmem:[%s1 + $0x10] sm:$0xf]
  %v44 = vld [vmem:[%s1 + $0x14] sm:$0xf]
  %v45 = vld [vmem:[%s1 + $0x18] sm:$0xf]
  %v46 = vld [vmem:[%s1 + $0x1c] sm:$0xf]
  %v47 = vld [vmem:[%s1 + $0x20] sm:$0xf]
  %v48 = vld [vmem:[%s1 + $0x24] sm:$0xf]
  %v49 = vld [vmem:[%s1 + $0x28] sm:$0xf]
  %v50 = vld [vmem:[%s1 + $0x2c] sm:$0xf]
  %v51 = vld [vmem:[%s1 + $0x30] sm:$0xf]
  %v52 = vld [vmem:[%s1 + $0x34] sm:$0xf]
  %v53 = vld [vmem:[%s1 + $0x38] sm:$0xf]
  %v54 = vld [vmem:[%s1 + $0x3c] sm:$0xf]
  %v55 = vld [vmem:[%s1 + $0x40] sm:$0xf]
  %v56 = vld [vmem:[%s1 + $0x44] sm:$0xf]
  %v57 = vld [vmem:[%s1 + $0x48] sm:$0xf]
  %v58 = vld [vmem:[%s1 + $0x4c] sm:$0xf]
  %v59 = vld [vmem:[%s1 + $0x50] sm:$0xf]
  %v60 = vld [vmem:[%s1 + $0x54] sm:$0xf]
  %v61 = vld [vmem:[%s1 + $0x58] sm:$0xf]
  %v62 = vld [vmem:[%s1 + $0x5c] sm:$0xf]
  %v63 = vld [vmem:[%s1 + $0x60] sm:$0xf]
  %v64 = vld [vmem:[%s1 + $0x64] sm:$0xf]
  %v65 = vld [vmem:[%s1 + $0x68] sm:$0xf]
  %v66 = vld [vmem:[%s1 + $0x6c] sm:$0xf]
  %v67 = vld [vmem:[%s1 + $0x70] sm:$0xf]
  %v68 = vld [vmem:[%s1 + $0x74] sm:$0xf]
  %v69 = vld [vmem:[%s1 + $0x78] sm:$0xf]
  %v70 = vld [vmem:[%s1 + $0x7c] sm:$0xf]
  %v71 = vld [vmem:[%s1 + $0x80] sm:$0xf]
  %v72 = vld [vmem:[%s1 + $0x84] sm:$0xf]
  %v73 = vld [vmem:[%s1 + $0x88] sm:$0xf]
  %v74 = vld [vmem:[%s1 + $0x8c] sm:$0xf]
  %v75 = vld [vmem:[%s1 + $0x90] sm:$0xf]
  %v76 = vld [vmem:[%s1 + $0x94] sm:$0xf]
  %v77 = vld [vmem:[%s1 + $0x98] sm:$0xf]
  %v78 = vld [vmem:[%s1 + $0x9c] sm:$0xf]
  %v79 = vld [vmem:[%s1 + $0xa0] sm:$0xf]
  %v80 = vld [vmem:[%s1 + $0xa4] sm:$0xf]
  %v81 = vld [vmem:[%s1 + $0xa8] sm:$0xf]
  %v82 = vld [vmem:[%s1 + $0xac] sm:$0xf]
  %v83 = vld [vmem:[%s1 + $0xb0] sm:$0xf]
  %v84 = vld [vmem:[%s1 + $0xb4] sm:$0xf]
  %v85 = vld [vmem:[%s1 + $0xb8] sm:$0xf]
  %v86 = vld [vmem:[%s1 + $0xbc] sm:$0xf]
  %v87 = vld [vmem:[%s1 + $0xc0] sm:$0xf]
  %v88 = vld [vmem:[%s1 + $0xc4] sm:$0xf]
  %v89 = vld [vmem:[%s1 + $0xc8] sm:$0xf]
  %v90 = vld [vmem:[%s1 + $0xcc] sm:$0xf]
  %v91 = vld [vmem:[%s1 + $0xd0] sm:$0xf]
  %v92 = vld [vmem:[%s1 + $0xd4] sm:$0xf]
  %v93 = vld [vmem:[%s1 + $0xd8] sm:$0xf]
  %v94 = vld [vmem:[%s1 + $0xdc] sm:$0xf]
  %v95 = vld [vmem:[%s1 + $0xe0] sm:$0xf]
  %v96 = vld [vmem:[%s1 + $0xe4] sm:$0xf]
  %v97 = vld [vmem:[%s1 + $0xe8] sm:$0xf]
  %v98 = vld [vmem:[%s1 + $0xec] sm:$0xf]
  %v99 = vld [vmem:[%s1 + $0xf0] sm:$0xf]
  %v100 = vld [vmem:[%s1 + $0xf4] sm:$0xf]
  %v101 = vld [vmem:[%s1 + $0xf8] sm:$0xf]
  %v102 = vld [vmem:[%s1 + $0xfc] sm:$0xf]
  %v103 = vld [vmem:[%s1 + $0x100] sm:$0xf]
  %v104 = vld [vmem:[%s1 + $0x104] sm:$0xf]
  %v105 = vld [vmem:[%s1 + $0x108] sm:$0xf]
  %v106 = vld [vmem:[%s1 + $0x10c] sm:$0xf]
  %v107 = vld [vmem:[%s1 + $0x110] sm:$0xf]
  %v108 = vld [vmem:[%s1 + $0x114] sm:$0xf]
  %v109 = vld [vmem:[%s1 + $0x118] sm:$0xf]
  %v110 = vld [vmem:[%s1 + $0x11c] sm:$0xf]
  %v111 = vld [vmem:[%s1 + $0x120] sm:$0xf]
  %v112 = vld [vmem:[%s1 + $0x124] sm:$0xf]
  %v113 = vld [vmem:[%s1 + $0x128] sm:$0xf]
  %v114 = vld [vmem:[%s1 + $0x12c] sm:$0xf]
  %v115 = vld [vmem:[%s1 + $0x130] sm:$0xf]
  %v116 = vld [vmem:[%s1 + $0x134] sm:$0xf]
  %v117 = vld [vmem:[%s1 + $0x138] sm:$0xf]
  %v118 = vld [vmem:[%s1 + $0x13c] sm:$0xf]
  %v119 = vld [vmem:[%s2] sm:$0x1]
  %v121 = vlaneseq
  %v122 = vshrl.u32 %v121, 7
  %v123 = vsub.s32 0, %v122
  %v124 = vrot.slane %v119, %v123
  %v150 = vunpack.c.l.b16 %v15
  %v151 = vunpack.c.h.b16 %v15
  %v152 = vunpack.c.l.b16 %v16
  %v153 = vunpack.c.h.b16 %v16
  %v154 = vunpack.c.l.b16 %v17
  %v155 = vunpack.c.l.b16 %v18
  %v156 = vunpack.c.h.b16 %v18
  %v157 = vunpack.c.l.b16 %v19
  %v158 = vunpack.c.h.b16 %v19
  %v159 = vunpack.c.l.b16 %v20
  %v160 = vunpack.c.l.b16 %v21
  %v161 = vunpack.c.h.b16 %v21
  %v162 = vunpack.c.l.b16 %v22
  %v163 = vunpack.c.h.b16 %v22
  %v164 = vunpack.c.l.b16 %v23
  %v165 = vunpack.c.l.b16 %v24
  %v166 = vunpack.c.h.b16 %v24
  %v167 = vunpack.c.l.b16 %v25
  %v168 = vunpack.c.h.b16 %v25
  %v169 = vunpack.c.l.b16 %v26
  %v170 = vunpack.c.l.b16 %v27
  %v171 = vunpack.c.h.b16 %v27
  %v172 = vunpack.c.l.b16 %v28
  %v173 = vunpack.c.h.b16 %v28
  %v174 = vunpack.c.l.b16 %v29
  %v175 = vunpack.c.l.b16 %v30
  %v176 = vunpack.c.h.b16 %v30
  %v177 = vunpack.c.l.b16 %v31
  %v178 = vunpack.c.h.b16 %v31
  %v179 = vunpack.c.l.b16 %v32
  %v180 = vunpack.c.l.b16 %v33
  %v181 = vunpack.c.h.b16 %v33
  %v182 = vunpack.c.l.b16 %v34
  %v183 = vunpack.c.h.b16 %v34
  %v184 = vunpack.c.l.b16 %v35
  %v185 = vunpack.c.l.b16 %v36
  %v186 = vunpack.c.h.b16 %v36
  %v187 = vunpack.c.l.b16 %v37
  %v188 = vunpack.c.h.b16 %v37
  %v189 = vunpack.c.l.b16 %v38
  %v190 = vpack.c.b16 %v155, %v150
  %v191 = vpack.c.b16 %v156, %v151
  %v192 = vpack.c.b16 %v157, %v152
  %v193 = vpack.c.b16 %v158, %v153
  %v194 = vpack.c.b16 %v159, %v154
  %v195 = vpack.c.b16 %v165, %v160
  %v196 = vpack.c.b16 %v166, %v161
  %v197 = vpack.c.b16 %v167, %v162
  %v198 = vpack.c.b16 %v168, %v163
  %v199 = vpack.c.b16 %v169, %v164
  %v200 = vpack.c.b16 %v175, %v170
  %v201 = vpack.c.b16 %v176, %v171
  %v202 = vpack.c.b16 %v177, %v172
  %v203 = vpack.c.b16 %v178, %v173
  %v204 = vpack.c.b16 %v179, %v174
  %v205 = vpack.c.b16 %v185, %v180
  %v206 = vpack.c.b16 %v186, %v181
  %v207 = vpack.c.b16 %v187, %v182
  %v208 = vpack.c.b16 %v188, %v183
  %v209 = vpack.c.b16 %v189, %v184
  %v310 = vunpack.c.l.b16 %v39
  %v311 = vunpack.c.l.b16 %v40
  %v312 = vunpack.c.l.b16 %v41
  %v313 = vunpack.c.l.b16 %v42
  %v314 = vunpack.c.l.b16 %v43
  %v315 = vunpack.c.l.b16 %v44
  %v316 = vunpack.c.l.b16 %v45
  %v317 = vunpack.c.l.b16 %v46
  %v318 = vunpack.c.l.b16 %v47
  %v319 = vunpack.c.l.b16 %v48
  %v320 = vunpack.c.l.b16 %v49
  %v321 = vunpack.c.l.b16 %v50
  %v322 = vunpack.c.l.b16 %v51
  %v323 = vunpack.c.l.b16 %v52
  %v324 = vunpack.c.l.b16 %v53
  %v325 = vunpack.c.l.b16 %v54
  %v326 = vunpack.c.l.b16 %v55
  %v327 = vunpack.c.l.b16 %v56
  %v328 = vunpack.c.l.b16 %v57
  %v329 = vunpack.c.l.b16 %v58
  %v330 = vunpack.c.l.b16 %v59
  %v331 = vunpack.c.l.b16 %v60
  %v332 = vunpack.c.l.b16 %v61
  %v333 = vunpack.c.l.b16 %v62
  %v334 = vunpack.c.l.b16 %v63
  %v335 = vunpack.c.l.b16 %v64
  %v336 = vunpack.c.l.b16 %v65
  %v337 = vunpack.c.l.b16 %v66
  %v338 = vunpack.c.l.b16 %v67
  %v339 = vunpack.c.l.b16 %v68
  %v340 = vunpack.c.l.b16 %v69
  %v341 = vunpack.c.l.b16 %v70
  %v342 = vunpack.c.l.b16 %v71
  %v343 = vunpack.c.l.b16 %v72
  %v344 = vunpack.c.l.b16 %v73
  %v345 = vunpack.c.l.b16 %v74
  %v346 = vunpack.c.l.b16 %v75
  %v347 = vunpack.c.l.b16 %v76
  %v348 = vunpack.c.l.b16 %v77
  %v349 = vunpack.c.l.b16 %v78
  %v350 = vunpack.c.l.b16 %v79
  %v351 = vunpack.c.l.b16 %v80
  %v352 = vunpack.c.l.b16 %v81
  %v353 = vunpack.c.l.b16 %v82
  %v354 = vunpack.c.l.b16 %v83
  %v355 = vunpack.c.l.b16 %v84
  %v356 = vunpack.c.l.b16 %v85
  %v357 = vunpack.c.l.b16 %v86
  %v358 = vunpack.c.l.b16 %v87
  %v359 = vunpack.c.l.b16 %v88
  %v360 = vunpack.c.l.b16 %v89
  %v361 = vunpack.c.l.b16 %v90
  %v362 = vunpack.c.l.b16 %v91
  %v363 = vunpack.c.l.b16 %v92
  %v364 = vunpack.c.l.b16 %v93
  %v365 = vunpack.c.l.b16 %v94
  %v366 = vunpack.c.l.b16 %v95
  %v367 = vunpack.c.l.b16 %v96
  %v368 = vunpack.c.l.b16 %v97
  %v369 = vunpack.c.l.b16 %v98
  %v370 = vunpack.c.l.b16 %v99
  %v371 = vunpack.c.l.b16 %v100
  %v372 = vunpack.c.l.b16 %v101
  %v373 = vunpack.c.l.b16 %v102
  %v374 = vunpack.c.l.b16 %v103
  %v375 = vunpack.c.l.b16 %v104
  %v376 = vunpack.c.l.b16 %v105
  %v377 = vunpack.c.l.b16 %v106
  %v378 = vunpack.c.l.b16 %v107
  %v379 = vunpack.c.l.b16 %v108
  %v380 = vunpack.c.l.b16 %v109
  %v381 = vunpack.c.l.b16 %v110
  %v382 = vunpack.c.l.b16 %v111
  %v383 = vunpack.c.l.b16 %v112
  %v384 = vunpack.c.l.b16 %v113
  %v385 = vunpack.c.l.b16 %v114
  %v386 = vunpack.c.l.b16 %v115
  %v387 = vunpack.c.l.b16 %v116
  %v388 = vunpack.c.l.b16 %v117
  %v389 = vunpack.c.l.b16 %v118
  %v390 = vpack.c.b16 %v311, %v310
  %v391 = vpack.c.b16 %v313, %v312
  %v392 = vpack.c.b16 %v315, %v314
  %v393 = vpack.c.b16 %v317, %v316
  %v394 = vpack.c.b16 %v319, %v318
  %v395 = vpack.c.b16 %v321, %v320
  %v396 = vpack.c.b16 %v323, %v322
  %v397 = vpack.c.b16 %v325, %v324
  %v398 = vpack.c.b16 %v327, %v326
  %v399 = vpack.c.b16 %v329, %v328
  %v400 = vpack.c.b16 %v331, %v330
  %v401 = vpack.c.b16 %v333, %v332
  %v402 = vpack.c.b16 %v335, %v334
  %v403 = vpack.c.b16 %v337, %v336
  %v404 = vpack.c.b16 %v339, %v338
  %v405 = vpack.c.b16 %v341, %v340
  %v406 = vpack.c.b16 %v343, %v342
  %v407 = vpack.c.b16 %v345, %v344
  %v408 = vpack.c.b16 %v347, %v346
  %v409 = vpack.c.b16 %v349, %v348
  %v410 = vpack.c.b16 %v351, %v350
  %v411 = vpack.c.b16 %v353, %v352
  %v412 = vpack.c.b16 %v355, %v354
  %v413 = vpack.c.b16 %v357, %v356
  %v414 = vpack.c.b16 %v359, %v358
  %v415 = vpack.c.b16 %v361, %v360
  %v416 = vpack.c.b16 %v363, %v362
  %v417 = vpack.c.b16 %v365, %v364
  %v418 = vpack.c.b16 %v367, %v366
  %v419 = vpack.c.b16 %v369, %v368
  %v420 = vpack.c.b16 %v371, %v370
  %v421 = vpack.c.b16 %v373, %v372
  %v422 = vpack.c.b16 %v375, %v374
  %v423 = vpack.c.b16 %v377, %v376
  %v424 = vpack.c.b16 %v379, %v378
  %v425 = vpack.c.b16 %v381, %v380
  %v426 = vpack.c.b16 %v383, %v382
  %v427 = vpack.c.b16 %v385, %v384
  %v428 = vpack.c.b16 %v387, %v386
  %v429 = vpack.c.b16 %v389, %v388
  %470 = vmatprep.subr.bf16.mxu0 0
  %471 = vmatpush1.bf16.msra.mxu0 %v397
  %472 = vmatprep.subr.bf16.mxu0 0
  %473 = vmatpush1.bf16.msra.mxu0 %v396
  %474 = vmatprep.subr.bf16.mxu0 0
  %475 = vmatpush1.bf16.msra.mxu0 %v395
  %476 = vmatprep.subr.bf16.mxu0 0
  %477 = vmatpush1.bf16.msra.mxu0 %v394
  %478 = vmatprep.subr.bf16.mxu0 0
  %479 = vmatpush1.bf16.msra.mxu0 %v393
  %480 = vmatprep.subr.bf16.mxu0 0
  %481 = vmatpush1.bf16.msra.mxu0 %v392
  %482 = vmatprep.subr.bf16.mxu0 0
  %483 = vmatpush1.bf16.msra.mxu0 %v391
  %484 = vmatprep.subr.bf16.mxu0 0
  %485 = vmatpush1.bf16.msra.mxu0 %v390
  %486 = vmatprep.subr.bf16.mxu0 0
  %487 = vmatpush2.bf16.msra.mxu0 %v405
  %488 = vmatprep.subr.bf16.mxu0 0
  %489 = vmatpush2.bf16.msra.mxu0 %v404
  %490 = vmatprep.subr.bf16.mxu0 0
  %491 = vmatpush2.bf16.msra.mxu0 %v403
  %492 = vmatprep.subr.bf16.mxu0 0
  %493 = vmatpush2.bf16.msra.mxu0 %v402
  %494 = vmatprep.subr.bf16.mxu0 0
  %495 = vmatpush2.bf16.msra.mxu0 %v401
  %496 = vmatprep.subr.bf16.mxu0 0
  %497 = vmatpush2.bf16.msra.mxu0 %v400
  %498 = vmatprep.subr.bf16.mxu0 0
  %499 = vmatpush2.bf16.msra.mxu0 %v399
  %500 = vmatprep.subr.bf16.mxu0 0
  %501 = vmatpush2.bf16.msra.mxu0 %v398
  %502 = vmatprep.mubr.bf16.mxu0 %v191
  %503 = vmatmul.mubr.bf16.gmra.mxu0 %v190
  %v504 = vpop.f32.mrf.mxu0
  %v505 = vadd.f32 %v124, %v504
  %v506 = vpop.f32.mrf.mxu0
  %v507 = vpop.f32.mrf.mxu0
  %v508 = vadd.f32 %v124, %v507
  %v509 = vpop.f32.mrf.mxu0
  %510 = vmatprep.mubr.bf16.mxu0 %v196
  %511 = vmatmul.mubr.bf16.gmra.mxu0 %v195
  %v512 = vpop.f32.mrf.mxu0
  %v513 = vadd.f32 %v124, %v512
  %v514 = vpop.f32.mrf.mxu0
  %v515 = vpop.f32.mrf.mxu0
  %v516 = vadd.f32 %v124, %v515
  %v517 = vpop.f32.mrf.mxu0
  %518 = vmatprep.mubr.bf16.mxu0 %v201
  %519 = vmatmul.mubr.bf16.gmra.mxu0 %v200
  %v520 = vpop.f32.mrf.mxu0
  %v521 = vadd.f32 %v124, %v520
  %v522 = vpop.f32.mrf.mxu0
  %v523 = vpop.f32.mrf.mxu0
  %v524 = vadd.f32 %v124, %v523
  %v525 = vpop.f32.mrf.mxu0
  %526 = vmatprep.mubr.bf16.mxu0 %v206
  %527 = vmatmul.mubr.bf16.gmra.mxu0 %v205
  %v528 = vpop.f32.mrf.mxu0
  %v529 = vadd.f32 %v124, %v528
  %v530 = vpop.f32.mrf.mxu0
  %v531 = vpop.f32.mrf.mxu0
  %v532 = vadd.f32 %v124, %v531
  %v533 = vpop.f32.mrf.mxu0
  %534 = vdwg.mxu0
  %535 = vmatprep.subr.bf16.mxu0 0
  %536 = vmatpush1.bf16.msra.mxu0 %v413
  %537 = vmatprep.subr.bf16.mxu0 0
  %538 = vmatpush1.bf16.msra.mxu0 %v412
  %539 = vmatprep.subr.bf16.mxu0 0
  %540 = vmatpush1.bf16.msra.mxu0 %v411
  %541 = vmatprep.subr.bf16.mxu0 0
  %542 = vmatpush1.bf16.msra.mxu0 %v410
  %543 = vmatprep.subr.bf16.mxu0 0
  %544 = vmatpush1.bf16.msra.mxu0 %v409
  %545 = vmatprep.subr.bf16.mxu0 0
  %546 = vmatpush1.bf16.msra.mxu0 %v408
  %547 = vmatprep.subr.bf16.mxu0 0
  %548 = vmatpush1.bf16.msra.mxu0 %v407
  %549 = vmatprep.subr.bf16.mxu0 0
  %550 = vmatpush1.bf16.msra.mxu0 %v406
  %551 = vmatprep.subr.bf16.mxu0 0
  %552 = vmatpush2.bf16.msra.mxu0 %v421
  %553 = vmatprep.subr.bf16.mxu0 0
  %554 = vmatpush2.bf16.msra.mxu0 %v420
  %555 = vmatprep.subr.bf16.mxu0 0
  %556 = vmatpush2.bf16.msra.mxu0 %v419
  %557 = vmatprep.subr.bf16.mxu0 0
  %558 = vmatpush2.bf16.msra.mxu0 %v418
  %559 = vmatprep.subr.bf16.mxu0 0
  %560 = vmatpush2.bf16.msra.mxu0 %v417
  %561 = vmatprep.subr.bf16.mxu0 0
  %562 = vmatpush2.bf16.msra.mxu0 %v416
  %563 = vmatprep.subr.bf16.mxu0 0
  %564 = vmatpush2.bf16.msra.mxu0 %v415
  %565 = vmatprep.subr.bf16.mxu0 0
  %566 = vmatpush2.bf16.msra.mxu0 %v414
  %567 = vmatprep.mubr.bf16.mxu0 %v193
  %568 = vmatmul.mubr.bf16.gmra.mxu0 %v192
  %v569 = vpop.f32.mrf.mxu0
  %v570 = vadd.f32 %v505, %v569
  %v571 = vpop.f32.mrf.mxu0
  %v572 = vpop.f32.mrf.mxu0
  %v573 = vadd.f32 %v508, %v572
  %v574 = vpop.f32.mrf.mxu0
  %575 = vmatprep.mubr.bf16.mxu0 %v198
  %576 = vmatmul.mubr.bf16.gmra.mxu0 %v197
  %v577 = vpop.f32.mrf.mxu0
  %v578 = vadd.f32 %v513, %v577
  %v579 = vpop.f32.mrf.mxu0
  %v580 = vpop.f32.mrf.mxu0
  %v581 = vadd.f32 %v516, %v580
  %v582 = vpop.f32.mrf.mxu0
  %583 = vmatprep.mubr.bf16.mxu0 %v203
  %584 = vmatmul.mubr.bf16.gmra.mxu0 %v202
  %v585 = vpop.f32.mrf.mxu0
  %v586 = vadd.f32 %v521, %v585
  %v587 = vpop.f32.mrf.mxu0
  %v588 = vpop.f32.mrf.mxu0
  %v589 = vadd.f32 %v524, %v588
  %v590 = vpop.f32.mrf.mxu0
  %591 = vmatprep.mubr.bf16.mxu0 %v208
  %592 = vmatmul.mubr.bf16.gmra.mxu0 %v207
  %v593 = vpop.f32.mrf.mxu0
  %v594 = vadd.f32 %v529, %v593
  %v595 = vpop.f32.mrf.mxu0
  %v596 = vpop.f32.mrf.mxu0
  %v597 = vadd.f32 %v532, %v596
  %v598 = vpop.f32.mrf.mxu0
  %599 = vdwg.mxu0
  %600 = vmatprep.subr.bf16.mxu0 0
  %601 = vmatpush1.bf16.msra.mxu0 %v429
  %602 = vmatprep.subr.bf16.mxu0 0
  %603 = vmatpush1.bf16.msra.mxu0 %v428
  %604 = vmatprep.subr.bf16.mxu0 0
  %605 = vmatpush1.bf16.msra.mxu0 %v427
  %606 = vmatprep.subr.bf16.mxu0 0
  %607 = vmatpush1.bf16.msra.mxu0 %v426
  %608 = vmatprep.subr.bf16.mxu0 0
  %609 = vmatpush1.bf16.msra.mxu0 %v425
  %610 = vmatprep.subr.bf16.mxu0 0
  %611 = vmatpush1.bf16.msra.mxu0 %v424
  %612 = vmatprep.subr.bf16.mxu0 0
  %613 = vmatpush1.bf16.msra.mxu0 %v423
  %614 = vmatprep.subr.bf16.mxu0 0
  %615 = vmatpush1.bf16.msra.mxu0 %v422
  %616 = vmatprep.subr.bf16.mxu0 0
  %617 = vmatpush2.bf16.msra.mxu0 0
  %618 = vmatprep.subr.bf16.mxu0 0
  %619 = vmatpush2.bf16.msra.mxu0 0
  %620 = vmatprep.subr.bf16.mxu0 0
  %621 = vmatpush2.bf16.msra.mxu0 0
  %622 = vmatprep.subr.bf16.mxu0 0
  %623 = vmatpush2.bf16.msra.mxu0 0
  %624 = vmatprep.subr.bf16.mxu0 0
  %625 = vmatpush2.bf16.msra.mxu0 0
  %626 = vmatprep.subr.bf16.mxu0 0
  %627 = vmatpush2.bf16.msra.mxu0 0
  %628 = vmatprep.subr.bf16.mxu0 0
  %629 = vmatpush2.bf16.msra.mxu0 0
  %630 = vmatprep.subr.bf16.mxu0 0
  %631 = vmatpush2.bf16.msra.mxu0 0
  %632 = vmatprep.mubr.bf16.mxu0 0
  %633 = vmatmul.mubr.bf16.gmra.mxu0 %v194
  %v634 = vpop.f32.mrf.mxu0
  %v635 = vadd.f32 %v570, %v634
  %v636 = vpop.f32.mrf.mxu0
  %v637 = vpop.f32.mrf.mxu0
  %v638 = vadd.f32 %v573, %v637
  %v639 = vpop.f32.mrf.mxu0
  %640 = vmatprep.mubr.bf16.mxu0 0
  %641 = vmatmul.mubr.bf16.gmra.mxu0 %v199
  %v642 = vpop.f32.mrf.mxu0
  %v643 = vadd.f32 %v578, %v642
  %v644 = vpop.f32.mrf.mxu0
  %v645 = vpop.f32.mrf.mxu0
  %v646 = vadd.f32 %v581, %v645
  %v647 = vpop.f32.mrf.mxu0
  %648 = vmatprep.mubr.bf16.mxu0 0
  %649 = vmatmul.mubr.bf16.gmra.mxu0 %v204
  %v650 = vpop.f32.mrf.mxu0
  %v651 = vadd.f32 %v586, %v650
  %v652 = vpop.f32.mrf.mxu0
  %v653 = vpop.f32.mrf.mxu0
  %v654 = vadd.f32 %v589, %v653
  %v655 = vpop.f32.mrf.mxu0
  %656 = vmatprep.mubr.bf16.mxu0 0
  %657 = vmatmul.mubr.bf16.gmra.mxu0 %v209
  %v658 = vpop.f32.mrf.mxu0
  %v659 = vadd.f32 %v594, %v658
  %v660 = vpop.f32.mrf.mxu0
  %v661 = vpop.f32.mrf.mxu0
  %v662 = vadd.f32 %v597, %v661
  %v663 = vpop.f32.mrf.mxu0
  %664 = vdwg.mxu0
  %v665 = vmax.f32 %v635, 0.0
  %v666 = vmax.f32 %v638, 0.0
  %v667 = vmax.f32 %v643, 0.0
  %v668 = vmax.f32 %v646, 0.0
  %v669 = vmax.f32 %v651, 0.0
  %v670 = vmax.f32 %v654, 0.0
  %v671 = vmax.f32 %v659, 0.0
  %v672 = vmax.f32 %v662, 0.0
  %673 = vst [vmem:[%s3] sm:$0xff] %v665
  %674 = vst [vmem:[%s3 + $0x8] sm:$0xff] %v666
  %675 = vst [vmem:[%s3 + $0x10] sm:$0xff] %v667
  %676 = vst [vmem:[%s3 + $0x18] sm:$0xff] %v668
  %677 = vst [vmem:[%s3 + $0x20] sm:$0xff] %v669
  %678 = vst [vmem:[%s3 + $0x28] sm:$0xff] %v670
  %679 = vst [vmem:[%s3 + $0x30] sm:$0xff] %v671
  %680 = vst [vmem:[%s3 + $0x38] sm:$0xff] %v672
  // Predicated region
  $region14: #{forward.10} parent=0 // pred_check
    _
  $region15: #{forward.10} parent=0 // pred_check_branch
    %682 = sbr.rel (0) target = $region17
  $region16: #{forward.10} parent=0 // pred_region
    _
  $region17: #{forward.10} parent=0 // pred_fallthru
    _
  // Predicated region
  $region18: #{forward.10} parent=0 // pred_check
    _
  $region19: #{forward.10} parent=0 // pred_check_branch
    %684 = sbr.rel (0) target = $region21
  $region20: #{forward.10} parent=0 // pred_region
    _
  $region21: #{forward.10} parent=0 // pred_fallthru
    _

// kernel: forward.11
$region0: #{forward.11}
  #allocation0 [shape = 'u32[]', space=smem, size = 0x4, offset = 0x4, fixed_abs, tag = 'smem constant byte address 0x4 - core index']
  #allocation1 [shape = 'u32[144,128]{1,0:T(1,128)}', space=vmem, size = 0x12000, scoped, tag = 'internal scratch']
  %s0 = inlined_call_operand.vmem [shape: bf16[8,1664], index: 0, kind: input, shape index: {}]
  %s1 = inlined_call_operand.vmem [shape: bf16[1664,256], index: 1, kind: input, shape index: {}]
  %s2 = inlined_call_operand.vmem [shape: f32[1,256], index: 2, kind: input, shape index: {}]
  %s3 = inlined_call_operand.vmem [shape: bf16[256,128], index: 3, kind: input, shape index: {}]
  %s4 = inlined_call_operand.vmem [shape: f32[1,128], index: 4, kind: input, shape index: {}]
  %s5 = inlined_call_operand.vmem [shape: f32[8,128], index: 5, kind: output, shape index: {}]
  %s6 = sld [smem:[#allocation0]]
  $region30: #{forward.11} parent=0
    _
  %s8 = ssub.s32 1, %s6
  %s9 = scalar_select 0, %s8, %s6
  // Predicated region
  $region2: #{forward.11} parent=0 // pred_check
    _
  $region3: #{forward.11} parent=0 // pred_check_branch
    %11 = sbr.rel (0) target = $region5
  $region4: #{forward.11} parent=0 // pred_region
    _
  $region5: #{forward.11} parent=0 // pred_fallthru
    _
  // Predicated region
  $region6: #{forward.11} parent=0 // pred_check
    _
  $region7: #{forward.11} parent=0 // pred_check_branch
    %13 = sbr.rel (0) target = $region9
  $region8: #{forward.11} parent=0 // pred_region
    _
  $region9: #{forward.11} parent=0 // pred_fallthru
    _
  // Predicated region
  $region10: #{forward.11} parent=0 // pred_check
    _
  $region11: #{forward.11} parent=0 // pred_check_branch
    %15 = sbr.rel (0) target = $region13
  $region12: #{forward.11} parent=0 // pred_region
    _
  $region13: #{forward.11} parent=0 // pred_fallthru
    _
  // Predicated region
  $region14: #{forward.11} parent=0 // pred_check
    _
  $region15: #{forward.11} parent=0 // pred_check_branch
    %17 = sbr.rel (0) target = $region17
  $region16: #{forward.11} parent=0 // pred_region
    _
  $region17: #{forward.11} parent=0 // pred_fallthru
    _
  // Predicated region
  $region18: #{forward.11} parent=0 // pred_check
    _
  $region19: #{forward.11} parent=0 // pred_check_branch
    %19 = sbr.rel (0) target = $region21
  $region20: #{forward.11} parent=0 // pred_region
    _
  $region21: #{forward.11} parent=0 // pred_fallthru
    _
  %v21 = vld [vmem:[%s0] sm:$0xff]
  %v22 = vld [vmem:[%s0 + $0x8] sm:$0xff]
  %v23 = vld [vmem:[%s0 + $0x10] sm:$0xff]
  %v24 = vld [vmem:[%s0 + $0x18] sm:$0xff]
  %v25 = vld [vmem:[%s0 + $0x20] sm:$0xff]
  %v26 = vld [vmem:[%s0 + $0x28] sm:$0xff]
  %v27 = vld [vmem:[%s0 + $0x30] sm:$0xf]
  %v28 = vld [vmem:[%s1] sm:$0xff]
  %v29 = vld [vmem:[%s1 + $0x8] sm:$0xff]
  %v30 = vld [vmem:[%s1 + $0x10] sm:$0xff]
  %v31 = vld [vmem:[%s1 + $0x18] sm:$0xff]
  %v32 = vld [vmem:[%s1 + $0x20] sm:$0xff]
  %v33 = vld [vmem:[%s1 + $0x28] sm:$0xff]
  %v34 = vld [vmem:[%s1 + $0x30] sm:$0xff]
  %v35 = vld [vmem:[%s1 + $0x38] sm:$0xff]
  %v36 = vld [vmem:[%s1 + $0x40] sm:$0xff]
  %v37 = vld [vmem:[%s1 + $0x48] sm:$0xff]
  %v38 = vld [vmem:[%s1 + $0x50] sm:$0xff]
  %v39 = vld [vmem:[%s1 + $0x58] sm:$0xff]
  %v40 = vld [vmem:[%s1 + $0x60] sm:$0xff]
  %v41 = vld [vmem:[%s1 + $0x68] sm:$0xff]
  %v42 = vld [vmem:[%s1 + $0x70] sm:$0xff]
  %v43 = vld [vmem:[%s1 + $0x78] sm:$0xff]
  %v44 = vld [vmem:[%s1 + $0x80] sm:$0xff]
  %v45 = vld [vmem:[%s1 + $0x88] sm:$0xff]
  %v46 = vld [vmem:[%s1 + $0x90] sm:$0xff]
  %v47 = vld [vmem:[%s1 + $0x98] sm:$0xff]
  %v48 = vld [vmem:[%s1 + $0xa0] sm:$0xff]
  %v49 = vld [vmem:[%s1 + $0xa8] sm:$0xff]
  %v50 = vld [vmem:[%s1 + $0xb0] sm:$0xff]
  %v51 = vld [vmem:[%s1 + $0xb8] sm:$0xff]
  %v52 = vld [vmem:[%s1 + $0xc0] sm:$0xff]
  %v53 = vld [vmem:[%s1 + $0xc8] sm:$0xff]
  %v54 = vld [vmem:[%s1 + $0xd0] sm:$0xff]
  %v55 = vld [vmem:[%s1 + $0xd8] sm:$0xff]
  %v56 = vld [vmem:[%s1 + $0xe0] sm:$0xff]
  %v57 = vld [vmem:[%s1 + $0xe8] sm:$0xff]
  %v58 = vld [vmem:[%s1 + $0xf0] sm:$0xff]
  %v59 = vld [vmem:[%s1 + $0xf8] sm:$0xff]
  %v60 = vld [vmem:[%s1 + $0x100] sm:$0xff]
  %v61 = vld [vmem:[%s1 + $0x108] sm:$0xff]
  %v62 = vld [vmem:[%s1 + $0x110] sm:$0xff]
  %v63 = vld [vmem:[%s1 + $0x118] sm:$0xff]
  %v64 = vld [vmem:[%s1 + $0x120] sm:$0xff]
  %v65 = vld [vmem:[%s1 + $0x128] sm:$0xff]
  %v66 = vld [vmem:[%s1 + $0x130] sm:$0xff]
  %v67 = vld [vmem:[%s1 + $0x138] sm:$0xff]
  %v68 = vld [vmem:[%s1 + $0x140] sm:$0xff]
  %v69 = vld [vmem:[%s1 + $0x148] sm:$0xff]
  %v70 = vld [vmem:[%s1 + $0x150] sm:$0xff]
  %v71 = vld [vmem:[%s1 + $0x158] sm:$0xff]
  %v72 = vld [vmem:[%s1 + $0x160] sm:$0xff]
  %v73 = vld [vmem:[%s1 + $0x168] sm:$0xff]
  %v74 = vld [vmem:[%s1 + $0x170] sm:$0xff]
  %v75 = vld [vmem:[%s1 + $0x178] sm:$0xff]
  %v76 = vld [vmem:[%s1 + $0x180] sm:$0xff]
  %v77 = vld [vmem:[%s1 + $0x188] sm:$0xff]
  %v78 = vld [vmem:[%s1 + $0x190] sm:$0xff]
  %v79 = vld [vmem:[%s1 + $0x198] sm:$0xff]
  %v80 = vld [vmem:[%s1 + $0x1a0] sm:$0xff]
  %v81 = vld [vmem:[%s1 + $0x1a8] sm:$0xff]
  %v82 = vld [vmem:[%s1 + $0x1b0] sm:$0xff]
  %v83 = vld [vmem:[%s1 + $0x1b8] sm:$0xff]
  %v84 = vld [vmem:[%s1 + $0x1c0] sm:$0xff]
  %v85 = vld [vmem:[%s1 + $0x1c8] sm:$0xff]
  %v86 = vld [vmem:[%s1 + $0x1d0] sm:$0xff]
  %v87 = vld [vmem:[%s1 + $0x1d8] sm:$0xff]
  %v88 = vld [vmem:[%s1 + $0x1e0] sm:$0xff]
  %v89 = vld [vmem:[%s1 + $0x1e8] sm:$0xff]
  %v90 = vld [vmem:[%s1 + $0x1f0] sm:$0xff]
  %v91 = vld [vmem:[%s1 + $0x1f8] sm:$0xff]
  %v92 = vld [vmem:[%s1 + $0x200] sm:$0xff]
  %v93 = vld [vmem:[%s1 + $0x208] sm:$0xff]
  %v94 = vld [vmem:[%s1 + $0x210] sm:$0xff]
  %v95 = vld [vmem:[%s1 + $0x218] sm:$0xff]
  %v96 = vld [vmem:[%s1 + $0x220] sm:$0xff]
  %v97 = vld [vmem:[%s1 + $0x228] sm:$0xff]
  %v98 = vld [vmem:[%s1 + $0x230] sm:$0xff]
  %v99 = vld [vmem:[%s1 + $0x238] sm:$0xff]
  %v100 = vld [vmem:[%s1 + $0x240] sm:$0xff]
  %v101 = vld [vmem:[%s1 + $0x248] sm:$0xff]
  %v102 = vld [vmem:[%s1 + $0x250] sm:$0xff]
  %v103 = vld [vmem:[%s1 + $0x258] sm:$0xff]
  %v104 = vld [vmem:[%s1 + $0x260] sm:$0xff]
  %v105 = vld [vmem:[%s1 + $0x268] sm:$0xff]
  %v106 = vld [vmem:[%s1 + $0x270] sm:$0xff]
  %v107 = vld [vmem:[%s1 + $0x278] sm:$0xff]
  %v108 = vld [vmem:[%s1 + $0x280] sm:$0xff]
  %v109 = vld [vmem:[%s1 + $0x288] sm:$0xff]
  %v110 = vld [vmem:[%s1 + $0x290] sm:$0xff]
  %v111 = vld [vmem:[%s1 + $0x298] sm:$0xff]
  %v112 = vld [vmem:[%s1 + $0x2a0] sm:$0xff]
  %v113 = vld [vmem:[%s1 + $0x2a8] sm:$0xff]
  %v114 = vld [vmem:[%s1 + $0x2b0] sm:$0xff]
  %v115 = vld [vmem:[%s1 + $0x2b8] sm:$0xff]
  %v116 = vld [vmem:[%s1 + $0x2c0] sm:$0xff]
  %v117 = vld [vmem:[%s1 + $0x2c8] sm:$0xff]
  %v118 = vld [vmem:[%s1 + $0x2d0] sm:$0xff]
  %v119 = vld [vmem:[%s1 + $0x2d8] sm:$0xff]
  %v120 = vld [vmem:[%s1 + $0x2e0] sm:$0xff]
  %v121 = vld [vmem:[%s1 + $0x2e8] sm:$0xff]
  %v122 = vld [vmem:[%s1 + $0x2f0] sm:$0xff]
  %v123 = vld [vmem:[%s1 + $0x2f8] sm:$0xff]
  %v124 = vld [vmem:[%s1 + $0x300] sm:$0xff]
  %v125 = vld [vmem:[%s1 + $0x308] sm:$0xff]
  %v126 = vld [vmem:[%s1 + $0x310] sm:$0xff]
  %v127 = vld [vmem:[%s1 + $0x318] sm:$0xff]
  %v128 = vld [vmem:[%s1 + $0x320] sm:$0xff]
  %v129 = vld [vmem:[%s1 + $0x328] sm:$0xff]
  %v130 = vld [vmem:[%s1 + $0x330] sm:$0xff]
  %v131 = vld [vmem:[%s1 + $0x338] sm:$0xff]
  %v132 = vld [vmem:[%s1 + $0x340] sm:$0xff]
  %v133 = vld [vmem:[%s1 + $0x348] sm:$0xff]
  %v134 = vld [vmem:[%s1 + $0x350] sm:$0xff]
  %v135 = vld [vmem:[%s1 + $0x358] sm:$0xff]
  %v136 = vld [vmem:[%s1 + $0x360] sm:$0xff]
  %v137 = vld [vmem:[%s1 + $0x368] sm:$0xff]
  %v138 = vld [vmem:[%s1 + $0x370] sm:$0xff]
  %v139 = vld [vmem:[%s1 + $0x378] sm:$0xff]
  %v140 = vld [vmem:[%s1 + $0x380] sm:$0xff]
  %v141 = vld [vmem:[%s1 + $0x388] sm:$0xff]
  %v142 = vld [vmem:[%s1 + $0x390] sm:$0xff]
  %v143 = vld [vmem:[%s1 + $0x398] sm:$0xff]
  %v144 = vld [vmem:[%s1 + $0x3a0] sm:$0xff]
  %v145 = vld [vmem:[%s1 + $0x3a8] sm:$0xff]
  %v146 = vld [vmem:[%s1 + $0x3b0] sm:$0xff]
  %v147 = vld [vmem:[%s1 + $0x3b8] sm:$0xff]
  %v148 = vld [vmem:[%s1 + $0x3c0] sm:$0xff]
  %v149 = vld [vmem:[%s1 + $0x3c8] sm:$0xff]
  %v150 = vld [vmem:[%s1 + $0x3d0] sm:$0xff]
  %v151 = vld [vmem:[%s1 + $0x3d8] sm:$0xff]
  %v152 = vld [vmem:[%s1 + $0x3e0] sm:$0xff]
  %v153 = vld [vmem:[%s1 + $0x3e8] sm:$0xff]
  %v154 = vld [vmem:[%s1 + $0x3f0] sm:$0xff]
  %v155 = vld [vmem:[%s1 + $0x3f8] sm:$0xff]
  %v156 = vld [vmem:[%s1 + $0x400] sm:$0xff]
  %v157 = vld [vmem:[%s1 + $0x408] sm:$0xff]
  %v158 = vld [vmem:[%s1 + $0x410] sm:$0xff]
  %v159 = vld [vmem:[%s1 + $0x418] sm:$0xff]
  %v160 = vld [vmem:[%s1 + $0x420] sm:$0xff]
  %v161 = vld [vmem:[%s1 + $0x428] sm:$0xff]
  %v162 = vld [vmem:[%s1 + $0x430] sm:$0xff]
  %v163 = vld [vmem:[%s1 + $0x438] sm:$0xff]
  %v164 = vld [vmem:[%s1 + $0x440] sm:$0xff]
  %v165 = vld [vmem:[%s1 + $0x448] sm:$0xff]
  %v166 = vld [vmem:[%s1 + $0x450] sm:$0xff]
  %v167 = vld [vmem:[%s1 + $0x458] sm:$0xff]
  %v168 = vld [vmem:[%s1 + $0x460] sm:$0xff]
  %v169 = vld [vmem:[%s1 + $0x468] sm:$0xff]
  %v170 = vld [vmem:[%s1 + $0x470] sm:$0xff]
  %v171 = vld [vmem:[%s1 + $0x478] sm:$0xff]
  %v172 = vld [vmem:[%s1 + $0x480] sm:$0xff]
  %v173 = vld [vmem:[%s1 + $0x488] sm:$0xff]
  %v174 = vld [vmem:[%s1 + $0x490] sm:$0xff]
  %v175 = vld [vmem:[%s1 + $0x498] sm:$0xff]
  %v176 = vld [vmem:[%s1 + $0x4a0] sm:$0xff]
  %v177 = vld [vmem:[%s1 + $0x4a8] sm:$0xff]
  %v178 = vld [vmem:[%s1 + $0x4b0] sm:$0xff]
  %v179 = vld [vmem:[%s1 + $0x4b8] sm:$0xff]
  %v180 = vld [vmem:[%s1 + $0x4c0] sm:$0xff]
  %v181 = vld [vmem:[%s1 + $0x4c8] sm:$0xff]
  %v182 = vld [vmem:[%s1 + $0x4d0] sm:$0xff]
  %v183 = vld [vmem:[%s1 + $0x4d8] sm:$0xff]
  %v184 = vld [vmem:[%s1 + $0x4e0] sm:$0xff]
  %v185 = vld [vmem:[%s1 + $0x4e8] sm:$0xff]
  %v186 = vld [vmem:[%s1 + $0x4f0] sm:$0xff]
  %v187 = vld [vmem:[%s1 + $0x4f8] sm:$0xff]
  %v188 = vld [vmem:[%s1 + $0x500] sm:$0xff]
  %v189 = vld [vmem:[%s1 + $0x508] sm:$0xff]
  %v190 = vld [vmem:[%s1 + $0x510] sm:$0xff]
  %v191 = vld [vmem:[%s1 + $0x518] sm:$0xff]
  %v192 = vld [vmem:[%s1 + $0x520] sm:$0xff]
  %v193 = vld [vmem:[%s1 + $0x528] sm:$0xff]
  %v194 = vld [vmem:[%s1 + $0x530] sm:$0xff]
  %v195 = vld [vmem:[%s1 + $0x538] sm:$0xff]
  %v196 = vld [vmem:[%s1 + $0x540] sm:$0xff]
  %v197 = vld [vmem:[%s1 + $0x548] sm:$0xff]
  %v198 = vld [vmem:[%s1 + $0x550] sm:$0xff]
  %v199 = vld [vmem:[%s1 + $0x558] sm:$0xff]
  %v200 = vld [vmem:[%s1 + $0x560] sm:$0xff]
  %v201 = vld [vmem:[%s1 + $0x568] sm:$0xff]
  %v202 = vld [vmem:[%s1 + $0x570] sm:$0xff]
  %v203 = vld [vmem:[%s1 + $0x578] sm:$0xff]
  %v204 = vld [vmem:[%s1 + $0x580] sm:$0xff]
  %v205 = vld [vmem:[%s1 + $0x588] sm:$0xff]
  %v206 = vld [vmem:[%s1 + $0x590] sm:$0xff]
  %v207 = vld [vmem:[%s1 + $0x598] sm:$0xff]
  %v208 = vld [vmem:[%s1 + $0x5a0] sm:$0xff]
  %v209 = vld [vmem:[%s1 + $0x5a8] sm:$0xff]
  %v210 = vld [vmem:[%s1 + $0x5b0] sm:$0xff]
  %v211 = vld [vmem:[%s1 + $0x5b8] sm:$0xff]
  %v212 = vld [vmem:[%s1 + $0x5c0] sm:$0xff]
  %v213 = vld [vmem:[%s1 + $0x5c8] sm:$0xff]
  %v214 = vld [vmem:[%s1 + $0x5d0] sm:$0xff]
  %v215 = vld [vmem:[%s1 + $0x5d8] sm:$0xff]
  %v216 = vld [vmem:[%s1 + $0x5e0] sm:$0xff]
  %v217 = vld [vmem:[%s1 + $0x5e8] sm:$0xff]
  %v218 = vld [vmem:[%s1 + $0x5f0] sm:$0xff]
  %v219 = vld [vmem:[%s1 + $0x5f8] sm:$0xff]
  %v220 = vld [vmem:[%s1 + $0x600] sm:$0xff]
  %v221 = vld [vmem:[%s1 + $0x608] sm:$0xff]
  %v222 = vld [vmem:[%s1 + $0x610] sm:$0xff]
  %v223 = vld [vmem:[%s1 + $0x618] sm:$0xff]
  %v224 = vld [vmem:[%s1 + $0x620] sm:$0xff]
  %v225 = vld [vmem:[%s1 + $0x628] sm:$0xff]
  %v226 = vld [vmem:[%s1 + $0x630] sm:$0xff]
  %v227 = vld [vmem:[%s1 + $0x638] sm:$0xff]
  %v228 = vld [vmem:[%s1 + $0x640] sm:$0xff]
  %v229 = vld [vmem:[%s1 + $0x648] sm:$0xff]
  %v230 = vld [vmem:[%s1 + $0x650] sm:$0xff]
  %v231 = vld [vmem:[%s1 + $0x658] sm:$0xff]
  %v232 = vld [vmem:[%s1 + $0x660] sm:$0xff]
  %v233 = vld [vmem:[%s1 + $0x668] sm:$0xff]
  %v234 = vld [vmem:[%s1 + $0x670] sm:$0xff]
  %v235 = vld [vmem:[%s1 + $0x678] sm:$0xff]
  %v236 = vld [vmem:[%s2] sm:$0x3]
  %v238 = vlaneseq
  %v239 = vshrl.u32 %v238, 7
  %v240 = vsub.s32 0, %v239
  %v241 = vrot.slane %v236, %v240
  %v242 = vlaneseq
  %v243 = vshrl.u32 %v242, 7
  %v244 = vsub.s32 1, %v243
  %v245 = vrot.slane %v236, %v244
  %v255 = vunpack.c.l.b16 %v21
  %v256 = vunpack.c.h.b16 %v21
  %v257 = vunpack.c.l.b16 %v22
  %v258 = vunpack.c.h.b16 %v22
  %v259 = vunpack.c.l.b16 %v23
  %v260 = vunpack.c.h.b16 %v23
  %v261 = vunpack.c.l.b16 %v24
  %v262 = vunpack.c.h.b16 %v24
  %v263 = vunpack.c.l.b16 %v25
  %v264 = vunpack.c.h.b16 %v25
  %v265 = vunpack.c.l.b16 %v26
  %v266 = vunpack.c.h.b16 %v26
  %v267 = vunpack.c.l.b16 %v27
  %v268 = vpack.c.b16 %v255, %v255
  %v269 = vpack.c.b16 %v256, %v256
  %v270 = vpack.c.b16 %v257, %v257
  %v271 = vpack.c.b16 %v258, %v258
  %v272 = vpack.c.b16 %v259, %v259
  %v273 = vpack.c.b16 %v260, %v260
  %v274 = vpack.c.b16 %v261, %v261
  %v275 = vpack.c.b16 %v262, %v262
  %v276 = vpack.c.b16 %v263, %v263
  %v277 = vpack.c.b16 %v264, %v264
  %v278 = vpack.c.b16 %v265, %v265
  %v279 = vpack.c.b16 %v266, %v266
  %v280 = vpack.c.b16 %v267, %v267
  %v502 = vunpack.c.l.b16 %v28
  %v503 = vunpack.c.h.b16 %v28
  %v504 = vunpack.c.l.b16 %v29
  %v505 = vunpack.c.h.b16 %v29
  %v506 = vunpack.c.l.b16 %v30
  %v507 = vunpack.c.h.b16 %v30
  %v508 = vunpack.c.l.b16 %v31
  %v509 = vunpack.c.h.b16 %v31
  %v510 = vunpack.c.l.b16 %v32
  %v511 = vunpack.c.h.b16 %v32
  %v512 = vunpack.c.l.b16 %v33
  %v513 = vunpack.c.h.b16 %v33
  %v514 = vunpack.c.l.b16 %v34
  %v515 = vunpack.c.h.b16 %v34
  %v516 = vunpack.c.l.b16 %v35
  %v517 = vunpack.c.h.b16 %v35
  %v518 = vunpack.c.l.b16 %v36
  %v519 = vunpack.c.h.b16 %v36
  %v520 = vunpack.c.l.b16 %v37
  %v521 = vunpack.c.h.b16 %v37
  %v522 = vunpack.c.l.b16 %v38
  %v523 = vunpack.c.h.b16 %v38
  %v524 = vunpack.c.l.b16 %v39
  %v525 = vunpack.c.h.b16 %v39
  %v526 = vunpack.c.l.b16 %v40
  %v527 = vunpack.c.h.b16 %v40
  %v528 = vunpack.c.l.b16 %v41
  %v529 = vunpack.c.h.b16 %v41
  %v530 = vunpack.c.l.b16 %v42
  %v531 = vunpack.c.h.b16 %v42
  %v532 = vunpack.c.l.b16 %v43
  %v533 = vunpack.c.h.b16 %v43
  %v534 = vunpack.c.l.b16 %v44
  %v535 = vunpack.c.h.b16 %v44
  %v536 = vunpack.c.l.b16 %v45
  %v537 = vunpack.c.h.b16 %v45
  %v538 = vunpack.c.l.b16 %v46
  %v539 = vunpack.c.h.b16 %v46
  %v540 = vunpack.c.l.b16 %v47
  %v541 = vunpack.c.h.b16 %v47
  %v542 = vunpack.c.l.b16 %v48
  %v543 = vunpack.c.h.b16 %v48
  %v544 = vunpack.c.l.b16 %v49
  %v545 = vunpack.c.h.b16 %v49
  %v546 = vunpack.c.l.b16 %v50
  %v547 = vunpack.c.h.b16 %v50
  %v548 = vunpack.c.l.b16 %v51
  %v549 = vunpack.c.h.b16 %v51
  %v550 = vunpack.c.l.b16 %v52
  %v551 = vunpack.c.h.b16 %v52
  %v552 = vunpack.c.l.b16 %v53
  %v553 = vunpack.c.h.b16 %v53
  %v554 = vunpack.c.l.b16 %v54
  %v555 = vunpack.c.h.b16 %v54
  %v556 = vunpack.c.l.b16 %v55
  %v557 = vunpack.c.h.b16 %v55
  %v558 = vunpack.c.l.b16 %v56
  %v559 = vunpack.c.h.b16 %v56
  %v560 = vunpack.c.l.b16 %v57
  %v561 = vunpack.c.h.b16 %v57
  %v562 = vunpack.c.l.b16 %v58
  %v563 = vunpack.c.h.b16 %v58
  %v564 = vunpack.c.l.b16 %v59
  %v565 = vunpack.c.h.b16 %v59
  %v566 = vunpack.c.l.b16 %v60
  %v567 = vunpack.c.h.b16 %v60
  %v568 = vunpack.c.l.b16 %v61
  %v569 = vunpack.c.h.b16 %v61
  %v570 = vunpack.c.l.b16 %v62
  %v571 = vunpack.c.h.b16 %v62
  %v572 = vunpack.c.l.b16 %v63
  %v573 = vunpack.c.h.b16 %v63
  %v574 = vunpack.c.l.b16 %v64
  %v575 = vunpack.c.h.b16 %v64
  %v576 = vunpack.c.l.b16 %v65
  %v577 = vunpack.c.h.b16 %v65
  %v578 = vunpack.c.l.b16 %v66
  %v579 = vunpack.c.h.b16 %v66
  %v580 = vunpack.c.l.b16 %v67
  %v581 = vunpack.c.h.b16 %v67
  %v582 = vunpack.c.l.b16 %v68
  %v583 = vunpack.c.h.b16 %v68
  %v584 = vunpack.c.l.b16 %v69
  %v585 = vunpack.c.h.b16 %v69
  %v586 = vunpack.c.l.b16 %v70
  %v587 = vunpack.c.h.b16 %v70
  %v588 = vunpack.c.l.b16 %v71
  %v589 = vunpack.c.h.b16 %v71
  %v590 = vunpack.c.l.b16 %v72
  %v591 = vunpack.c.h.b16 %v72
  %v592 = vunpack.c.l.b16 %v73
  %v593 = vunpack.c.h.b16 %v73
  %v594 = vunpack.c.l.b16 %v74
  %v595 = vunpack.c.h.b16 %v74
  %v596 = vunpack.c.l.b16 %v75
  %v597 = vunpack.c.h.b16 %v75
  %v598 = vunpack.c.l.b16 %v76
  %v599 = vunpack.c.h.b16 %v76
  %v600 = vunpack.c.l.b16 %v77
  %v601 = vunpack.c.h.b16 %v77
  %v602 = vunpack.c.l.b16 %v78
  %v603 = vunpack.c.h.b16 %v78
  %v604 = vunpack.c.l.b16 %v79
  %v605 = vunpack.c.h.b16 %v79
  %v606 = vunpack.c.l.b16 %v80
  %v607 = vunpack.c.h.b16 %v80
  %v608 = vunpack.c.l.b16 %v81
  %v609 = vunpack.c.h.b16 %v81
  %v610 = vunpack.c.l.b16 %v82
  %v611 = vunpack.c.h.b16 %v82
  %v612 = vunpack.c.l.b16 %v83
  %v613 = vunpack.c.h.b16 %v83
  %v614 = vunpack.c.l.b16 %v84
  %v615 = vunpack.c.h.b16 %v84
  %v616 = vunpack.c.l.b16 %v85
  %v617 = vunpack.c.h.b16 %v85
  %v618 = vunpack.c.l.b16 %v86
  %v619 = vunpack.c.h.b16 %v86
  %v620 = vunpack.c.l.b16 %v87
  %v621 = vunpack.c.h.b16 %v87
  %v622 = vunpack.c.l.b16 %v88
  %v623 = vunpack.c.h.b16 %v88
  %v624 = vunpack.c.l.b16 %v89
  %v625 = vunpack.c.h.b16 %v89
  %v626 = vunpack.c.l.b16 %v90
  %v627 = vunpack.c.h.b16 %v90
  %v628 = vunpack.c.l.b16 %v91
  %v629 = vunpack.c.h.b16 %v91
  %v630 = vunpack.c.l.b16 %v92
  %v631 = vunpack.c.h.b16 %v92
  %v632 = vunpack.c.l.b16 %v93
  %v633 = vunpack.c.h.b16 %v93
  %v634 = vunpack.c.l.b16 %v94
  %v635 = vunpack.c.h.b16 %v94
  %v636 = vunpack.c.l.b16 %v95
  %v637 = vunpack.c.h.b16 %v95
  %v638 = vunpack.c.l.b16 %v96
  %v639 = vunpack.c.h.b16 %v96
  %v640 = vunpack.c.l.b16 %v97
  %v641 = vunpack.c.h.b16 %v97
  %v642 = vunpack.c.l.b16 %v98
  %v643 = vunpack.c.h.b16 %v98
  %v644 = vunpack.c.l.b16 %v99
  %v645 = vunpack.c.h.b16 %v99
  %v646 = vunpack.c.l.b16 %v100
  %v647 = vunpack.c.h.b16 %v100
  %v648 = vunpack.c.l.b16 %v101
  %v649 = vunpack.c.h.b16 %v101
  %v650 = vunpack.c.l.b16 %v102
  %v651 = vunpack.c.h.b16 %v102
  %v652 = vunpack.c.l.b16 %v103
  %v653 = vunpack.c.h.b16 %v103
  %v654 = vunpack.c.l.b16 %v104
  %v655 = vunpack.c.h.b16 %v104
  %v656 = vunpack.c.l.b16 %v105
  %v657 = vunpack.c.h.b16 %v105
  %v658 = vunpack.c.l.b16 %v106
  %v659 = vunpack.c.h.b16 %v106
  %v660 = vunpack.c.l.b16 %v107
  %v661 = vunpack.c.h.b16 %v107
  %v662 = vunpack.c.l.b16 %v108
  %v663 = vunpack.c.h.b16 %v108
  %v664 = vunpack.c.l.b16 %v109
  %v665 = vunpack.c.h.b16 %v109
  %v666 = vunpack.c.l.b16 %v110
  %v667 = vunpack.c.h.b16 %v110
  %v668 = vunpack.c.l.b16 %v111
  %v669 = vunpack.c.h.b16 %v111
  %v670 = vunpack.c.l.b16 %v112
  %v671 = vunpack.c.h.b16 %v112
  %v672 = vunpack.c.l.b16 %v113
  %v673 = vunpack.c.h.b16 %v113
  %v674 = vunpack.c.l.b16 %v114
  %v675 = vunpack.c.h.b16 %v114
  %v676 = vunpack.c.l.b16 %v115
  %v677 = vunpack.c.h.b16 %v115
  %v678 = vunpack.c.l.b16 %v116
  %v679 = vunpack.c.h.b16 %v116
  %v680 = vunpack.c.l.b16 %v117
  %v681 = vunpack.c.h.b16 %v117
  %v682 = vunpack.c.l.b16 %v118
  %v683 = vunpack.c.h.b16 %v118
  %v684 = vunpack.c.l.b16 %v119
  %v685 = vunpack.c.h.b16 %v119
  %v686 = vunpack.c.l.b16 %v120
  %v687 = vunpack.c.h.b16 %v120
  %v688 = vunpack.c.l.b16 %v121
  %v689 = vunpack.c.h.b16 %v121
  %v690 = vunpack.c.l.b16 %v122
  %v691 = vunpack.c.h.b16 %v122
  %v692 = vunpack.c.l.b16 %v123
  %v693 = vunpack.c.h.b16 %v123
  %v694 = vunpack.c.l.b16 %v124
  %v695 = vunpack.c.h.b16 %v124
  %v696 = vunpack.c.l.b16 %v125
  %v697 = vunpack.c.h.b16 %v125
  %v698 = vunpack.c.l.b16 %v126
  %v699 = vunpack.c.h.b16 %v126
  %v700 = vunpack.c.l.b16 %v127
  %v701 = vunpack.c.h.b16 %v127
  %v702 = vunpack.c.l.b16 %v128
  %v703 = vunpack.c.h.b16 %v128
  %v704 = vunpack.c.l.b16 %v129
  %v705 = vunpack.c.h.b16 %v129
  %v706 = vunpack.c.l.b16 %v130
  %v707 = vunpack.c.h.b16 %v130
  %v708 = vunpack.c.l.b16 %v131
  %v709 = vunpack.c.h.b16 %v131
  %v710 = vunpack.c.l.b16 %v132
  %v711 = vunpack.c.h.b16 %v132
  %v712 = vunpack.c.l.b16 %v133
  %v713 = vunpack.c.h.b16 %v133
  %v714 = vunpack.c.l.b16 %v134
  %v715 = vunpack.c.h.b16 %v134
  %v716 = vunpack.c.l.b16 %v135
  %v717 = vunpack.c.h.b16 %v135
  %v718 = vunpack.c.l.b16 %v136
  %v719 = vunpack.c.h.b16 %v136
  %v720 = vunpack.c.l.b16 %v137
  %v721 = vunpack.c.h.b16 %v137
  %v722 = vunpack.c.l.b16 %v138
  %v723 = vunpack.c.h.b16 %v138
  %v724 = vunpack.c.l.b16 %v139
  %v725 = vunpack.c.h.b16 %v139
  %v726 = vunpack.c.l.b16 %v140
  %v727 = vunpack.c.h.b16 %v140
  %v728 = vunpack.c.l.b16 %v141
  %v729 = vunpack.c.h.b16 %v141
  %v730 = vunpack.c.l.b16 %v142
  %v731 = vunpack.c.h.b16 %v142
  %v732 = vunpack.c.l.b16 %v143
  %v733 = vunpack.c.h.b16 %v143
  %v734 = vunpack.c.l.b16 %v144
  %v735 = vunpack.c.h.b16 %v144
  %v736 = vunpack.c.l.b16 %v145
  %v737 = vunpack.c.h.b16 %v145
  %v738 = vunpack.c.l.b16 %v146
  %v739 = vunpack.c.h.b16 %v146
  %v740 = vunpack.c.l.b16 %v147
  %v741 = vunpack.c.h.b16 %v147
  %v742 = vunpack.c.l.b16 %v148
  %v743 = vunpack.c.h.b16 %v148
  %v744 = vunpack.c.l.b16 %v149
  %v745 = vunpack.c.h.b16 %v149
  %v746 = vunpack.c.l.b16 %v150
  %v747 = vunpack.c.h.b16 %v150
  %v748 = vunpack.c.l.b16 %v151
  %v749 = vunpack.c.h.b16 %v151
  %v750 = vunpack.c.l.b16 %v152
  %v751 = vunpack.c.h.b16 %v152
  %v752 = vunpack.c.l.b16 %v153
  %v753 = vunpack.c.h.b16 %v153
  %v754 = vunpack.c.l.b16 %v154
  %v755 = vunpack.c.h.b16 %v154
  %v756 = vunpack.c.l.b16 %v155
  %v757 = vunpack.c.h.b16 %v155
  %v758 = vunpack.c.l.b16 %v156
  %v759 = vunpack.c.h.b16 %v156
  %v760 = vunpack.c.l.b16 %v157
  %v761 = vunpack.c.h.b16 %v157
  %v762 = vunpack.c.l.b16 %v158
  %v763 = vunpack.c.h.b16 %v158
  %v764 = vunpack.c.l.b16 %v159
  %v765 = vunpack.c.h.b16 %v159
  %v766 = vunpack.c.l.b16 %v160
  %v767 = vunpack.c.h.b16 %v160
  %v768 = vunpack.c.l.b16 %v161
  %v769 = vunpack.c.h.b16 %v161
  %v770 = vunpack.c.l.b16 %v162
  %v771 = vunpack.c.h.b16 %v162
  %v772 = vunpack.c.l.b16 %v163
  %v773 = vunpack.c.h.b16 %v163
  %v774 = vunpack.c.l.b16 %v164
  %v775 = vunpack.c.h.b16 %v164
  %v776 = vunpack.c.l.b16 %v165
  %v777 = vunpack.c.h.b16 %v165
  %v778 = vunpack.c.l.b16 %v166
  %v779 = vunpack.c.h.b16 %v166
  %v780 = vunpack.c.l.b16 %v167
  %v781 = vunpack.c.h.b16 %v167
  %v782 = vunpack.c.l.b16 %v168
  %v783 = vunpack.c.h.b16 %v168
  %v784 = vunpack.c.l.b16 %v169
  %v785 = vunpack.c.h.b16 %v169
  %v786 = vunpack.c.l.b16 %v170
  %v787 = vunpack.c.h.b16 %v170
  %v788 = vunpack.c.l.b16 %v171
  %v789 = vunpack.c.h.b16 %v171
  %v790 = vunpack.c.l.b16 %v172
  %v791 = vunpack.c.h.b16 %v172
  %v792 = vunpack.c.l.b16 %v173
  %v793 = vunpack.c.h.b16 %v173
  %v794 = vunpack.c.l.b16 %v174
  %v795 = vunpack.c.h.b16 %v174
  %v796 = vunpack.c.l.b16 %v175
  %v797 = vunpack.c.h.b16 %v175
  %v798 = vunpack.c.l.b16 %v176
  %v799 = vunpack.c.h.b16 %v176
  %v800 = vunpack.c.l.b16 %v177
  %v801 = vunpack.c.h.b16 %v177
  %v802 = vunpack.c.l.b16 %v178
  %v803 = vunpack.c.h.b16 %v178
  %v804 = vunpack.c.l.b16 %v179
  %v805 = vunpack.c.h.b16 %v179
  %v806 = vunpack.c.l.b16 %v180
  %v807 = vunpack.c.h.b16 %v180
  %v808 = vunpack.c.l.b16 %v181
  %v809 = vunpack.c.h.b16 %v181
  %v810 = vunpack.c.l.b16 %v182
  %v811 = vunpack.c.h.b16 %v182
  %v812 = vunpack.c.l.b16 %v183
  %v813 = vunpack.c.h.b16 %v183
  %v814 = vunpack.c.l.b16 %v184
  %v815 = vunpack.c.h.b16 %v184
  %v816 = vunpack.c.l.b16 %v185
  %v817 = vunpack.c.h.b16 %v185
  %v818 = vunpack.c.l.b16 %v186
  %v819 = vunpack.c.h.b16 %v186
  %v820 = vunpack.c.l.b16 %v187
  %v821 = vunpack.c.h.b16 %v187
  %v822 = vunpack.c.l.b16 %v188
  %v823 = vunpack.c.h.b16 %v188
  %v824 = vunpack.c.l.b16 %v189
  %v825 = vunpack.c.h.b16 %v189
  %v826 = vunpack.c.l.b16 %v190
  %v827 = vunpack.c.h.b16 %v190
  %v828 = vunpack.c.l.b16 %v191
  %v829 = vunpack.c.h.b16 %v191
  %v830 = vunpack.c.l.b16 %v192
  %v831 = vunpack.c.h.b16 %v192
  %v832 = vunpack.c.l.b16 %v193
  %v833 = vunpack.c.h.b16 %v193
  %v834 = vunpack.c.l.b16 %v194
  %v835 = vunpack.c.h.b16 %v194
  %v836 = vunpack.c.l.b16 %v195
  %v837 = vunpack.c.h.b16 %v195
  %v838 = vunpack.c.l.b16 %v196
  %v839 = vunpack.c.h.b16 %v196
  %v840 = vunpack.c.l.b16 %v197
  %v841 = vunpack.c.h.b16 %v197
  %v842 = vunpack.c.l.b16 %v198
  %v843 = vunpack.c.h.b16 %v198
  %v844 = vunpack.c.l.b16 %v199
  %v845 = vunpack.c.h.b16 %v199
  %v846 = vunpack.c.l.b16 %v200
  %v847 = vunpack.c.h.b16 %v200
  %v848 = vunpack.c.l.b16 %v201
  %v849 = vunpack.c.h.b16 %v201
  %v850 = vunpack.c.l.b16 %v202
  %v851 = vunpack.c.h.b16 %v202
  %v852 = vunpack.c.l.b16 %v203
  %v853 = vunpack.c.h.b16 %v203
  %v854 = vunpack.c.l.b16 %v204
  %v855 = vunpack.c.h.b16 %v204
  %v856 = vunpack.c.l.b16 %v205
  %v857 = vunpack.c.h.b16 %v205
  %v858 = vunpack.c.l.b16 %v206
  %v859 = vunpack.c.h.b16 %v206
  %v860 = vunpack.c.l.b16 %v207
  %v861 = vunpack.c.h.b16 %v207
  %v862 = vunpack.c.l.b16 %v208
  %v863 = vunpack.c.h.b16 %v208
  %v864 = vunpack.c.l.b16 %v209
  %v865 = vunpack.c.h.b16 %v209
  %v866 = vunpack.c.l.b16 %v210
  %v867 = vunpack.c.h.b16 %v210
  %v868 = vunpack.c.l.b16 %v211
  %v869 = vunpack.c.h.b16 %v211
  %v870 = vunpack.c.l.b16 %v212
  %v871 = vunpack.c.h.b16 %v212
  %v872 = vunpack.c.l.b16 %v213
  %v873 = vunpack.c.h.b16 %v213
  %v874 = vunpack.c.l.b16 %v214
  %v875 = vunpack.c.h.b16 %v214
  %v876 = vunpack.c.l.b16 %v215
  %v877 = vunpack.c.h.b16 %v215
  %v878 = vunpack.c.l.b16 %v216
  %v879 = vunpack.c.h.b16 %v216
  %v880 = vunpack.c.l.b16 %v217
  %v881 = vunpack.c.h.b16 %v217
  %v882 = vunpack.c.l.b16 %v218
  %v883 = vunpack.c.h.b16 %v218
  %v884 = vunpack.c.l.b16 %v219
  %v885 = vunpack.c.h.b16 %v219
  %v886 = vunpack.c.l.b16 %v220
  %v887 = vunpack.c.h.b16 %v220
  %v888 = vunpack.c.l.b16 %v221
  %v889 = vunpack.c.h.b16 %v221
  %v890 = vunpack.c.l.b16 %v222
  %v891 = vunpack.c.h.b16 %v222
  %v892 = vunpack.c.l.b16 %v223
  %v893 = vunpack.c.h.b16 %v223
  %v894 = vunpack.c.l.b16 %v224
  %v895 = vunpack.c.h.b16 %v224
  %v896 = vunpack.c.l.b16 %v225
  %v897 = vunpack.c.h.b16 %v225
  %v898 = vunpack.c.l.b16 %v226
  %v899 = vunpack.c.h.b16 %v226
  %v900 = vunpack.c.l.b16 %v227
  %v901 = vunpack.c.h.b16 %v227
  %v902 = vunpack.c.l.b16 %v228
  %v903 = vunpack.c.h.b16 %v228
  %v904 = vunpack.c.l.b16 %v229
  %v905 = vunpack.c.h.b16 %v229
  %v906 = vunpack.c.l.b16 %v230
  %v907 = vunpack.c.h.b16 %v230
  %v908 = vunpack.c.l.b16 %v231
  %v909 = vunpack.c.h.b16 %v231
  %v910 = vunpack.c.l.b16 %v232
  %v911 = vunpack.c.h.b16 %v232
  %v912 = vunpack.c.l.b16 %v233
  %v913 = vunpack.c.h.b16 %v233
  %v914 = vunpack.c.l.b16 %v234
  %v915 = vunpack.c.h.b16 %v234
  %v916 = vunpack.c.l.b16 %v235
  %v917 = vunpack.c.h.b16 %v235
  %v918 = vpack.c.b16 %v504, %v502
  %v919 = vpack.c.b16 %v505, %v503
  %v920 = vpack.c.b16 %v508, %v506
  %v921 = vpack.c.b16 %v509, %v507
  %v922 = vpack.c.b16 %v512, %v510
  %v923 = vpack.c.b16 %v513, %v511
  %v924 = vpack.c.b16 %v516, %v514
  %v925 = vpack.c.b16 %v517, %v515
  %v926 = vpack.c.b16 %v520, %v518
  %v927 = vpack.c.b16 %v521, %v519
  %v928 = vpack.c.b16 %v524, %v522
  %v929 = vpack.c.b16 %v525, %v523
  %v930 = vpack.c.b16 %v528, %v526
  %v931 = vpack.c.b16 %v529, %v527
  %v932 = vpack.c.b16 %v532, %v530
  %v933 = vpack.c.b16 %v533, %v531
  %v934 = vpack.c.b16 %v536, %v534
  %v935 = vpack.c.b16 %v537, %v535
  %v936 = vpack.c.b16 %v540, %v538
  %v937 = vpack.c.b16 %v541, %v539
  %v938 = vpack.c.b16 %v544, %v542
  %v939 = vpack.c.b16 %v545, %v543
  %v940 = vpack.c.b16 %v548, %v546
  %v941 = vpack.c.b16 %v549, %v547
  %v942 = vpack.c.b16 %v552, %v550
  %v943 = vpack.c.b16 %v553, %v551
  %v944 = vpack.c.b16 %v556, %v554
  %v945 = vpack.c.b16 %v557, %v555
  %v946 = vpack.c.b16 %v560, %v558
  %v947 = vpack.c.b16 %v561, %v559
  %v948 = vpack.c.b16 %v564, %v562
  %v949 = vpack.c.b16 %v565, %v563
  %v950 = vpack.c.b16 %v568, %v566
  %v951 = vpack.c.b16 %v569, %v567
  %v952 = vpack.c.b16 %v572, %v570
  %v953 = vpack.c.b16 %v573, %v571
  %v954 = vpack.c.b16 %v576, %v574
  %v955 = vpack.c.b16 %v577, %v575
  %v956 = vpack.c.b16 %v580, %v578
  %v957 = vpack.c.b16 %v581, %v579
  %v958 = vpack.c.b16 %v584, %v582
  %v959 = vpack.c.b16 %v585, %v583
  %v960 = vpack.c.b16 %v588, %v586
  %v961 = vpack.c.b16 %v589, %v587
  %v962 = vpack.c.b16 %v592, %v590
  %v963 = vpack.c.b16 %v593, %v591
  %v964 = vpack.c.b16 %v596, %v594
  %v965 = vpack.c.b16 %v597, %v595
  %v966 = vpack.c.b16 %v600, %v598
  %v967 = vpack.c.b16 %v601, %v599
  %v968 = vpack.c.b16 %v604, %v602
  %v969 = vpack.c.b16 %v605, %v603
  %v970 = vpack.c.b16 %v608, %v606
  %v971 = vpack.c.b16 %v609, %v607
  %v972 = vpack.c.b16 %v612, %v610
  %v973 = vpack.c.b16 %v613, %v611
  %v974 = vpack.c.b16 %v616, %v614
  %v975 = vpack.c.b16 %v617, %v615
  %v976 = vpack.c.b16 %v620, %v618
  %v977 = vpack.c.b16 %v621, %v619
  %v978 = vpack.c.b16 %v624, %v622
  %v979 = vpack.c.b16 %v625, %v623
  %v980 = vpack.c.b16 %v628, %v626
  %v981 = vpack.c.b16 %v629, %v627
  %v982 = vpack.c.b16 %v632, %v630
  %v983 = vpack.c.b16 %v633, %v631
  %v984 = vpack.c.b16 %v636, %v634
  %v985 = vpack.c.b16 %v637, %v635
  %v986 = vpack.c.b16 %v640, %v638
  %v987 = vpack.c.b16 %v641, %v639
  %v988 = vpack.c.b16 %v644, %v642
  %v989 = vpack.c.b16 %v645, %v643
  %v990 = vpack.c.b16 %v648, %v646
  %v991 = vpack.c.b16 %v649, %v647
  %v992 = vpack.c.b16 %v652, %v650
  %v993 = vpack.c.b16 %v653, %v651
  %v994 = vpack.c.b16 %v656, %v654
  %v995 = vpack.c.b16 %v657, %v655
  %v996 = vpack.c.b16 %v660, %v658
  %v997 = vpack.c.b16 %v661, %v659
  %v998 = vpack.c.b16 %v664, %v662
  %v999 = vpack.c.b16 %v665, %v663
  %v1000 = vpack.c.b16 %v668, %v666
  %v1001 = vpack.c.b16 %v669, %v667
  %v1002 = vpack.c.b16 %v672, %v670
  %v1003 = vpack.c.b16 %v673, %v671
  %v1004 = vpack.c.b16 %v676, %v674
  %v1005 = vpack.c.b16 %v677, %v675
  %v1006 = vpack.c.b16 %v680, %v678
  %v1007 = vpack.c.b16 %v681, %v679
  %v1008 = vpack.c.b16 %v684, %v682
  %v1009 = vpack.c.b16 %v685, %v683
  %v1010 = vpack.c.b16 %v688, %v686
  %v1011 = vpack.c.b16 %v689, %v687
  %v1012 = vpack.c.b16 %v692, %v690
  %v1013 = vpack.c.b16 %v693, %v691
  %v1014 = vpack.c.b16 %v696, %v694
  %v1015 = vpack.c.b16 %v697, %v695
  %v1016 = vpack.c.b16 %v700, %v698
  %v1017 = vpack.c.b16 %v701, %v699
  %v1018 = vpack.c.b16 %v704, %v702
  %v1019 = vpack.c.b16 %v705, %v703
  %v1020 = vpack.c.b16 %v708, %v706
  %v1021 = vpack.c.b16 %v709, %v707
  %v1022 = vpack.c.b16 %v712, %v710
  %v1023 = vpack.c.b16 %v713, %v711
  %v1024 = vpack.c.b16 %v716, %v714
  %v1025 = vpack.c.b16 %v717, %v715
  %v1026 = vpack.c.b16 %v720, %v718
  %v1027 = vpack.c.b16 %v721, %v719
  %v1028 = vpack.c.b16 %v724, %v722
  %v1029 = vpack.c.b16 %v725, %v723
  %v1030 = vpack.c.b16 %v728, %v726
  %v1031 = vpack.c.b16 %v729, %v727
  %v1032 = vpack.c.b16 %v732, %v730
  %v1033 = vpack.c.b16 %v733, %v731
  %v1034 = vpack.c.b16 %v736, %v734
  %v1035 = vpack.c.b16 %v737, %v735
  %v1036 = vpack.c.b16 %v740, %v738
  %v1037 = vpack.c.b16 %v741, %v739
  %v1038 = vpack.c.b16 %v744, %v742
  %v1039 = vpack.c.b16 %v745, %v743
  %v1040 = vpack.c.b16 %v748, %v746
  %v1041 = vpack.c.b16 %v749, %v747
  %v1042 = vpack.c.b16 %v752, %v750
  %v1043 = vpack.c.b16 %v753, %v751
  %v1044 = vpack.c.b16 %v756, %v754
  %v1045 = vpack.c.b16 %v757, %v755
  %v1046 = vpack.c.b16 %v760, %v758
  %v1047 = vpack.c.b16 %v761, %v759
  %v1048 = vpack.c.b16 %v764, %v762
  %v1049 = vpack.c.b16 %v765, %v763
  %v1050 = vpack.c.b16 %v768, %v766
  %v1051 = vpack.c.b16 %v769, %v767
  %v1052 = vpack.c.b16 %v772, %v770
  %v1053 = vpack.c.b16 %v773, %v771
  %v1054 = vpack.c.b16 %v776, %v774
  %v1055 = vpack.c.b16 %v777, %v775
  %v1056 = vpack.c.b16 %v780, %v778
  %v1057 = vpack.c.b16 %v781, %v779
  %v1058 = vpack.c.b16 %v784, %v782
  %v1059 = vpack.c.b16 %v785, %v783
  %v1060 = vpack.c.b16 %v788, %v786
  %v1061 = vpack.c.b16 %v789, %v787
  %v1062 = vpack.c.b16 %v792, %v790
  %v1063 = vpack.c.b16 %v793, %v791
  %v1064 = vpack.c.b16 %v796, %v794
  %v1065 = vpack.c.b16 %v797, %v795
  %v1066 = vpack.c.b16 %v800, %v798
  %v1067 = vpack.c.b16 %v801, %v799
  %v1068 = vpack.c.b16 %v804, %v802
  %v1069 = vpack.c.b16 %v805, %v803
  %v1070 = vpack.c.b16 %v808, %v806
  %v1071 = vpack.c.b16 %v809, %v807
  %v1072 = vpack.c.b16 %v812, %v810
  %v1073 = vpack.c.b16 %v813, %v811
  %v1074 = vpack.c.b16 %v816, %v814
  %v1075 = vpack.c.b16 %v817, %v815
  %v1076 = vpack.c.b16 %v820, %v818
  %v1077 = vpack.c.b16 %v821, %v819
  %v1078 = vpack.c.b16 %v824, %v822
  %v1079 = vpack.c.b16 %v825, %v823
  %v1080 = vpack.c.b16 %v828, %v826
  %v1081 = vpack.c.b16 %v829, %v827
  %v1082 = vpack.c.b16 %v832, %v830
  %v1083 = vpack.c.b16 %v833, %v831
  %v1084 = vpack.c.b16 %v836, %v834
  %v1085 = vpack.c.b16 %v837, %v835
  %v1086 = vpack.c.b16 %v840, %v838
  %v1087 = vpack.c.b16 %v841, %v839
  %v1088 = vpack.c.b16 %v844, %v842
  %v1089 = vpack.c.b16 %v845, %v843
  %v1090 = vpack.c.b16 %v848, %v846
  %v1091 = vpack.c.b16 %v849, %v847
  %v1092 = vpack.c.b16 %v852, %v850
  %v1093 = vpack.c.b16 %v853, %v851
  %v1094 = vpack.c.b16 %v856, %v854
  %v1095 = vpack.c.b16 %v857, %v855
  %v1096 = vpack.c.b16 %v860, %v858
  %v1097 = vpack.c.b16 %v861, %v859
  %v1098 = vpack.c.b16 %v864, %v862
  %v1099 = vpack.c.b16 %v865, %v863
  %v1100 = vpack.c.b16 %v868, %v866
  %v1101 = vpack.c.b16 %v869, %v867
  %v1102 = vpack.c.b16 %v872, %v870
  %v1103 = vpack.c.b16 %v873, %v871
  %v1104 = vpack.c.b16 %v876, %v874
  %v1105 = vpack.c.b16 %v877, %v875
  %v1106 = vpack.c.b16 %v880, %v878
  %v1107 = vpack.c.b16 %v881, %v879
  %v1108 = vpack.c.b16 %v884, %v882
  %v1109 = vpack.c.b16 %v885, %v883
  %v1110 = vpack.c.b16 %v888, %v886
  %v1111 = vpack.c.b16 %v889, %v887
  %v1112 = vpack.c.b16 %v892, %v890
  %v1113 = vpack.c.b16 %v893, %v891
  %v1114 = vpack.c.b16 %v896, %v894
  %v1115 = vpack.c.b16 %v897, %v895
  %v1116 = vpack.c.b16 %v900, %v898
  %v1117 = vpack.c.b16 %v901, %v899
  %v1118 = vpack.c.b16 %v904, %v902
  %v1119 = vpack.c.b16 %v905, %v903
  %v1120 = vpack.c.b16 %v908, %v906
  %v1121 = vpack.c.b16 %v909, %v907
  %v1122 = vpack.c.b16 %v912, %v910
  %v1123 = vpack.c.b16 %v913, %v911
  %v1124 = vpack.c.b16 %v916, %v914
  %v1125 = vpack.c.b16 %v917, %v915
  %1334 = vmatprep.subr.bf16.mxu0 %v933
  %1335 = vmatpush1.bf16.msra.mxu0 %v932
  %1336 = vmatprep.subr.bf16.mxu0 %v931
  %1337 = vmatpush1.bf16.msra.mxu0 %v930
  %1338 = vmatprep.subr.bf16.mxu0 %v929
  %1339 = vmatpush1.bf16.msra.mxu0 %v928
  %1340 = vmatprep.subr.bf16.mxu0 %v927
  %1341 = vmatpush1.bf16.msra.mxu0 %v926
  %1342 = vmatprep.subr.bf16.mxu0 %v925
  %1343 = vmatpush1.bf16.msra.mxu0 %v924
  %1344 = vmatprep.subr.bf16.mxu0 %v923
  %1345 = vmatpush1.bf16.msra.mxu0 %v922
  %1346 = vmatprep.subr.bf16.mxu0 %v921
  %1347 = vmatpush1.bf16.msra.mxu0 %v920
  %1348 = vmatprep.subr.bf16.mxu0 %v919
  %1349 = vmatpush1.bf16.msra.mxu0 %v918
  %1350 = vmatprep.subr.bf16.mxu0 %v949
  %1351 = vmatpush2.bf16.msra.mxu0 %v948
  %1352 = vmatprep.subr.bf16.mxu0 %v947
  %1353 = vmatpush2.bf16.msra.mxu0 %v946
  %1354 = vmatprep.subr.bf16.mxu0 %v945
  %1355 = vmatpush2.bf16.msra.mxu0 %v944
  %1356 = vmatprep.subr.bf16.mxu0 %v943
  %1357 = vmatpush2.bf16.msra.mxu0 %v942
  %1358 = vmatprep.subr.bf16.mxu0 %v941
  %1359 = vmatpush2.bf16.msra.mxu0 %v940
  %1360 = vmatprep.subr.bf16.mxu0 %v939
  %1361 = vmatpush2.bf16.msra.mxu0 %v938
  %1362 = vmatprep.subr.bf16.mxu0 %v937
  %1363 = vmatpush2.bf16.msra.mxu0 %v936
  %1364 = vmatprep.subr.bf16.mxu0 %v935
  %1365 = vmatpush2.bf16.msra.mxu0 %v934
  %1366 = vmatprep.mubr.bf16.mxu0 %v269
  %1367 = vmatmul.mubr.bf16.gmra.mxu0 %v268
  %v1368 = vpop.f32.mrf.mxu0
  %v1369 = vadd.f32 %v241, %v1368
  %v1370 = vpop.f32.mrf.mxu0
  %v1371 = vadd.f32 %v245, %v1370
  %v1372 = vpop.f32.mrf.mxu0
  %v1373 = vpop.f32.mrf.mxu0
  %1374 = vdwg.mxu0
  %1375 = vmatprep.subr.bf16.mxu0 %v965
  %1376 = vmatpush1.bf16.msra.mxu0 %v964
  %1377 = vmatprep.subr.bf16.mxu0 %v963
  %1378 = vmatpush1.bf16.msra.mxu0 %v962
  %1379 = vmatprep.subr.bf16.mxu0 %v961
  %1380 = vmatpush1.bf16.msra.mxu0 %v960
  %1381 = vmatprep.subr.bf16.mxu0 %v959
  %1382 = vmatpush1.bf16.msra.mxu0 %v958
  %1383 = vmatprep.subr.bf16.mxu0 %v957
  %1384 = vmatpush1.bf16.msra.mxu0 %v956
  %1385 = vmatprep.subr.bf16.mxu0 %v955
  %1386 = vmatpush1.bf16.msra.mxu0 %v954
  %1387 = vmatprep.subr.bf16.mxu0 %v953
  %1388 = vmatpush1.bf16.msra.mxu0 %v952
  %1389 = vmatprep.subr.bf16.mxu0 %v951
  %1390 = vmatpush1.bf16.msra.mxu0 %v950
  %1391 = vmatprep.subr.bf16.mxu0 %v981
  %1392 = vmatpush2.bf16.msra.mxu0 %v980
  %1393 = vmatprep.subr.bf16.mxu0 %v979
  %1394 = vmatpush2.bf16.msra.mxu0 %v978
  %1395 = vmatprep.subr.bf16.mxu0 %v977
  %1396 = vmatpush2.bf16.msra.mxu0 %v976
  %1397 = vmatprep.subr.bf16.mxu0 %v975
  %1398 = vmatpush2.bf16.msra.mxu0 %v974
  %1399 = vmatprep.subr.bf16.mxu0 %v973
  %1400 = vmatpush2.bf16.msra.mxu0 %v972
  %1401 = vmatprep.subr.bf16.mxu0 %v971
  %1402 = vmatpush2.bf16.msra.mxu0 %v970
  %1403 = vmatprep.subr.bf16.mxu0 %v969
  %1404 = vmatpush2.bf16.msra.mxu0 %v968
  %1405 = vmatprep.subr.bf16.mxu0 %v967
  %1406 = vmatpush2.bf16.msra.mxu0 %v966
  %1407 = vmatprep.mubr.bf16.mxu0 %v271
  %1408 = vmatmul.mubr.bf16.gmra.mxu0 %v270
  %v1409 = vpop.f32.mrf.mxu0
  %v1410 = vadd.f32 %v1369, %v1409
  %v1411 = vpop.f32.mrf.mxu0
  %v1412 = vadd.f32 %v1371, %v1411
  %v1413 = vpop.f32.mrf.mxu0
  %v1414 = vpop.f32.mrf.mxu0
  %1415 = vdwg.mxu0
  %1416 = vmatprep.subr.bf16.mxu0 %v997
  %1417 = vmatpush1.bf16.msra.mxu0 %v996
  %1418 = vmatprep.subr.bf16.mxu0 %v995
  %1419 = vmatpush1.bf16.msra.mxu0 %v994
  %1420 = vmatprep.subr.bf16.mxu0 %v993
  %1421 = vmatpush1.bf16.msra.mxu0 %v992
  %1422 = vmatprep.subr.bf16.mxu0 %v991
  %1423 = vmatpush1.bf16.msra.mxu0 %v990
  %1424 = vmatprep.subr.bf16.mxu0 %v989
  %1425 = vmatpush1.bf16.msra.mxu0 %v988
  %1426 = vmatprep.subr.bf16.mxu0 %v987
  %1427 = vmatpush1.bf16.msra.mxu0 %v986
  %1428 = vmatprep.subr.bf16.mxu0 %v985
  %1429 = vmatpush1.bf16.msra.mxu0 %v984
  %1430 = vmatprep.subr.bf16.mxu0 %v983
  %1431 = vmatpush1.bf16.msra.mxu0 %v982
  %1432 = vmatprep.subr.bf16.mxu0 %v1013
  %1433 = vmatpush2.bf16.msra.mxu0 %v1012
  %1434 = vmatprep.subr.bf16.mxu0 %v1011
  %1435 = vmatpush2.bf16.msra.mxu0 %v1010
  %1436 = vmatprep.subr.bf16.mxu0 %v1009
  %1437 = vmatpush2.bf16.msra.mxu0 %v1008
  %1438 = vmatprep.subr.bf16.mxu0 %v1007
  %1439 = vmatpush2.bf16.msra.mxu0 %v1006
  %1440 = vmatprep.subr.bf16.mxu0 %v1005
  %1441 = vmatpush2.bf16.msra.mxu0 %v1004
  %1442 = vmatprep.subr.bf16.mxu0 %v1003
  %1443 = vmatpush2.bf16.msra.mxu0 %v1002
  %1444 = vmatprep.subr.bf16.mxu0 %v1001
  %1445 = vmatpush2.bf16.msra.mxu0 %v1000
  %1446 = vmatprep.subr.bf16.mxu0 %v999
  %1447 = vmatpush2.bf16.msra.mxu0 %v998
  %1448 = vmatprep.mubr.bf16.mxu0 %v273
  %1449 = vmatmul.mubr.bf16.gmra.mxu0 %v272
  %v1450 = vpop.f32.mrf.mxu0
  %v1451 = vadd.f32 %v1410, %v1450
  %v1452 = vpop.f32.mrf.mxu0
  %v1453 = vadd.f32 %v1412, %v1452
  %v1454 = vpop.f32.mrf.mxu0
  %v1455 = vpop.f32.mrf.mxu0
  %1456 = vdwg.mxu0
  %1457 = vmatprep.subr.bf16.mxu0 %v1029
  %1458 = vmatpush1.bf16.msra.mxu0 %v1028
  %1459 = vmatprep.subr.bf16.mxu0 %v1027
  %1460 = vmatpush1.bf16.msra.mxu0 %v1026
  %1461 = vmatprep.subr.bf16.mxu0 %v1025
  %1462 = vmatpush1.bf16.msra.mxu0 %v1024
  %1463 = vmatprep.subr.bf16.mxu0 %v1023
  %1464 = vmatpush1.bf16.msra.mxu0 %v1022
  %1465 = vmatprep.subr.bf16.mxu0 %v1021
  %1466 = vmatpush1.bf16.msra.mxu0 %v1020
  %1467 = vmatprep.subr.bf16.mxu0 %v1019
  %1468 = vmatpush1.bf16.msra.mxu0 %v1018
  %1469 = vmatprep.subr.bf16.mxu0 %v1017
  %1470 = vmatpush1.bf16.msra.mxu0 %v1016
  %1471 = vmatprep.subr.bf16.mxu0 %v1015
  %1472 = vmatpush1.bf16.msra.mxu0 %v1014
  %1473 = vmatprep.subr.bf16.mxu0 %v1045
  %1474 = vmatpush2.bf16.msra.mxu0 %v1044
  %1475 = vmatprep.subr.bf16.mxu0 %v1043
  %1476 = vmatpush2.bf16.msra.mxu0 %v1042
  %1477 = vmatprep.subr.bf16.mxu0 %v1041
  %1478 = vmatpush2.bf16.msra.mxu0 %v1040
  %1479 = vmatprep.subr.bf16.mxu0 %v1039
  %1480 = vmatpush2.bf16.msra.mxu0 %v1038
  %1481 = vmatprep.subr.bf16.mxu0 %v1037
  %1482 = vmatpush2.bf16.msra.mxu0 %v1036
  %1483 = vmatprep.subr.bf16.mxu0 %v1035
  %1484 = vmatpush2.bf16.msra.mxu0 %v1034
  %1485 = vmatprep.subr.bf16.mxu0 %v1033
  %1486 = vmatpush2.bf16.msra.mxu0 %v1032
  %1487 = vmatprep.subr.bf16.mxu0 %v1031
  %1488 = vmatpush2.bf16.msra.mxu0 %v1030
  %1489 = vmatprep.mubr.bf16.mxu0 %v275
  %1490 = vmatmul.mubr.bf16.gmra.mxu0 %v274
  %v1491 = vpop.f32.mrf.mxu0
  %v1492 = vadd.f32 %v1451, %v1491
  %v1493 = vpop.f32.mrf.mxu0
  %v1494 = vadd.f32 %v1453, %v1493
  %v1495 = vpop.f32.mrf.mxu0
  %v1496 = vpop.f32.mrf.mxu0
  %1497 = vdwg.mxu0
  %1498 = vmatprep.subr.bf16.mxu0 %v1061
  %1499 = vmatpush1.bf16.msra.mxu0 %v1060
  %1500 = vmatprep.subr.bf16.mxu0 %v1059
  %1501 = vmatpush1.bf16.msra.mxu0 %v1058
  %1502 = vmatprep.subr.bf16.mxu0 %v1057
  %1503 = vmatpush1.bf16.msra.mxu0 %v1056
  %1504 = vmatprep.subr.bf16.mxu0 %v1055
  %1505 = vmatpush1.bf16.msra.mxu0 %v1054
  %1506 = vmatprep.subr.bf16.mxu0 %v1053
  %1507 = vmatpush1.bf16.msra.mxu0 %v1052
  %1508 = vmatprep.subr.bf16.mxu0 %v1051
  %1509 = vmatpush1.bf16.msra.mxu0 %v1050
  %1510 = vmatprep.subr.bf16.mxu0 %v1049
  %1511 = vmatpush1.bf16.msra.mxu0 %v1048
  %1512 = vmatprep.subr.bf16.mxu0 %v1047
  %1513 = vmatpush1.bf16.msra.mxu0 %v1046
  %1514 = vmatprep.subr.bf16.mxu0 %v1077
  %1515 = vmatpush2.bf16.msra.mxu0 %v1076
  %1516 = vmatprep.subr.bf16.mxu0 %v1075
  %1517 = vmatpush2.bf16.msra.mxu0 %v1074
  %1518 = vmatprep.subr.bf16.mxu0 %v1073
  %1519 = vmatpush2.bf16.msra.mxu0 %v1072
  %1520 = vmatprep.subr.bf16.mxu0 %v1071
  %1521 = vmatpush2.bf16.msra.mxu0 %v1070
  %1522 = vmatprep.subr.bf16.mxu0 %v1069
  %1523 = vmatpush2.bf16.msra.mxu0 %v1068
  %1524 = vmatprep.subr.bf16.mxu0 %v1067
  %1525 = vmatpush2.bf16.msra.mxu0 %v1066
  %1526 = vmatprep.subr.bf16.mxu0 %v1065
  %1527 = vmatpush2.bf16.msra.mxu0 %v1064
  %1528 = vmatprep.subr.bf16.mxu0 %v1063
  %1529 = vmatpush2.bf16.msra.mxu0 %v1062
  %1530 = vmatprep.mubr.bf16.mxu0 %v277
  %1531 = vmatmul.mubr.bf16.gmra.mxu0 %v276
  %v1532 = vpop.f32.mrf.mxu0
  %v1533 = vadd.f32 %v1492, %v1532
  %v1534 = vpop.f32.mrf.mxu0
  %v1535 = vadd.f32 %v1494, %v1534
  %v1536 = vpop.f32.mrf.mxu0
  %v1537 = vpop.f32.mrf.mxu0
  %1538 = vdwg.mxu0
  %1539 = vmatprep.subr.bf16.mxu0 %v1093
  %1540 = vmatpush1.bf16.msra.mxu0 %v1092
  %1541 = vmatprep.subr.bf16.mxu0 %v1091
  %1542 = vmatpush1.bf16.msra.mxu0 %v1090
  %1543 = vmatprep.subr.bf16.mxu0 %v1089
  %1544 = vmatpush1.bf16.msra.mxu0 %v1088
  %1545 = vmatprep.subr.bf16.mxu0 %v1087
  %1546 = vmatpush1.bf16.msra.mxu0 %v1086
  %1547 = vmatprep.subr.bf16.mxu0 %v1085
  %1548 = vmatpush1.bf16.msra.mxu0 %v1084
  %1549 = vmatprep.subr.bf16.mxu0 %v1083
  %1550 = vmatpush1.bf16.msra.mxu0 %v1082
  %1551 = vmatprep.subr.bf16.mxu0 %v1081
  %1552 = vmatpush1.bf16.msra.mxu0 %v1080
  %1553 = vmatprep.subr.bf16.mxu0 %v1079
  %1554 = vmatpush1.bf16.msra.mxu0 %v1078
  %1555 = vmatprep.subr.bf16.mxu0 %v1109
  %1556 = vmatpush2.bf16.msra.mxu0 %v1108
  %1557 = vmatprep.subr.bf16.mxu0 %v1107
  %1558 = vmatpush2.bf16.msra.mxu0 %v1106
  %1559 = vmatprep.subr.bf16.mxu0 %v1105
  %1560 = vmatpush2.bf16.msra.mxu0 %v1104
  %1561 = vmatprep.subr.bf16.mxu0 %v1103
  %1562 = vmatpush2.bf16.msra.mxu0 %v1102
  %1563 = vmatprep.subr.bf16.mxu0 %v1101
  %1564 = vmatpush2.bf16.msra.mxu0 %v1100
  %1565 = vmatprep.subr.bf16.mxu0 %v1099
  %1566 = vmatpush2.bf16.msra.mxu0 %v1098
  %1567 = vmatprep.subr.bf16.mxu0 %v1097
  %1568 = vmatpush2.bf16.msra.mxu0 %v1096
  %1569 = vmatprep.subr.bf16.mxu0 %v1095
  %1570 = vmatpush2.bf16.msra.mxu0 %v1094
  %1571 = vmatprep.mubr.bf16.mxu0 %v279
  %1572 = vmatmul.mubr.bf16.gmra.mxu0 %v278
  %v1573 = vpop.f32.mrf.mxu0
  %v1574 = vadd.f32 %v1533, %v1573
  %v1575 = vpop.f32.mrf.mxu0
  %v1576 = vadd.f32 %v1535, %v1575
  %v1577 = vpop.f32.mrf.mxu0
  %v1578 = vpop.f32.mrf.mxu0
  %1579 = vdwg.mxu0
  %1580 = vmatprep.subr.bf16.mxu0 %v1125
  %1581 = vmatpush1.bf16.msra.mxu0 %v1124
  %1582 = vmatprep.subr.bf16.mxu0 %v1123
  %1583 = vmatpush1.bf16.msra.mxu0 %v1122
  %1584 = vmatprep.subr.bf16.mxu0 %v1121
  %1585 = vmatpush1.bf16.msra.mxu0 %v1120
  %1586 = vmatprep.subr.bf16.mxu0 %v1119
  %1587 = vmatpush1.bf16.msra.mxu0 %v1118
  %1588 = vmatprep.subr.bf16.mxu0 %v1117
  %1589 = vmatpush1.bf16.msra.mxu0 %v1116
  %1590 = vmatprep.subr.bf16.mxu0 %v1115
  %1591 = vmatpush1.bf16.msra.mxu0 %v1114
  %1592 = vmatprep.subr.bf16.mxu0 %v1113
  %1593 = vmatpush1.bf16.msra.mxu0 %v1112
  %1594 = vmatprep.subr.bf16.mxu0 %v1111
  %1595 = vmatpush1.bf16.msra.mxu0 %v1110
  %1596 = vmatprep.subr.bf16.mxu0 0
  %1597 = vmatpush2.bf16.msra.mxu0 0
  %1598 = vmatprep.subr.bf16.mxu0 0
  %1599 = vmatpush2.bf16.msra.mxu0 0
  %1600 = vmatprep.subr.bf16.mxu0 0
  %1601 = vmatpush2.bf16.msra.mxu0 0
  %1602 = vmatprep.subr.bf16.mxu0 0
  %1603 = vmatpush2.bf16.msra.mxu0 0
  %1604 = vmatprep.subr.bf16.mxu0 0
  %1605 = vmatpush2.bf16.msra.mxu0 0
  %1606 = vmatprep.subr.bf16.mxu0 0
  %1607 = vmatpush2.bf16.msra.mxu0 0
  %1608 = vmatprep.subr.bf16.mxu0 0
  %1609 = vmatpush2.bf16.msra.mxu0 0
  %1610 = vmatprep.subr.bf16.mxu0 0
  %1611 = vmatpush2.bf16.msra.mxu0 0
  %1612 = vmatprep.mubr.bf16.mxu0 0
  %1613 = vmatmul.mubr.bf16.gmra.mxu0 %v280
  %v1614 = vpop.f32.mrf.mxu0
  %v1615 = vadd.f32 %v1574, %v1614
  %v1616 = vpop.f32.mrf.mxu0
  %v1617 = vadd.f32 %v1576, %v1616
  %v1618 = vpop.f32.mrf.mxu0
  %v1619 = vpop.f32.mrf.mxu0
  %1620 = vdwg.mxu0
  %v1621 = vmax.f32 %v1615, 0.0
  %v1622 = vmax.f32 %v1617, 0.0
  %v1623 = vpack.c.bf16 %v1621, %v1621
  %v1624 = vpack.c.bf16 %v1622, %v1622
  %v1625 = vld [vmem:[%s3] sm:$0xf]
  %v1626 = vld [vmem:[%s3 + $0x4] sm:$0xf]
  %v1627 = vld [vmem:[%s3 + $0x8] sm:$0xf]
  %v1628 = vld [vmem:[%s3 + $0xc] sm:$0xf]
  %v1629 = vld [vmem:[%s3 + $0x10] sm:$0xf]
  %v1630 = vld [vmem:[%s3 + $0x14] sm:$0xf]
  %v1631 = vld [vmem:[%s3 + $0x18] sm:$0xf]
  %v1632 = vld [vmem:[%s3 + $0x1c] sm:$0xf]
  %v1633 = vld [vmem:[%s3 + $0x20] sm:$0xf]
  %v1634 = vld [vmem:[%s3 + $0x24] sm:$0xf]
  %v1635 = vld [vmem:[%s3 + $0x28] sm:$0xf]
  %v1636 = vld [vmem:[%s3 + $0x2c] sm:$0xf]
  %v1637 = vld [vmem:[%s3 + $0x30] sm:$0xf]
  %v1638 = vld [vmem:[%s3 + $0x34] sm:$0xf]
  %v1639 = vld [vmem:[%s3 + $0x38] sm:$0xf]
  %v1640 = vld [vmem:[%s3 + $0x3c] sm:$0xf]
  %v1641 = vld [vmem:[%s3 + $0x40] sm:$0xf]
  %v1642 = vld [vmem:[%s3 + $0x44] sm:$0xf]
  %v1643 = vld [vmem:[%s3 + $0x48] sm:$0xf]
  %v1644 = vld [vmem:[%s3 + $0x4c] sm:$0xf]
  %v1645 = vld [vmem:[%s3 + $0x50] sm:$0xf]
  %v1646 = vld [vmem:[%s3 + $0x54] sm:$0xf]
  %v1647 = vld [vmem:[%s3 + $0x58] sm:$0xf]
  %v1648 = vld [vmem:[%s3 + $0x5c] sm:$0xf]
  %v1649 = vld [vmem:[%s3 + $0x60] sm:$0xf]
  %v1650 = vld [vmem:[%s3 + $0x64] sm:$0xf]
  %v1651 = vld [vmem:[%s3 + $0x68] sm:$0xf]
  %v1652 = vld [vmem:[%s3 + $0x6c] sm:$0xf]
  %v1653 = vld [vmem:[%s3 + $0x70] sm:$0xf]
  %v1654 = vld [vmem:[%s3 + $0x74] sm:$0xf]
  %v1655 = vld [vmem:[%s3 + $0x78] sm:$0xf]
  %v1656 = vld [vmem:[%s3 + $0x7c] sm:$0xf]
  %v1657 = vld [vmem:[%s4] sm:$0x1]
  %v1659 = vlaneseq
  %v1660 = vshrl.u32 %v1659, 7
  %v1661 = vsub.s32 0, %v1660
  %v1662 = vrot.slane %v1657, %v1661
  %v1696 = vunpack.c.l.b16 %v1625
  %v1697 = vunpack.c.l.b16 %v1626
  %v1698 = vunpack.c.l.b16 %v1627
  %v1699 = vunpack.c.l.b16 %v1628
  %v1700 = vunpack.c.l.b16 %v1629
  %v1701 = vunpack.c.l.b16 %v1630
  %v1702 = vunpack.c.l.b16 %v1631
  %v1703 = vunpack.c.l.b16 %v1632
  %v1704 = vunpack.c.l.b16 %v1633
  %v1705 = vunpack.c.l.b16 %v1634
  %v1706 = vunpack.c.l.b16 %v1635
  %v1707 = vunpack.c.l.b16 %v1636
  %v1708 = vunpack.c.l.b16 %v1637
  %v1709 = vunpack.c.l.b16 %v1638
  %v1710 = vunpack.c.l.b16 %v1639
  %v1711 = vunpack.c.l.b16 %v1640
  %v1712 = vunpack.c.l.b16 %v1641
  %v1713 = vunpack.c.l.b16 %v1642
  %v1714 = vunpack.c.l.b16 %v1643
  %v1715 = vunpack.c.l.b16 %v1644
  %v1716 = vunpack.c.l.b16 %v1645
  %v1717 = vunpack.c.l.b16 %v1646
  %v1718 = vunpack.c.l.b16 %v1647
  %v1719 = vunpack.c.l.b16 %v1648
  %v1720 = vunpack.c.l.b16 %v1649
  %v1721 = vunpack.c.l.b16 %v1650
  %v1722 = vunpack.c.l.b16 %v1651
  %v1723 = vunpack.c.l.b16 %v1652
  %v1724 = vunpack.c.l.b16 %v1653
  %v1725 = vunpack.c.l.b16 %v1654
  %v1726 = vunpack.c.l.b16 %v1655
  %v1727 = vunpack.c.l.b16 %v1656
  %v1728 = vpack.c.b16 %v1697, %v1696
  %v1729 = vpack.c.b16 %v1699, %v1698
  %v1730 = vpack.c.b16 %v1701, %v1700
  %v1731 = vpack.c.b16 %v1703, %v1702
  %v1732 = vpack.c.b16 %v1705, %v1704
  %v1733 = vpack.c.b16 %v1707, %v1706
  %v1734 = vpack.c.b16 %v1709, %v1708
  %v1735 = vpack.c.b16 %v1711, %v1710
  %v1736 = vpack.c.b16 %v1713, %v1712
  %v1737 = vpack.c.b16 %v1715, %v1714
  %v1738 = vpack.c.b16 %v1717, %v1716
  %v1739 = vpack.c.b16 %v1719, %v1718
  %v1740 = vpack.c.b16 %v1721, %v1720
  %v1741 = vpack.c.b16 %v1723, %v1722
  %v1742 = vpack.c.b16 %v1725, %v1724
  %v1743 = vpack.c.b16 %v1727, %v1726
  %1760 = vmatprep.subr.bf16.mxu0 0
  %1761 = vmatpush1.bf16.msra.mxu0 %v1735
  %1762 = vmatprep.subr.bf16.mxu0 0
  %1763 = vmatpush1.bf16.msra.mxu0 %v1734
  %1764 = vmatprep.subr.bf16.mxu0 0
  %1765 = vmatpush1.bf16.msra.mxu0 %v1733
  %1766 = vmatprep.subr.bf16.mxu0 0
  %1767 = vmatpush1.bf16.msra.mxu0 %v1732
  %1768 = vmatprep.subr.bf16.mxu0 0
  %1769 = vmatpush1.bf16.msra.mxu0 %v1731
  %1770 = vmatprep.subr.bf16.mxu0 0
  %1771 = vmatpush1.bf16.msra.mxu0 %v1730
  %1772 = vmatprep.subr.bf16.mxu0 0
  %1773 = vmatpush1.bf16.msra.mxu0 %v1729
  %1774 = vmatprep.subr.bf16.mxu0 0
  %1775 = vmatpush1.bf16.msra.mxu0 %v1728
  %1776 = vmatprep.subr.bf16.mxu0 0
  %1777 = vmatpush2.bf16.msra.mxu0 %v1743
  %1778 = vmatprep.subr.bf16.mxu0 0
  %1779 = vmatpush2.bf16.msra.mxu0 %v1742
  %1780 = vmatprep.subr.bf16.mxu0 0
  %1781 = vmatpush2.bf16.msra.mxu0 %v1741
  %1782 = vmatprep.subr.bf16.mxu0 0
  %1783 = vmatpush2.bf16.msra.mxu0 %v1740
  %1784 = vmatprep.subr.bf16.mxu0 0
  %1785 = vmatpush2.bf16.msra.mxu0 %v1739
  %1786 = vmatprep.subr.bf16.mxu0 0
  %1787 = vmatpush2.bf16.msra.mxu0 %v1738
  %1788 = vmatprep.subr.bf16.mxu0 0
  %1789 = vmatpush2.bf16.msra.mxu0 %v1737
  %1790 = vmatprep.subr.bf16.mxu0 0
  %1791 = vmatpush2.bf16.msra.mxu0 %v1736
  %1792 = vmatprep.mubr.bf16.mxu0 %v1624
  %1793 = vmatmul.mubr.bf16.gmra.mxu0 %v1623
  %v1794 = vpop.f32.mrf.mxu0
  %v1795 = vadd.f32 %v1662, %v1794
  %v1796 = vpop.f32.mrf.mxu0
  %v1797 = vpop.f32.mrf.mxu0
  %v1798 = vpop.f32.mrf.mxu0
  %1799 = vdwg.mxu0
  %1800 = vst [vmem:[%s5] sm:$0xff] %v1795
  // Predicated region
  $region22: #{forward.11} parent=0 // pred_check
    _
  $region23: #{forward.11} parent=0 // pred_check_branch
    %1802 = sbr.rel (0) target = $region25
  $region24: #{forward.11} parent=0 // pred_region
    _
  $region25: #{forward.11} parent=0 // pred_fallthru
    _
  // Predicated region
  $region26: #{forward.11} parent=0 // pred_check
    _
  $region27: #{forward.11} parent=0 // pred_check_branch
    %1804 = sbr.rel (0) target = $region29
  $region28: #{forward.11} parent=0 // pred_region
    _
  $region29: #{forward.11} parent=0 // pred_fallthru
    _

</llo_original>
